<compile_context>
chip_gen: v7x
topology: tpu7x:2x2x1
jax: 0.10.0
libtpu: 0.0.40
codegen_flags: <defaults>
</compile_context>

<pallas_src>
import jax
import jax.numpy as jnp
from jax import lax
from jax.experimental import pallas as pl
from jax.experimental.pallas import tpu as pltpu


C_OUT = 16          # stem output channels
KSIZE = 3
STRIDE = 2
PAD = 1
BN_EPS = 1e-5

_LANE = 128
_ROW_TILE = 32                           # row granularity (safe for packed uint8 blocks)
_MAX_STRIP_ELEMS = 128 * 1024            # per-channel output elements per row strip
_VMEM_LIMIT_BYTES = 48 * 1024 * 1024     # > v5e 16 MiB default, < v7x 64 MiB/TC physical


def _round_up(x, m):
    return ((x + m - 1) // m) * m


def _compute_dtype():
    """bf16 taps on chips with a bf16 VPU (v6e+ / v7x); f32 on v5e and older."""
    try:
        kind = jax.devices()[0].device_kind.lower()
    except Exception:
        return jnp.float32
    if any(v in kind for v in ("v2", "v3", "v4", "v5")):
        return jnp.float32
    return jnp.bfloat16


def _pick_row_tile(B, OH, ow_pad):
    """Row-strip height: multiple of 32, bounded by the VMEM budget, and split
    further so the 2-axis grid has >= 4 steps (keeps both v7x TCs busy)."""
    budget = max(_ROW_TILE,
                 ((_MAX_STRIP_ELEMS // max(ow_pad, 1)) // _ROW_TILE) * _ROW_TILE)
    toh = min(budget, _round_up(OH, _ROW_TILE))
    while toh > _ROW_TILE and B * pl.cdiv(OH, toh) < 4:
        toh = _round_up(max(_ROW_TILE, toh // 2), _ROW_TILE)
    return toh


def _make_stem_kernel(ow_pad, compute_dtype, integer_planes):
    """Fused stride-2 3x3 conv (9 VPU FMAs over phase planes) + folded BN + ReLU6.

    Refs:
      w_ref      : SMEM (C_OUT*9,) f32 -- conv weights with bn_scale and 1/255 folded in
      bias_ref   : SMEM (C_OUT,)   f32 -- folded BN bias
      planes_ref : VMEM (1, 6, TOH, OWP) raw pixels (uint8 preferred)
      o_ref      : VMEM (1, C_OUT, TOH, ow_pad) f32
    """
    def kernel(w_ref, bias_ref, planes_ref, o_ref):
        def upcast(v):
            if integer_planes:
                v = v.astype(jnp.int32)          # zero-extend (well-trodden path)
            return v.astype(jnp.float32).astype(compute_dtype)

        # Up-cast the six phase planes once (1/255 already folded into weights).
        p = [upcast(planes_ref[0, k]) for k in range(6)]

        # The 9 conv taps, (kh, kw) row-major.  kw in {0,1} are plane columns j;
        # kw=2 is the even-column plane shifted by one lane (cheap XLU relayout).
        taps = (
            p[0][:, :ow_pad], p[1][:, :ow_pad], p[0][:, 1:ow_pad + 1],
            p[2][:, :ow_pad], p[3][:, :ow_pad], p[2][:, 1:ow_pad + 1],
            p[4][:, :ow_pad], p[5][:, :ow_pad], p[4][:, 1:ow_pad + 1],
        )

        def wvec(idx):
            # f32 SMEM scalar -> (1,1) compute-dtype splat (one replicated vreg),
            # avoids sub-32-bit scalar handling while keeping the mul in bf16.
            return jnp.full((1, 1), w_ref[idx], dtype=jnp.float32).astype(compute_dtype)

        for c in range(C_OUT):
            prods = [wvec(c * 9 + t) * taps[t] for t in range(9)]
            while len(prods) > 1:                       # pairwise tree sum
                nxt = [prods[i] + prods[i + 1] for i in range(0, len(prods) - 1, 2)]
                if len(prods) % 2:
                    nxt.append(prods[-1])
                prods = nxt
            acc = prods[0].astype(jnp.float32)
            o_ref[0, c, :, :] = jnp.clip(acc + bias_ref[c], 0.0, 6.0)

    return kernel


def feature_extractor_forward(x, conv_w, bn_gamma, bn_beta, bn_mean, bn_var,
                              compute_dtype=None):
    """x: [B, 1, H, W] uint8 (preferred) or float raw pixels in [0, 255].

    Returns [B, C_OUT, H//2, W//2] float32  (== ReLU6(BN(Conv_s2(x / 255)))).
    """
    B, Cin, H, W = x.shape
    assert Cin == 1, "stem was replaced to in_channels=1"
    assert H % 2 == 0 and W % 2 == 0, "even spatial dims expected for the stride-2 stem"
    if compute_dtype is None:
        compute_dtype = _compute_dtype()

    OH = (H + 2 * PAD - KSIZE) // STRIDE + 1          # == H // 2
    OW = (W + 2 * PAD - KSIZE) // STRIDE + 1          # == W // 2

    OW_pad = _round_up(OW, _LANE)                     # lane-dense output stores
    OWP = OW_pad + _LANE                              # +1 phase column for kw=2 taps,
                                                      # rounded to a whole lane tile

    TOH = _pick_row_tile(B, OH, OW_pad)
    n_strips = pl.cdiv(OH, TOH)
    OH_pad = n_strips * TOH

    # ---- fold eval-mode BN and the /255 scaling into per-channel weights ----
    bn_scale = bn_gamma.astype(jnp.float32) / jnp.sqrt(bn_var.astype(jnp.float32) + BN_EPS)
    w_eff = (conv_w.astype(jnp.float32).reshape(C_OUT, KSIZE * KSIZE)
             * bn_scale[:, None]) * (1.0 / 255.0)
    w_flat = w_eff.reshape(-1)                                            # (C_OUT*9,)
    bias_eff = bn_beta.astype(jnp.float32) - bn_mean.astype(jnp.float32) * bn_scale

    # ---- one fused pad + stride-2 space-to-depth producing a single stacked
    #      low-precision plane array [B, 6, OH_pad, OWP] ----
    plane_dtype = jnp.uint8 if x.dtype == jnp.uint8 else jnp.float32
    integer_planes = jnp.issubdtype(plane_dtype, jnp.integer)
    x2 = x[:, 0, :, :].astype(plane_dtype)
    Hp2 = 2 * OH_pad + 2
    Wp2 = 2 * OWP
    xp = jnp.pad(x2, ((0, 0), (PAD, Hp2 - H - PAD), (PAD, Wp2 - W - PAD)))
    ph = xp.reshape(B, OH_pad + 1, 2, OWP, 2)
    p00, p01 = ph[:, :, 0, :, 0], ph[:, :, 0, :, 1]
    p10, p11 = ph[:, :, 1, :, 0], ph[:, :, 1, :, 1]
    planes = jnp.stack(
        [p00[:, :OH_pad], p01[:, :OH_pad],            # kh = 0 taps
         p10[:, :OH_pad], p11[:, :OH_pad],            # kh = 1 taps
         p00[:, 1:],      p01[:, 1:]],                # kh = 2 taps (rows shifted by 1)
        axis=1)                                       # [B, 6, OH_pad, OWP]
    # TODO(synk): the kh=2 planes duplicate p00/p01; an element-offset row
    # BlockSpec over a 4-plane array would remove the last ~2 B/output-pixel.

    smem_spec = pl.BlockSpec(memory_space=pltpu.MemorySpace.SMEM)
    out = pl.pallas_call(
        _make_stem_kernel(OW_pad, compute_dtype, integer_planes),
        out_shape=jax.ShapeDtypeStruct((B, C_OUT, OH_pad, OW_pad), jnp.float32),
        grid_spec=pltpu.PrefetchScalarGridSpec(
            num_scalar_prefetch=0,
            grid=(B, n_strips),
            in_specs=[smem_spec, smem_spec,
                      pl.BlockSpec((1, 6, TOH, OWP), lambda b, i: (b, 0, i, 0))],
            out_specs=pl.BlockSpec((1, C_OUT, TOH, OW_pad), lambda b, i: (b, 0, i, 0)),
        ),
        compiler_params=pltpu.CompilerParams(
            dimension_semantics=("parallel", "parallel"),
            vmem_limit_bytes=_VMEM_LIMIT_BYTES),
    )(w_flat, bias_eff, planes)
    # TODO(synk): emit bf16 output if the downstream consumer allows it (halves
    # the dominant store term; biggest win on mem-bound v5e).
    return out[:, :, :OH, :OW]


def _reference(x, conv_w, bn_gamma, bn_beta, bn_mean, bn_var):
    """Pure-JAX f32 reference of the same forward pass."""
    xs = x.astype(jnp.float32) / 255.0
    y = lax.conv_general_dilated(
        xs, conv_w,
        window_strides=(STRIDE, STRIDE),
        padding=((PAD, PAD), (PAD, PAD)),
        dimension_numbers=("NCHW", "OIHW", "NCHW"),
    )
    scale = (bn_gamma / jnp.sqrt(bn_var + BN_EPS)).reshape(1, C_OUT, 1, 1)
    bias = (bn_beta - bn_mean * bn_gamma / jnp.sqrt(bn_var + BN_EPS)).reshape(1, C_OUT, 1, 1)
    return jnp.clip(y * scale + bias, 0.0, 6.0)


if __name__ == "__main__":
    key = jax.random.PRNGKey(0)
    k_x, k_w, k_g, k_b, k_m, k_v = jax.random.split(key, 6)

    B, H, W = 2, 16, 16
    # raw uint8 image, values in [0, 255]
    x = jax.random.randint(k_x, (B, 1, H, W), 0, 256, dtype=jnp.int32).astype(jnp.uint8)

    # deterministic synthetic stem parameters
    conv_w = jax.random.normal(k_w, (C_OUT, 1, KSIZE, KSIZE), jnp.float32) * 0.1
    bn_gamma = 1.0 + 0.1 * jax.random.uniform(k_g, (C_OUT,), jnp.float32)
    bn_beta = 0.05 * jax.random.normal(k_b, (C_OUT,), jnp.float32)
    bn_mean = jax.random.normal(k_m, (C_OUT,), jnp.float32) * 0.01
    bn_var = jnp.ones((C_OUT,), jnp.float32) + 0.1 * jax.random.uniform(k_v, (C_OUT,), jnp.float32)

    fwd = jax.jit(feature_extractor_forward)
    out = jax.block_until_ready(fwd(x, conv_w, bn_gamma, bn_beta, bn_mean, bn_var))

    ref = _reference(x, conv_w, bn_gamma, bn_beta, bn_mean, bn_var)
    assert out.shape == (B, C_OUT, H // 2, W // 2), out.shape

    # bf16 tap math (v6e/v7x) needs a looser tolerance than the f32 path (v5e).
    if _compute_dtype() == jnp.bfloat16:
        atol = rtol = 5e-2
    else:
        atol = rtol = 1e-4
    max_err = float(jnp.max(jnp.abs(out - ref)))
    assert jnp.allclose(out, ref, atol=atol, rtol=rtol), max_err

    print("KERNEL_OK")
</pallas_src>

<mosaic_0001>
module attributes {stable_mosaic.version = 11 : i64} {
  func.func @kernel(%arg0: i32, %arg1: i32, %arg2: memref<144xf32, #tpu.memory_space<smem>>, %arg3: memref<16xf32, #tpu.memory_space<smem>>, %arg4: memref<1x6x32x256xi8, #tpu.memory_space<vmem>>, %arg5: memref<1x16x32x128xf32, #tpu.memory_space<vmem>>) attributes {dimension_semantics = [#tpu.dimension_semantics<parallel>, #tpu.dimension_semantics<parallel>], iteration_bounds = array<i64: 2, 1>, scalar_prefetch = 0 : i64, scratch_operands = 0 : i64, tpu.core_type = #tpu.core_type<tc>, window_params = [{transform_indices = @transform_0, window_bounds = array<i64: 144>}, {transform_indices = @transform_1, window_bounds = array<i64: 16>}, {transform_indices = @transform_2, window_bounds = array<i64: 1, 6, 32, 256>}, {transform_indices = @transform_3, window_bounds = array<i64: 1, 16, 32, 128>}]} {
    %c0 = arith.constant 0 : index
    %c0_0 = arith.constant 0 : index
    %c0_1 = arith.constant 0 : index
    %c0_2 = arith.constant 0 : index
    %0 = vector.load %arg4[%c0, %c0_0, %c0_1, %c0_2] : memref<1x6x32x256xi8, #tpu.memory_space<vmem>>, vector<1x1x32x256xi8>
    %1 = vector.shape_cast %0 : vector<1x1x32x256xi8> to vector<32x256xi8>
    %2 = arith.extui %1 : vector<32x256xi8> to vector<32x256xi32>
    %3 = arith.sitofp %2 : vector<32x256xi32> to vector<32x256xf32>
    %4 = arith.truncf %3 : vector<32x256xf32> to vector<32x256xbf16>
    %c0_3 = arith.constant 0 : index
    %c1 = arith.constant 1 : index
    %c0_4 = arith.constant 0 : index
    %c0_5 = arith.constant 0 : index
    %5 = vector.load %arg4[%c0_3, %c1, %c0_4, %c0_5] : memref<1x6x32x256xi8, #tpu.memory_space<vmem>>, vector<1x1x32x256xi8>
    %6 = vector.shape_cast %5 : vector<1x1x32x256xi8> to vector<32x256xi8>
    %7 = arith.extui %6 : vector<32x256xi8> to vector<32x256xi32>
    %8 = arith.sitofp %7 : vector<32x256xi32> to vector<32x256xf32>
    %9 = arith.truncf %8 : vector<32x256xf32> to vector<32x256xbf16>
    %c0_6 = arith.constant 0 : index
    %c2 = arith.constant 2 : index
    %c0_7 = arith.constant 0 : index
    %c0_8 = arith.constant 0 : index
    %10 = vector.load %arg4[%c0_6, %c2, %c0_7, %c0_8] : memref<1x6x32x256xi8, #tpu.memory_space<vmem>>, vector<1x1x32x256xi8>
    %11 = vector.shape_cast %10 : vector<1x1x32x256xi8> to vector<32x256xi8>
    %12 = arith.extui %11 : vector<32x256xi8> to vector<32x256xi32>
    %13 = arith.sitofp %12 : vector<32x256xi32> to vector<32x256xf32>
    %14 = arith.truncf %13 : vector<32x256xf32> to vector<32x256xbf16>
    %c0_9 = arith.constant 0 : index
    %c3 = arith.constant 3 : index
    %c0_10 = arith.constant 0 : index
    %c0_11 = arith.constant 0 : index
    %15 = vector.load %arg4[%c0_9, %c3, %c0_10, %c0_11] : memref<1x6x32x256xi8, #tpu.memory_space<vmem>>, vector<1x1x32x256xi8>
    %16 = vector.shape_cast %15 : vector<1x1x32x256xi8> to vector<32x256xi8>
    %17 = arith.extui %16 : vector<32x256xi8> to vector<32x256xi32>
    %18 = arith.sitofp %17 : vector<32x256xi32> to vector<32x256xf32>
    %19 = arith.truncf %18 : vector<32x256xf32> to vector<32x256xbf16>
    %c0_12 = arith.constant 0 : index
    %c4 = arith.constant 4 : index
    %c0_13 = arith.constant 0 : index
    %c0_14 = arith.constant 0 : index
    %20 = vector.load %arg4[%c0_12, %c4, %c0_13, %c0_14] : memref<1x6x32x256xi8, #tpu.memory_space<vmem>>, vector<1x1x32x256xi8>
    %21 = vector.shape_cast %20 : vector<1x1x32x256xi8> to vector<32x256xi8>
    %22 = arith.extui %21 : vector<32x256xi8> to vector<32x256xi32>
    %23 = arith.sitofp %22 : vector<32x256xi32> to vector<32x256xf32>
    %24 = arith.truncf %23 : vector<32x256xf32> to vector<32x256xbf16>
    %c0_15 = arith.constant 0 : index
    %c5 = arith.constant 5 : index
    %c0_16 = arith.constant 0 : index
    %c0_17 = arith.constant 0 : index
    %25 = vector.load %arg4[%c0_15, %c5, %c0_16, %c0_17] : memref<1x6x32x256xi8, #tpu.memory_space<vmem>>, vector<1x1x32x256xi8>
    %26 = vector.shape_cast %25 : vector<1x1x32x256xi8> to vector<32x256xi8>
    %27 = arith.extui %26 : vector<32x256xi8> to vector<32x256xi32>
    %28 = arith.sitofp %27 : vector<32x256xi32> to vector<32x256xf32>
    %29 = arith.truncf %28 : vector<32x256xf32> to vector<32x256xbf16>
    %30 = vector.extract_strided_slice %4 {offsets = [0, 0], sizes = [32, 128], strides = [1, 1]} : vector<32x256xbf16> to vector<32x128xbf16>
    %31 = vector.extract_strided_slice %9 {offsets = [0, 0], sizes = [32, 128], strides = [1, 1]} : vector<32x256xbf16> to vector<32x128xbf16>
    %32 = vector.extract_strided_slice %4 {offsets = [0, 1], sizes = [32, 128], strides = [1, 1]} : vector<32x256xbf16> to vector<32x128xbf16>
    %33 = vector.extract_strided_slice %14 {offsets = [0, 0], sizes = [32, 128], strides = [1, 1]} : vector<32x256xbf16> to vector<32x128xbf16>
    %34 = vector.extract_strided_slice %19 {offsets = [0, 0], sizes = [32, 128], strides = [1, 1]} : vector<32x256xbf16> to vector<32x128xbf16>
    %35 = vector.extract_strided_slice %14 {offsets = [0, 1], sizes = [32, 128], strides = [1, 1]} : vector<32x256xbf16> to vector<32x128xbf16>
    %36 = vector.extract_strided_slice %24 {offsets = [0, 0], sizes = [32, 128], strides = [1, 1]} : vector<32x256xbf16> to vector<32x128xbf16>
    %37 = vector.extract_strided_slice %29 {offsets = [0, 0], sizes = [32, 128], strides = [1, 1]} : vector<32x256xbf16> to vector<32x128xbf16>
    %38 = vector.extract_strided_slice %24 {offsets = [0, 1], sizes = [32, 128], strides = [1, 1]} : vector<32x256xbf16> to vector<32x128xbf16>
    %c0_18 = arith.constant 0 : index
    %39 = memref.load %arg2[%c0_18] : memref<144xf32, #tpu.memory_space<smem>>
    %40 = vector.broadcast %39 : f32 to vector<1x1xf32>
    %41 = arith.truncf %40 : vector<1x1xf32> to vector<1x1xbf16>
    %42 = vector.broadcast %41 : vector<1x1xbf16> to vector<32x128xbf16>
    %43 = arith.mulf %42, %30 : vector<32x128xbf16>
    %c1_19 = arith.constant 1 : index
    %44 = memref.load %arg2[%c1_19] : memref<144xf32, #tpu.memory_space<smem>>
    %45 = vector.broadcast %44 : f32 to vector<1x1xf32>
    %46 = arith.truncf %45 : vector<1x1xf32> to vector<1x1xbf16>
    %47 = vector.broadcast %46 : vector<1x1xbf16> to vector<32x128xbf16>
    %48 = arith.mulf %47, %31 : vector<32x128xbf16>
    %c2_20 = arith.constant 2 : index
    %49 = memref.load %arg2[%c2_20] : memref<144xf32, #tpu.memory_space<smem>>
    %50 = vector.broadcast %49 : f32 to vector<1x1xf32>
    %51 = arith.truncf %50 : vector<1x1xf32> to vector<1x1xbf16>
    %52 = vector.broadcast %51 : vector<1x1xbf16> to vector<32x128xbf16>
    %53 = arith.mulf %52, %32 : vector<32x128xbf16>
    %c3_21 = arith.constant 3 : index
    %54 = memref.load %arg2[%c3_21] : memref<144xf32, #tpu.memory_space<smem>>
    %55 = vector.broadcast %54 : f32 to vector<1x1xf32>
    %56 = arith.truncf %55 : vector<1x1xf32> to vector<1x1xbf16>
    %57 = vector.broadcast %56 : vector<1x1xbf16> to vector<32x128xbf16>
    %58 = arith.mulf %57, %33 : vector<32x128xbf16>
    %c4_22 = arith.constant 4 : index
    %59 = memref.load %arg2[%c4_22] : memref<144xf32, #tpu.memory_space<smem>>
    %60 = vector.broadcast %59 : f32 to vector<1x1xf32>
    %61 = arith.truncf %60 : vector<1x1xf32> to vector<1x1xbf16>
    %62 = vector.broadcast %61 : vector<1x1xbf16> to vector<32x128xbf16>
    %63 = arith.mulf %62, %34 : vector<32x128xbf16>
    %c5_23 = arith.constant 5 : index
    %64 = memref.load %arg2[%c5_23] : memref<144xf32, #tpu.memory_space<smem>>
    %65 = vector.broadcast %64 : f32 to vector<1x1xf32>
    %66 = arith.truncf %65 : vector<1x1xf32> to vector<1x1xbf16>
    %67 = vector.broadcast %66 : vector<1x1xbf16> to vector<32x128xbf16>
    %68 = arith.mulf %67, %35 : vector<32x128xbf16>
    %c6 = arith.constant 6 : index
    %69 = memref.load %arg2[%c6] : memref<144xf32, #tpu.memory_space<smem>>
    %70 = vector.broadcast %69 : f32 to vector<1x1xf32>
    %71 = arith.truncf %70 : vector<1x1xf32> to vector<1x1xbf16>
    %72 = vector.broadcast %71 : vector<1x1xbf16> to vector<32x128xbf16>
    %73 = arith.mulf %72, %36 : vector<32x128xbf16>
    %c7 = arith.constant 7 : index
    %74 = memref.load %arg2[%c7] : memref<144xf32, #tpu.memory_space<smem>>
    %75 = vector.broadcast %74 : f32 to vector<1x1xf32>
    %76 = arith.truncf %75 : vector<1x1xf32> to vector<1x1xbf16>
    %77 = vector.broadcast %76 : vector<1x1xbf16> to vector<32x128xbf16>
    %78 = arith.mulf %77, %37 : vector<32x128xbf16>
    %c8 = arith.constant 8 : index
    %79 = memref.load %arg2[%c8] : memref<144xf32, #tpu.memory_space<smem>>
    %80 = vector.broadcast %79 : f32 to vector<1x1xf32>
    %81 = arith.truncf %80 : vector<1x1xf32> to vector<1x1xbf16>
    %82 = vector.broadcast %81 : vector<1x1xbf16> to vector<32x128xbf16>
    %83 = arith.mulf %82, %38 : vector<32x128xbf16>
    %84 = arith.addf %43, %48 : vector<32x128xbf16>
    %85 = arith.addf %53, %58 : vector<32x128xbf16>
    %86 = arith.addf %63, %68 : vector<32x128xbf16>
    %87 = arith.addf %73, %78 : vector<32x128xbf16>
    %88 = arith.addf %84, %85 : vector<32x128xbf16>
    %89 = arith.addf %86, %87 : vector<32x128xbf16>
    %90 = arith.addf %88, %89 : vector<32x128xbf16>
    %91 = arith.addf %90, %83 : vector<32x128xbf16>
    %92 = arith.extf %91 : vector<32x128xbf16> to vector<32x128xf32>
    %c0_24 = arith.constant 0 : index
    %93 = memref.load %arg3[%c0_24] : memref<16xf32, #tpu.memory_space<smem>>
    %94 = vector.broadcast %93 : f32 to vector<32x128xf32>
    %95 = arith.addf %92, %94 : vector<32x128xf32>
    %cst = arith.constant 0.000000e+00 : f32
    %cst_25 = arith.constant 6.000000e+00 : f32
    %96 = vector.broadcast %cst : f32 to vector<32x128xf32>
    %97 = arith.maximumf %96, %95 : vector<32x128xf32>
    %98 = vector.broadcast %cst_25 : f32 to vector<32x128xf32>
    %99 = arith.minimumf %98, %97 : vector<32x128xf32>
    %c0_26 = arith.constant 0 : index
    %c0_27 = arith.constant 0 : index
    %c0_28 = arith.constant 0 : index
    %c0_29 = arith.constant 0 : index
    %100 = vector.load %arg5[%c0_26, %c0_27, %c0_28, %c0_29] : memref<1x16x32x128xf32, #tpu.memory_space<vmem>>, vector<1x1x32x128xf32>
    %101 = vector.shape_cast %100 : vector<1x1x32x128xf32> to vector<32x128xf32>
    %102 = vector.shape_cast %99 : vector<32x128xf32> to vector<1x1x32x128xf32>
    tpu.vector_store %arg5[%c0_26, %c0_27, %c0_28, %c0_29], %102 {strides = array<i32>} : memref<1x16x32x128xf32, #tpu.memory_space<vmem>>, vector<1x1x32x128xf32>,
    %c9 = arith.constant 9 : index
    %103 = memref.load %arg2[%c9] : memref<144xf32, #tpu.memory_space<smem>>
    %104 = vector.broadcast %103 : f32 to vector<1x1xf32>
    %105 = arith.truncf %104 : vector<1x1xf32> to vector<1x1xbf16>
    %106 = vector.broadcast %105 : vector<1x1xbf16> to vector<32x128xbf16>
    %107 = arith.mulf %106, %30 : vector<32x128xbf16>
    %c10 = arith.constant 10 : index
    %108 = memref.load %arg2[%c10] : memref<144xf32, #tpu.memory_space<smem>>
    %109 = vector.broadcast %108 : f32 to vector<1x1xf32>
    %110 = arith.truncf %109 : vector<1x1xf32> to vector<1x1xbf16>
    %111 = vector.broadcast %110 : vector<1x1xbf16> to vector<32x128xbf16>
    %112 = arith.mulf %111, %31 : vector<32x128xbf16>
    %c11 = arith.constant 11 : index
    %113 = memref.load %arg2[%c11] : memref<144xf32, #tpu.memory_space<smem>>
    %114 = vector.broadcast %113 : f32 to vector<1x1xf32>
    %115 = arith.truncf %114 : vector<1x1xf32> to vector<1x1xbf16>
    %116 = vector.broadcast %115 : vector<1x1xbf16> to vector<32x128xbf16>
    %117 = arith.mulf %116, %32 : vector<32x128xbf16>
    %c12 = arith.constant 12 : index
    %118 = memref.load %arg2[%c12] : memref<144xf32, #tpu.memory_space<smem>>
    %119 = vector.broadcast %118 : f32 to vector<1x1xf32>
    %120 = arith.truncf %119 : vector<1x1xf32> to vector<1x1xbf16>
    %121 = vector.broadcast %120 : vector<1x1xbf16> to vector<32x128xbf16>
    %122 = arith.mulf %121, %33 : vector<32x128xbf16>
    %c13 = arith.constant 13 : index
    %123 = memref.load %arg2[%c13] : memref<144xf32, #tpu.memory_space<smem>>
    %124 = vector.broadcast %123 : f32 to vector<1x1xf32>
    %125 = arith.truncf %124 : vector<1x1xf32> to vector<1x1xbf16>
    %126 = vector.broadcast %125 : vector<1x1xbf16> to vector<32x128xbf16>
    %127 = arith.mulf %126, %34 : vector<32x128xbf16>
    %c14 = arith.constant 14 : index
    %128 = memref.load %arg2[%c14] : memref<144xf32, #tpu.memory_space<smem>>
    %129 = vector.broadcast %128 : f32 to vector<1x1xf32>
    %130 = arith.truncf %129 : vector<1x1xf32> to vector<1x1xbf16>
    %131 = vector.broadcast %130 : vector<1x1xbf16> to vector<32x128xbf16>
    %132 = arith.mulf %131, %35 : vector<32x128xbf16>
    %c15 = arith.constant 15 : index
    %133 = memref.load %arg2[%c15] : memref<144xf32, #tpu.memory_space<smem>>
    %134 = vector.broadcast %133 : f32 to vector<1x1xf32>
    %135 = arith.truncf %134 : vector<1x1xf32> to vector<1x1xbf16>
    %136 = vector.broadcast %135 : vector<1x1xbf16> to vector<32x128xbf16>
    %137 = arith.mulf %136, %36 : vector<32x128xbf16>
    %c16 = arith.constant 16 : index
    %138 = memref.load %arg2[%c16] : memref<144xf32, #tpu.memory_space<smem>>
    %139 = vector.broadcast %138 : f32 to vector<1x1xf32>
    %140 = arith.truncf %139 : vector<1x1xf32> to vector<1x1xbf16>
    %141 = vector.broadcast %140 : vector<1x1xbf16> to vector<32x128xbf16>
    %142 = arith.mulf %141, %37 : vector<32x128xbf16>
    %c17 = arith.constant 17 : index
    %143 = memref.load %arg2[%c17] : memref<144xf32, #tpu.memory_space<smem>>
    %144 = vector.broadcast %143 : f32 to vector<1x1xf32>
    %145 = arith.truncf %144 : vector<1x1xf32> to vector<1x1xbf16>
    %146 = vector.broadcast %145 : vector<1x1xbf16> to vector<32x128xbf16>
    %147 = arith.mulf %146, %38 : vector<32x128xbf16>
    %148 = arith.addf %107, %112 : vector<32x128xbf16>
    %149 = arith.addf %117, %122 : vector<32x128xbf16>
    %150 = arith.addf %127, %132 : vector<32x128xbf16>
    %151 = arith.addf %137, %142 : vector<32x128xbf16>
    %152 = arith.addf %148, %149 : vector<32x128xbf16>
    %153 = arith.addf %150, %151 : vector<32x128xbf16>
    %154 = arith.addf %152, %153 : vector<32x128xbf16>
    %155 = arith.addf %154, %147 : vector<32x128xbf16>
    %156 = arith.extf %155 : vector<32x128xbf16> to vector<32x128xf32>
    %c1_30 = arith.constant 1 : index
    %157 = memref.load %arg3[%c1_30] : memref<16xf32, #tpu.memory_space<smem>>
    %158 = vector.broadcast %157 : f32 to vector<32x128xf32>
    %159 = arith.addf %156, %158 : vector<32x128xf32>
    %cst_31 = arith.constant 0.000000e+00 : f32
    %cst_32 = arith.constant 6.000000e+00 : f32
    %160 = vector.broadcast %cst_31 : f32 to vector<32x128xf32>
    %161 = arith.maximumf %160, %159 : vector<32x128xf32>
    %162 = vector.broadcast %cst_32 : f32 to vector<32x128xf32>
    %163 = arith.minimumf %162, %161 : vector<32x128xf32>
    %c0_33 = arith.constant 0 : index
    %c1_34 = arith.constant 1 : index
    %c0_35 = arith.constant 0 : index
    %c0_36 = arith.constant 0 : index
    %164 = vector.load %arg5[%c0_33, %c1_34, %c0_35, %c0_36] : memref<1x16x32x128xf32, #tpu.memory_space<vmem>>, vector<1x1x32x128xf32>
    %165 = vector.shape_cast %164 : vector<1x1x32x128xf32> to vector<32x128xf32>
    %166 = vector.shape_cast %163 : vector<32x128xf32> to vector<1x1x32x128xf32>
    tpu.vector_store %arg5[%c0_33, %c1_34, %c0_35, %c0_36], %166 {strides = array<i32>} : memref<1x16x32x128xf32, #tpu.memory_space<vmem>>, vector<1x1x32x128xf32>,
    %c18 = arith.constant 18 : index
    %167 = memref.load %arg2[%c18] : memref<144xf32, #tpu.memory_space<smem>>
    %168 = vector.broadcast %167 : f32 to vector<1x1xf32>
    %169 = arith.truncf %168 : vector<1x1xf32> to vector<1x1xbf16>
    %170 = vector.broadcast %169 : vector<1x1xbf16> to vector<32x128xbf16>
    %171 = arith.mulf %170, %30 : vector<32x128xbf16>
    %c19 = arith.constant 19 : index
    %172 = memref.load %arg2[%c19] : memref<144xf32, #tpu.memory_space<smem>>
    %173 = vector.broadcast %172 : f32 to vector<1x1xf32>
    %174 = arith.truncf %173 : vector<1x1xf32> to vector<1x1xbf16>
    %175 = vector.broadcast %174 : vector<1x1xbf16> to vector<32x128xbf16>
    %176 = arith.mulf %175, %31 : vector<32x128xbf16>
    %c20 = arith.constant 20 : index
    %177 = memref.load %arg2[%c20] : memref<144xf32, #tpu.memory_space<smem>>
    %178 = vector.broadcast %177 : f32 to vector<1x1xf32>
    %179 = arith.truncf %178 : vector<1x1xf32> to vector<1x1xbf16>
    %180 = vector.broadcast %179 : vector<1x1xbf16> to vector<32x128xbf16>
    %181 = arith.mulf %180, %32 : vector<32x128xbf16>
    %c21 = arith.constant 21 : index
    %182 = memref.load %arg2[%c21] : memref<144xf32, #tpu.memory_space<smem>>
    %183 = vector.broadcast %182 : f32 to vector<1x1xf32>
    %184 = arith.truncf %183 : vector<1x1xf32> to vector<1x1xbf16>
    %185 = vector.broadcast %184 : vector<1x1xbf16> to vector<32x128xbf16>
    %186 = arith.mulf %185, %33 : vector<32x128xbf16>
    %c22 = arith.constant 22 : index
    %187 = memref.load %arg2[%c22] : memref<144xf32, #tpu.memory_space<smem>>
    %188 = vector.broadcast %187 : f32 to vector<1x1xf32>
    %189 = arith.truncf %188 : vector<1x1xf32> to vector<1x1xbf16>
    %190 = vector.broadcast %189 : vector<1x1xbf16> to vector<32x128xbf16>
    %191 = arith.mulf %190, %34 : vector<32x128xbf16>
    %c23 = arith.constant 23 : index
    %192 = memref.load %arg2[%c23] : memref<144xf32, #tpu.memory_space<smem>>
    %193 = vector.broadcast %192 : f32 to vector<1x1xf32>
    %194 = arith.truncf %193 : vector<1x1xf32> to vector<1x1xbf16>
    %195 = vector.broadcast %194 : vector<1x1xbf16> to vector<32x128xbf16>
    %196 = arith.mulf %195, %35 : vector<32x128xbf16>
    %c24 = arith.constant 24 : index
    %197 = memref.load %arg2[%c24] : memref<144xf32, #tpu.memory_space<smem>>
    %198 = vector.broadcast %197 : f32 to vector<1x1xf32>
    %199 = arith.truncf %198 : vector<1x1xf32> to vector<1x1xbf16>
    %200 = vector.broadcast %199 : vector<1x1xbf16> to vector<32x128xbf16>
    %201 = arith.mulf %200, %36 : vector<32x128xbf16>
    %c25 = arith.constant 25 : index
    %202 = memref.load %arg2[%c25] : memref<144xf32, #tpu.memory_space<smem>>
    %203 = vector.broadcast %202 : f32 to vector<1x1xf32>
    %204 = arith.truncf %203 : vector<1x1xf32> to vector<1x1xbf16>
    %205 = vector.broadcast %204 : vector<1x1xbf16> to vector<32x128xbf16>
    %206 = arith.mulf %205, %37 : vector<32x128xbf16>
    %c26 = arith.constant 26 : index
    %207 = memref.load %arg2[%c26] : memref<144xf32, #tpu.memory_space<smem>>
    %208 = vector.broadcast %207 : f32 to vector<1x1xf32>
    %209 = arith.truncf %208 : vector<1x1xf32> to vector<1x1xbf16>
    %210 = vector.broadcast %209 : vector<1x1xbf16> to vector<32x128xbf16>
    %211 = arith.mulf %210, %38 : vector<32x128xbf16>
    %212 = arith.addf %171, %176 : vector<32x128xbf16>
    %213 = arith.addf %181, %186 : vector<32x128xbf16>
    %214 = arith.addf %191, %196 : vector<32x128xbf16>
    %215 = arith.addf %201, %206 : vector<32x128xbf16>
    %216 = arith.addf %212, %213 : vector<32x128xbf16>
    %217 = arith.addf %214, %215 : vector<32x128xbf16>
    %218 = arith.addf %216, %217 : vector<32x128xbf16>
    %219 = arith.addf %218, %211 : vector<32x128xbf16>
    %220 = arith.extf %219 : vector<32x128xbf16> to vector<32x128xf32>
    %c2_37 = arith.constant 2 : index
    %221 = memref.load %arg3[%c2_37] : memref<16xf32, #tpu.memory_space<smem>>
    %222 = vector.broadcast %221 : f32 to vector<32x128xf32>
    %223 = arith.addf %220, %222 : vector<32x128xf32>
    %cst_38 = arith.constant 0.000000e+00 : f32
    %cst_39 = arith.constant 6.000000e+00 : f32
    %224 = vector.broadcast %cst_38 : f32 to vector<32x128xf32>
    %225 = arith.maximumf %224, %223 : vector<32x128xf32>
    %226 = vector.broadcast %cst_39 : f32 to vector<32x128xf32>
    %227 = arith.minimumf %226, %225 : vector<32x128xf32>
    %c0_40 = arith.constant 0 : index
    %c2_41 = arith.constant 2 : index
    %c0_42 = arith.constant 0 : index
    %c0_43 = arith.constant 0 : index
    %228 = vector.load %arg5[%c0_40, %c2_41, %c0_42, %c0_43] : memref<1x16x32x128xf32, #tpu.memory_space<vmem>>, vector<1x1x32x128xf32>
    %229 = vector.shape_cast %228 : vector<1x1x32x128xf32> to vector<32x128xf32>
    %230 = vector.shape_cast %227 : vector<32x128xf32> to vector<1x1x32x128xf32>
    tpu.vector_store %arg5[%c0_40, %c2_41, %c0_42, %c0_43], %230 {strides = array<i32>} : memref<1x16x32x128xf32, #tpu.memory_space<vmem>>, vector<1x1x32x128xf32>,
    %c27 = arith.constant 27 : index
    %231 = memref.load %arg2[%c27] : memref<144xf32, #tpu.memory_space<smem>>
    %232 = vector.broadcast %231 : f32 to vector<1x1xf32>
    %233 = arith.truncf %232 : vector<1x1xf32> to vector<1x1xbf16>
    %234 = vector.broadcast %233 : vector<1x1xbf16> to vector<32x128xbf16>
    %235 = arith.mulf %234, %30 : vector<32x128xbf16>
    %c28 = arith.constant 28 : index
    %236 = memref.load %arg2[%c28] : memref<144xf32, #tpu.memory_space<smem>>
    %237 = vector.broadcast %236 : f32 to vector<1x1xf32>
    %238 = arith.truncf %237 : vector<1x1xf32> to vector<1x1xbf16>
    %239 = vector.broadcast %238 : vector<1x1xbf16> to vector<32x128xbf16>
    %240 = arith.mulf %239, %31 : vector<32x128xbf16>
    %c29 = arith.constant 29 : index
    %241 = memref.load %arg2[%c29] : memref<144xf32, #tpu.memory_space<smem>>
    %242 = vector.broadcast %241 : f32 to vector<1x1xf32>
    %243 = arith.truncf %242 : vector<1x1xf32> to vector<1x1xbf16>
    %244 = vector.broadcast %243 : vector<1x1xbf16> to vector<32x128xbf16>
    %245 = arith.mulf %244, %32 : vector<32x128xbf16>
    %c30 = arith.constant 30 : index
    %246 = memref.load %arg2[%c30] : memref<144xf32, #tpu.memory_space<smem>>
    %247 = vector.broadcast %246 : f32 to vector<1x1xf32>
    %248 = arith.truncf %247 : vector<1x1xf32> to vector<1x1xbf16>
    %249 = vector.broadcast %248 : vector<1x1xbf16> to vector<32x128xbf16>
    %250 = arith.mulf %249, %33 : vector<32x128xbf16>
    %c31 = arith.constant 31 : index
    %251 = memref.load %arg2[%c31] : memref<144xf32, #tpu.memory_space<smem>>
    %252 = vector.broadcast %251 : f32 to vector<1x1xf32>
    %253 = arith.truncf %252 : vector<1x1xf32> to vector<1x1xbf16>
    %254 = vector.broadcast %253 : vector<1x1xbf16> to vector<32x128xbf16>
    %255 = arith.mulf %254, %34 : vector<32x128xbf16>
    %c32 = arith.constant 32 : index
    %256 = memref.load %arg2[%c32] : memref<144xf32, #tpu.memory_space<smem>>
    %257 = vector.broadcast %256 : f32 to vector<1x1xf32>
    %258 = arith.truncf %257 : vector<1x1xf32> to vector<1x1xbf16>
    %259 = vector.broadcast %258 : vector<1x1xbf16> to vector<32x128xbf16>
    %260 = arith.mulf %259, %35 : vector<32x128xbf16>
    %c33 = arith.constant 33 : index
    %261 = memref.load %arg2[%c33] : memref<144xf32, #tpu.memory_space<smem>>
    %262 = vector.broadcast %261 : f32 to vector<1x1xf32>
    %263 = arith.truncf %262 : vector<1x1xf32> to vector<1x1xbf16>
    %264 = vector.broadcast %263 : vector<1x1xbf16> to vector<32x128xbf16>
    %265 = arith.mulf %264, %36 : vector<32x128xbf16>
    %c34 = arith.constant 34 : index
    %266 = memref.load %arg2[%c34] : memref<144xf32, #tpu.memory_space<smem>>
    %267 = vector.broadcast %266 : f32 to vector<1x1xf32>
    %268 = arith.truncf %267 : vector<1x1xf32> to vector<1x1xbf16>
    %269 = vector.broadcast %268 : vector<1x1xbf16> to vector<32x128xbf16>
    %270 = arith.mulf %269, %37 : vector<32x128xbf16>
    %c35 = arith.constant 35 : index
    %271 = memref.load %arg2[%c35] : memref<144xf32, #tpu.memory_space<smem>>
    %272 = vector.broadcast %271 : f32 to vector<1x1xf32>
    %273 = arith.truncf %272 : vector<1x1xf32> to vector<1x1xbf16>
    %274 = vector.broadcast %273 : vector<1x1xbf16> to vector<32x128xbf16>
    %275 = arith.mulf %274, %38 : vector<32x128xbf16>
    %276 = arith.addf %235, %240 : vector<32x128xbf16>
    %277 = arith.addf %245, %250 : vector<32x128xbf16>
    %278 = arith.addf %255, %260 : vector<32x128xbf16>
    %279 = arith.addf %265, %270 : vector<32x128xbf16>
    %280 = arith.addf %276, %277 : vector<32x128xbf16>
    %281 = arith.addf %278, %279 : vector<32x128xbf16>
    %282 = arith.addf %280, %281 : vector<32x128xbf16>
    %283 = arith.addf %282, %275 : vector<32x128xbf16>
    %284 = arith.extf %283 : vector<32x128xbf16> to vector<32x128xf32>
    %c3_44 = arith.constant 3 : index
    %285 = memref.load %arg3[%c3_44] : memref<16xf32, #tpu.memory_space<smem>>
    %286 = vector.broadcast %285 : f32 to vector<32x128xf32>
    %287 = arith.addf %284, %286 : vector<32x128xf32>
    %cst_45 = arith.constant 0.000000e+00 : f32
    %cst_46 = arith.constant 6.000000e+00 : f32
    %288 = vector.broadcast %cst_45 : f32 to vector<32x128xf32>
    %289 = arith.maximumf %288, %287 : vector<32x128xf32>
    %290 = vector.broadcast %cst_46 : f32 to vector<32x128xf32>
    %291 = arith.minimumf %290, %289 : vector<32x128xf32>
    %c0_47 = arith.constant 0 : index
    %c3_48 = arith.constant 3 : index
    %c0_49 = arith.constant 0 : index
    %c0_50 = arith.constant 0 : index
    %292 = vector.load %arg5[%c0_47, %c3_48, %c0_49, %c0_50] : memref<1x16x32x128xf32, #tpu.memory_space<vmem>>, vector<1x1x32x128xf32>
    %293 = vector.shape_cast %292 : vector<1x1x32x128xf32> to vector<32x128xf32>
    %294 = vector.shape_cast %291 : vector<32x128xf32> to vector<1x1x32x128xf32>
    tpu.vector_store %arg5[%c0_47, %c3_48, %c0_49, %c0_50], %294 {strides = array<i32>} : memref<1x16x32x128xf32, #tpu.memory_space<vmem>>, vector<1x1x32x128xf32>,
    %c36 = arith.constant 36 : index
    %295 = memref.load %arg2[%c36] : memref<144xf32, #tpu.memory_space<smem>>
    %296 = vector.broadcast %295 : f32 to vector<1x1xf32>
    %297 = arith.truncf %296 : vector<1x1xf32> to vector<1x1xbf16>
    %298 = vector.broadcast %297 : vector<1x1xbf16> to vector<32x128xbf16>
    %299 = arith.mulf %298, %30 : vector<32x128xbf16>
    %c37 = arith.constant 37 : index
    %300 = memref.load %arg2[%c37] : memref<144xf32, #tpu.memory_space<smem>>
    %301 = vector.broadcast %300 : f32 to vector<1x1xf32>
    %302 = arith.truncf %301 : vector<1x1xf32> to vector<1x1xbf16>
    %303 = vector.broadcast %302 : vector<1x1xbf16> to vector<32x128xbf16>
    %304 = arith.mulf %303, %31 : vector<32x128xbf16>
    %c38 = arith.constant 38 : index
    %305 = memref.load %arg2[%c38] : memref<144xf32, #tpu.memory_space<smem>>
    %306 = vector.broadcast %305 : f32 to vector<1x1xf32>
    %307 = arith.truncf %306 : vector<1x1xf32> to vector<1x1xbf16>
    %308 = vector.broadcast %307 : vector<1x1xbf16> to vector<32x128xbf16>
    %309 = arith.mulf %308, %32 : vector<32x128xbf16>
    %c39 = arith.constant 39 : index
    %310 = memref.load %arg2[%c39] : memref<144xf32, #tpu.memory_space<smem>>
    %311 = vector.broadcast %310 : f32 to vector<1x1xf32>
    %312 = arith.truncf %311 : vector<1x1xf32> to vector<1x1xbf16>
    %313 = vector.broadcast %312 : vector<1x1xbf16> to vector<32x128xbf16>
    %314 = arith.mulf %313, %33 : vector<32x128xbf16>
    %c40 = arith.constant 40 : index
    %315 = memref.load %arg2[%c40] : memref<144xf32, #tpu.memory_space<smem>>
    %316 = vector.broadcast %315 : f32 to vector<1x1xf32>
    %317 = arith.truncf %316 : vector<1x1xf32> to vector<1x1xbf16>
    %318 = vector.broadcast %317 : vector<1x1xbf16> to vector<32x128xbf16>
    %319 = arith.mulf %318, %34 : vector<32x128xbf16>
    %c41 = arith.constant 41 : index
    %320 = memref.load %arg2[%c41] : memref<144xf32, #tpu.memory_space<smem>>
    %321 = vector.broadcast %320 : f32 to vector<1x1xf32>
    %322 = arith.truncf %321 : vector<1x1xf32> to vector<1x1xbf16>
    %323 = vector.broadcast %322 : vector<1x1xbf16> to vector<32x128xbf16>
    %324 = arith.mulf %323, %35 : vector<32x128xbf16>
    %c42 = arith.constant 42 : index
    %325 = memref.load %arg2[%c42] : memref<144xf32, #tpu.memory_space<smem>>
    %326 = vector.broadcast %325 : f32 to vector<1x1xf32>
    %327 = arith.truncf %326 : vector<1x1xf32> to vector<1x1xbf16>
    %328 = vector.broadcast %327 : vector<1x1xbf16> to vector<32x128xbf16>
    %329 = arith.mulf %328, %36 : vector<32x128xbf16>
    %c43 = arith.constant 43 : index
    %330 = memref.load %arg2[%c43] : memref<144xf32, #tpu.memory_space<smem>>
    %331 = vector.broadcast %330 : f32 to vector<1x1xf32>
    %332 = arith.truncf %331 : vector<1x1xf32> to vector<1x1xbf16>
    %333 = vector.broadcast %332 : vector<1x1xbf16> to vector<32x128xbf16>
    %334 = arith.mulf %333, %37 : vector<32x128xbf16>
    %c44 = arith.constant 44 : index
    %335 = memref.load %arg2[%c44] : memref<144xf32, #tpu.memory_space<smem>>
    %336 = vector.broadcast %335 : f32 to vector<1x1xf32>
    %337 = arith.truncf %336 : vector<1x1xf32> to vector<1x1xbf16>
    %338 = vector.broadcast %337 : vector<1x1xbf16> to vector<32x128xbf16>
    %339 = arith.mulf %338, %38 : vector<32x128xbf16>
    %340 = arith.addf %299, %304 : vector<32x128xbf16>
    %341 = arith.addf %309, %314 : vector<32x128xbf16>
    %342 = arith.addf %319, %324 : vector<32x128xbf16>
    %343 = arith.addf %329, %334 : vector<32x128xbf16>
    %344 = arith.addf %340, %341 : vector<32x128xbf16>
    %345 = arith.addf %342, %343 : vector<32x128xbf16>
    %346 = arith.addf %344, %345 : vector<32x128xbf16>
    %347 = arith.addf %346, %339 : vector<32x128xbf16>
    %348 = arith.extf %347 : vector<32x128xbf16> to vector<32x128xf32>
    %c4_51 = arith.constant 4 : index
    %349 = memref.load %arg3[%c4_51] : memref<16xf32, #tpu.memory_space<smem>>
    %350 = vector.broadcast %349 : f32 to vector<32x128xf32>
    %351 = arith.addf %348, %350 : vector<32x128xf32>
    %cst_52 = arith.constant 0.000000e+00 : f32
    %cst_53 = arith.constant 6.000000e+00 : f32
    %352 = vector.broadcast %cst_52 : f32 to vector<32x128xf32>
    %353 = arith.maximumf %352, %351 : vector<32x128xf32>
    %354 = vector.broadcast %cst_53 : f32 to vector<32x128xf32>
    %355 = arith.minimumf %354, %353 : vector<32x128xf32>
    %c0_54 = arith.constant 0 : index
    %c4_55 = arith.constant 4 : index
    %c0_56 = arith.constant 0 : index
    %c0_57 = arith.constant 0 : index
    %356 = vector.load %arg5[%c0_54, %c4_55, %c0_56, %c0_57] : memref<1x16x32x128xf32, #tpu.memory_space<vmem>>, vector<1x1x32x128xf32>
    %357 = vector.shape_cast %356 : vector<1x1x32x128xf32> to vector<32x128xf32>
    %358 = vector.shape_cast %355 : vector<32x128xf32> to vector<1x1x32x128xf32>
    tpu.vector_store %arg5[%c0_54, %c4_55, %c0_56, %c0_57], %358 {strides = array<i32>} : memref<1x16x32x128xf32, #tpu.memory_space<vmem>>, vector<1x1x32x128xf32>,
    %c45 = arith.constant 45 : index
    %359 = memref.load %arg2[%c45] : memref<144xf32, #tpu.memory_space<smem>>
    %360 = vector.broadcast %359 : f32 to vector<1x1xf32>
    %361 = arith.truncf %360 : vector<1x1xf32> to vector<1x1xbf16>
    %362 = vector.broadcast %361 : vector<1x1xbf16> to vector<32x128xbf16>
    %363 = arith.mulf %362, %30 : vector<32x128xbf16>
    %c46 = arith.constant 46 : index
    %364 = memref.load %arg2[%c46] : memref<144xf32, #tpu.memory_space<smem>>
    %365 = vector.broadcast %364 : f32 to vector<1x1xf32>
    %366 = arith.truncf %365 : vector<1x1xf32> to vector<1x1xbf16>
    %367 = vector.broadcast %366 : vector<1x1xbf16> to vector<32x128xbf16>
    %368 = arith.mulf %367, %31 : vector<32x128xbf16>
    %c47 = arith.constant 47 : index
    %369 = memref.load %arg2[%c47] : memref<144xf32, #tpu.memory_space<smem>>
    %370 = vector.broadcast %369 : f32 to vector<1x1xf32>
    %371 = arith.truncf %370 : vector<1x1xf32> to vector<1x1xbf16>
    %372 = vector.broadcast %371 : vector<1x1xbf16> to vector<32x128xbf16>
    %373 = arith.mulf %372, %32 : vector<32x128xbf16>
    %c48 = arith.constant 48 : index
    %374 = memref.load %arg2[%c48] : memref<144xf32, #tpu.memory_space<smem>>
    %375 = vector.broadcast %374 : f32 to vector<1x1xf32>
    %376 = arith.truncf %375 : vector<1x1xf32> to vector<1x1xbf16>
    %377 = vector.broadcast %376 : vector<1x1xbf16> to vector<32x128xbf16>
    %378 = arith.mulf %377, %33 : vector<32x128xbf16>
    %c49 = arith.constant 49 : index
    %379 = memref.load %arg2[%c49] : memref<144xf32, #tpu.memory_space<smem>>
    %380 = vector.broadcast %379 : f32 to vector<1x1xf32>
    %381 = arith.truncf %380 : vector<1x1xf32> to vector<1x1xbf16>
    %382 = vector.broadcast %381 : vector<1x1xbf16> to vector<32x128xbf16>
    %383 = arith.mulf %382, %34 : vector<32x128xbf16>
    %c50 = arith.constant 50 : index
    %384 = memref.load %arg2[%c50] : memref<144xf32, #tpu.memory_space<smem>>
    %385 = vector.broadcast %384 : f32 to vector<1x1xf32>
    %386 = arith.truncf %385 : vector<1x1xf32> to vector<1x1xbf16>
    %387 = vector.broadcast %386 : vector<1x1xbf16> to vector<32x128xbf16>
    %388 = arith.mulf %387, %35 : vector<32x128xbf16>
    %c51 = arith.constant 51 : index
    %389 = memref.load %arg2[%c51] : memref<144xf32, #tpu.memory_space<smem>>
    %390 = vector.broadcast %389 : f32 to vector<1x1xf32>
    %391 = arith.truncf %390 : vector<1x1xf32> to vector<1x1xbf16>
    %392 = vector.broadcast %391 : vector<1x1xbf16> to vector<32x128xbf16>
    %393 = arith.mulf %392, %36 : vector<32x128xbf16>
    %c52 = arith.constant 52 : index
    %394 = memref.load %arg2[%c52] : memref<144xf32, #tpu.memory_space<smem>>
    %395 = vector.broadcast %394 : f32 to vector<1x1xf32>
    %396 = arith.truncf %395 : vector<1x1xf32> to vector<1x1xbf16>
    %397 = vector.broadcast %396 : vector<1x1xbf16> to vector<32x128xbf16>
    %398 = arith.mulf %397, %37 : vector<32x128xbf16>
    %c53 = arith.constant 53 : index
    %399 = memref.load %arg2[%c53] : memref<144xf32, #tpu.memory_space<smem>>
    %400 = vector.broadcast %399 : f32 to vector<1x1xf32>
    %401 = arith.truncf %400 : vector<1x1xf32> to vector<1x1xbf16>
    %402 = vector.broadcast %401 : vector<1x1xbf16> to vector<32x128xbf16>
    %403 = arith.mulf %402, %38 : vector<32x128xbf16>
    %404 = arith.addf %363, %368 : vector<32x128xbf16>
    %405 = arith.addf %373, %378 : vector<32x128xbf16>
    %406 = arith.addf %383, %388 : vector<32x128xbf16>
    %407 = arith.addf %393, %398 : vector<32x128xbf16>
    %408 = arith.addf %404, %405 : vector<32x128xbf16>
    %409 = arith.addf %406, %407 : vector<32x128xbf16>
    %410 = arith.addf %408, %409 : vector<32x128xbf16>
    %411 = arith.addf %410, %403 : vector<32x128xbf16>
    %412 = arith.extf %411 : vector<32x128xbf16> to vector<32x128xf32>
    %c5_58 = arith.constant 5 : index
    %413 = memref.load %arg3[%c5_58] : memref<16xf32, #tpu.memory_space<smem>>
    %414 = vector.broadcast %413 : f32 to vector<32x128xf32>
    %415 = arith.addf %412, %414 : vector<32x128xf32>
    %cst_59 = arith.constant 0.000000e+00 : f32
    %cst_60 = arith.constant 6.000000e+00 : f32
    %416 = vector.broadcast %cst_59 : f32 to vector<32x128xf32>
    %417 = arith.maximumf %416, %415 : vector<32x128xf32>
    %418 = vector.broadcast %cst_60 : f32 to vector<32x128xf32>
    %419 = arith.minimumf %418, %417 : vector<32x128xf32>
    %c0_61 = arith.constant 0 : index
    %c5_62 = arith.constant 5 : index
    %c0_63 = arith.constant 0 : index
    %c0_64 = arith.constant 0 : index
    %420 = vector.load %arg5[%c0_61, %c5_62, %c0_63, %c0_64] : memref<1x16x32x128xf32, #tpu.memory_space<vmem>>, vector<1x1x32x128xf32>
    %421 = vector.shape_cast %420 : vector<1x1x32x128xf32> to vector<32x128xf32>
    %422 = vector.shape_cast %419 : vector<32x128xf32> to vector<1x1x32x128xf32>
    tpu.vector_store %arg5[%c0_61, %c5_62, %c0_63, %c0_64], %422 {strides = array<i32>} : memref<1x16x32x128xf32, #tpu.memory_space<vmem>>, vector<1x1x32x128xf32>,
    %c54 = arith.constant 54 : index
    %423 = memref.load %arg2[%c54] : memref<144xf32, #tpu.memory_space<smem>>
    %424 = vector.broadcast %423 : f32 to vector<1x1xf32>
    %425 = arith.truncf %424 : vector<1x1xf32> to vector<1x1xbf16>
    %426 = vector.broadcast %425 : vector<1x1xbf16> to vector<32x128xbf16>
    %427 = arith.mulf %426, %30 : vector<32x128xbf16>
    %c55 = arith.constant 55 : index
    %428 = memref.load %arg2[%c55] : memref<144xf32, #tpu.memory_space<smem>>
    %429 = vector.broadcast %428 : f32 to vector<1x1xf32>
    %430 = arith.truncf %429 : vector<1x1xf32> to vector<1x1xbf16>
    %431 = vector.broadcast %430 : vector<1x1xbf16> to vector<32x128xbf16>
    %432 = arith.mulf %431, %31 : vector<32x128xbf16>
    %c56 = arith.constant 56 : index
    %433 = memref.load %arg2[%c56] : memref<144xf32, #tpu.memory_space<smem>>
    %434 = vector.broadcast %433 : f32 to vector<1x1xf32>
    %435 = arith.truncf %434 : vector<1x1xf32> to vector<1x1xbf16>
    %436 = vector.broadcast %435 : vector<1x1xbf16> to vector<32x128xbf16>
    %437 = arith.mulf %436, %32 : vector<32x128xbf16>
    %c57 = arith.constant 57 : index
    %438 = memref.load %arg2[%c57] : memref<144xf32, #tpu.memory_space<smem>>
    %439 = vector.broadcast %438 : f32 to vector<1x1xf32>
    %440 = arith.truncf %439 : vector<1x1xf32> to vector<1x1xbf16>
    %441 = vector.broadcast %440 : vector<1x1xbf16> to vector<32x128xbf16>
    %442 = arith.mulf %441, %33 : vector<32x128xbf16>
    %c58 = arith.constant 58 : index
    %443 = memref.load %arg2[%c58] : memref<144xf32, #tpu.memory_space<smem>>
    %444 = vector.broadcast %443 : f32 to vector<1x1xf32>
    %445 = arith.truncf %444 : vector<1x1xf32> to vector<1x1xbf16>
    %446 = vector.broadcast %445 : vector<1x1xbf16> to vector<32x128xbf16>
    %447 = arith.mulf %446, %34 : vector<32x128xbf16>
    %c59 = arith.constant 59 : index
    %448 = memref.load %arg2[%c59] : memref<144xf32, #tpu.memory_space<smem>>
    %449 = vector.broadcast %448 : f32 to vector<1x1xf32>
    %450 = arith.truncf %449 : vector<1x1xf32> to vector<1x1xbf16>
    %451 = vector.broadcast %450 : vector<1x1xbf16> to vector<32x128xbf16>
    %452 = arith.mulf %451, %35 : vector<32x128xbf16>
    %c60 = arith.constant 60 : index
    %453 = memref.load %arg2[%c60] : memref<144xf32, #tpu.memory_space<smem>>
    %454 = vector.broadcast %453 : f32 to vector<1x1xf32>
    %455 = arith.truncf %454 : vector<1x1xf32> to vector<1x1xbf16>
    %456 = vector.broadcast %455 : vector<1x1xbf16> to vector<32x128xbf16>
    %457 = arith.mulf %456, %36 : vector<32x128xbf16>
    %c61 = arith.constant 61 : index
    %458 = memref.load %arg2[%c61] : memref<144xf32, #tpu.memory_space<smem>>
    %459 = vector.broadcast %458 : f32 to vector<1x1xf32>
    %460 = arith.truncf %459 : vector<1x1xf32> to vector<1x1xbf16>
    %461 = vector.broadcast %460 : vector<1x1xbf16> to vector<32x128xbf16>
    %462 = arith.mulf %461, %37 : vector<32x128xbf16>
    %c62 = arith.constant 62 : index
    %463 = memref.load %arg2[%c62] : memref<144xf32, #tpu.memory_space<smem>>
    %464 = vector.broadcast %463 : f32 to vector<1x1xf32>
    %465 = arith.truncf %464 : vector<1x1xf32> to vector<1x1xbf16>
    %466 = vector.broadcast %465 : vector<1x1xbf16> to vector<32x128xbf16>
    %467 = arith.mulf %466, %38 : vector<32x128xbf16>
    %468 = arith.addf %427, %432 : vector<32x128xbf16>
    %469 = arith.addf %437, %442 : vector<32x128xbf16>
    %470 = arith.addf %447, %452 : vector<32x128xbf16>
    %471 = arith.addf %457, %462 : vector<32x128xbf16>
    %472 = arith.addf %468, %469 : vector<32x128xbf16>
    %473 = arith.addf %470, %471 : vector<32x128xbf16>
    %474 = arith.addf %472, %473 : vector<32x128xbf16>
    %475 = arith.addf %474, %467 : vector<32x128xbf16>
    %476 = arith.extf %475 : vector<32x128xbf16> to vector<32x128xf32>
    %c6_65 = arith.constant 6 : index
    %477 = memref.load %arg3[%c6_65] : memref<16xf32, #tpu.memory_space<smem>>
    %478 = vector.broadcast %477 : f32 to vector<32x128xf32>
    %479 = arith.addf %476, %478 : vector<32x128xf32>
    %cst_66 = arith.constant 0.000000e+00 : f32
    %cst_67 = arith.constant 6.000000e+00 : f32
    %480 = vector.broadcast %cst_66 : f32 to vector<32x128xf32>
    %481 = arith.maximumf %480, %479 : vector<32x128xf32>
    %482 = vector.broadcast %cst_67 : f32 to vector<32x128xf32>
    %483 = arith.minimumf %482, %481 : vector<32x128xf32>
    %c0_68 = arith.constant 0 : index
    %c6_69 = arith.constant 6 : index
    %c0_70 = arith.constant 0 : index
    %c0_71 = arith.constant 0 : index
    %484 = vector.load %arg5[%c0_68, %c6_69, %c0_70, %c0_71] : memref<1x16x32x128xf32, #tpu.memory_space<vmem>>, vector<1x1x32x128xf32>
    %485 = vector.shape_cast %484 : vector<1x1x32x128xf32> to vector<32x128xf32>
    %486 = vector.shape_cast %483 : vector<32x128xf32> to vector<1x1x32x128xf32>
    tpu.vector_store %arg5[%c0_68, %c6_69, %c0_70, %c0_71], %486 {strides = array<i32>} : memref<1x16x32x128xf32, #tpu.memory_space<vmem>>, vector<1x1x32x128xf32>,
    %c63 = arith.constant 63 : index
    %487 = memref.load %arg2[%c63] : memref<144xf32, #tpu.memory_space<smem>>
    %488 = vector.broadcast %487 : f32 to vector<1x1xf32>
    %489 = arith.truncf %488 : vector<1x1xf32> to vector<1x1xbf16>
    %490 = vector.broadcast %489 : vector<1x1xbf16> to vector<32x128xbf16>
    %491 = arith.mulf %490, %30 : vector<32x128xbf16>
    %c64 = arith.constant 64 : index
    %492 = memref.load %arg2[%c64] : memref<144xf32, #tpu.memory_space<smem>>
    %493 = vector.broadcast %492 : f32 to vector<1x1xf32>
    %494 = arith.truncf %493 : vector<1x1xf32> to vector<1x1xbf16>
    %495 = vector.broadcast %494 : vector<1x1xbf16> to vector<32x128xbf16>
    %496 = arith.mulf %495, %31 : vector<32x128xbf16>
    %c65 = arith.constant 65 : index
    %497 = memref.load %arg2[%c65] : memref<144xf32, #tpu.memory_space<smem>>
    %498 = vector.broadcast %497 : f32 to vector<1x1xf32>
    %499 = arith.truncf %498 : vector<1x1xf32> to vector<1x1xbf16>
    %500 = vector.broadcast %499 : vector<1x1xbf16> to vector<32x128xbf16>
    %501 = arith.mulf %500, %32 : vector<32x128xbf16>
    %c66 = arith.constant 66 : index
    %502 = memref.load %arg2[%c66] : memref<144xf32, #tpu.memory_space<smem>>
    %503 = vector.broadcast %502 : f32 to vector<1x1xf32>
    %504 = arith.truncf %503 : vector<1x1xf32> to vector<1x1xbf16>
    %505 = vector.broadcast %504 : vector<1x1xbf16> to vector<32x128xbf16>
    %506 = arith.mulf %505, %33 : vector<32x128xbf16>
    %c67 = arith.constant 67 : index
    %507 = memref.load %arg2[%c67] : memref<144xf32, #tpu.memory_space<smem>>
    %508 = vector.broadcast %507 : f32 to vector<1x1xf32>
    %509 = arith.truncf %508 : vector<1x1xf32> to vector<1x1xbf16>
    %510 = vector.broadcast %509 : vector<1x1xbf16> to vector<32x128xbf16>
    %511 = arith.mulf %510, %34 : vector<32x128xbf16>
    %c68 = arith.constant 68 : index
    %512 = memref.load %arg2[%c68] : memref<144xf32, #tpu.memory_space<smem>>
    %513 = vector.broadcast %512 : f32 to vector<1x1xf32>
    %514 = arith.truncf %513 : vector<1x1xf32> to vector<1x1xbf16>
    %515 = vector.broadcast %514 : vector<1x1xbf16> to vector<32x128xbf16>
    %516 = arith.mulf %515, %35 : vector<32x128xbf16>
    %c69 = arith.constant 69 : index
    %517 = memref.load %arg2[%c69] : memref<144xf32, #tpu.memory_space<smem>>
    %518 = vector.broadcast %517 : f32 to vector<1x1xf32>
    %519 = arith.truncf %518 : vector<1x1xf32> to vector<1x1xbf16>
    %520 = vector.broadcast %519 : vector<1x1xbf16> to vector<32x128xbf16>
    %521 = arith.mulf %520, %36 : vector<32x128xbf16>
    %c70 = arith.constant 70 : index
    %522 = memref.load %arg2[%c70] : memref<144xf32, #tpu.memory_space<smem>>
    %523 = vector.broadcast %522 : f32 to vector<1x1xf32>
    %524 = arith.truncf %523 : vector<1x1xf32> to vector<1x1xbf16>
    %525 = vector.broadcast %524 : vector<1x1xbf16> to vector<32x128xbf16>
    %526 = arith.mulf %525, %37 : vector<32x128xbf16>
    %c71 = arith.constant 71 : index
    %527 = memref.load %arg2[%c71] : memref<144xf32, #tpu.memory_space<smem>>
    %528 = vector.broadcast %527 : f32 to vector<1x1xf32>
    %529 = arith.truncf %528 : vector<1x1xf32> to vector<1x1xbf16>
    %530 = vector.broadcast %529 : vector<1x1xbf16> to vector<32x128xbf16>
    %531 = arith.mulf %530, %38 : vector<32x128xbf16>
    %532 = arith.addf %491, %496 : vector<32x128xbf16>
    %533 = arith.addf %501, %506 : vector<32x128xbf16>
    %534 = arith.addf %511, %516 : vector<32x128xbf16>
    %535 = arith.addf %521, %526 : vector<32x128xbf16>
    %536 = arith.addf %532, %533 : vector<32x128xbf16>
    %537 = arith.addf %534, %535 : vector<32x128xbf16>
    %538 = arith.addf %536, %537 : vector<32x128xbf16>
    %539 = arith.addf %538, %531 : vector<32x128xbf16>
    %540 = arith.extf %539 : vector<32x128xbf16> to vector<32x128xf32>
    %c7_72 = arith.constant 7 : index
    %541 = memref.load %arg3[%c7_72] : memref<16xf32, #tpu.memory_space<smem>>
    %542 = vector.broadcast %541 : f32 to vector<32x128xf32>
    %543 = arith.addf %540, %542 : vector<32x128xf32>
    %cst_73 = arith.constant 0.000000e+00 : f32
    %cst_74 = arith.constant 6.000000e+00 : f32
    %544 = vector.broadcast %cst_73 : f32 to vector<32x128xf32>
    %545 = arith.maximumf %544, %543 : vector<32x128xf32>
    %546 = vector.broadcast %cst_74 : f32 to vector<32x128xf32>
    %547 = arith.minimumf %546, %545 : vector<32x128xf32>
    %c0_75 = arith.constant 0 : index
    %c7_76 = arith.constant 7 : index
    %c0_77 = arith.constant 0 : index
    %c0_78 = arith.constant 0 : index
    %548 = vector.load %arg5[%c0_75, %c7_76, %c0_77, %c0_78] : memref<1x16x32x128xf32, #tpu.memory_space<vmem>>, vector<1x1x32x128xf32>
    %549 = vector.shape_cast %548 : vector<1x1x32x128xf32> to vector<32x128xf32>
    %550 = vector.shape_cast %547 : vector<32x128xf32> to vector<1x1x32x128xf32>
    tpu.vector_store %arg5[%c0_75, %c7_76, %c0_77, %c0_78], %550 {strides = array<i32>} : memref<1x16x32x128xf32, #tpu.memory_space<vmem>>, vector<1x1x32x128xf32>,
    %c72 = arith.constant 72 : index
    %551 = memref.load %arg2[%c72] : memref<144xf32, #tpu.memory_space<smem>>
    %552 = vector.broadcast %551 : f32 to vector<1x1xf32>
    %553 = arith.truncf %552 : vector<1x1xf32> to vector<1x1xbf16>
    %554 = vector.broadcast %553 : vector<1x1xbf16> to vector<32x128xbf16>
    %555 = arith.mulf %554, %30 : vector<32x128xbf16>
    %c73 = arith.constant 73 : index
    %556 = memref.load %arg2[%c73] : memref<144xf32, #tpu.memory_space<smem>>
    %557 = vector.broadcast %556 : f32 to vector<1x1xf32>
    %558 = arith.truncf %557 : vector<1x1xf32> to vector<1x1xbf16>
    %559 = vector.broadcast %558 : vector<1x1xbf16> to vector<32x128xbf16>
    %560 = arith.mulf %559, %31 : vector<32x128xbf16>
    %c74 = arith.constant 74 : index
    %561 = memref.load %arg2[%c74] : memref<144xf32, #tpu.memory_space<smem>>
    %562 = vector.broadcast %561 : f32 to vector<1x1xf32>
    %563 = arith.truncf %562 : vector<1x1xf32> to vector<1x1xbf16>
    %564 = vector.broadcast %563 : vector<1x1xbf16> to vector<32x128xbf16>
    %565 = arith.mulf %564, %32 : vector<32x128xbf16>
    %c75 = arith.constant 75 : index
    %566 = memref.load %arg2[%c75] : memref<144xf32, #tpu.memory_space<smem>>
    %567 = vector.broadcast %566 : f32 to vector<1x1xf32>
    %568 = arith.truncf %567 : vector<1x1xf32> to vector<1x1xbf16>
    %569 = vector.broadcast %568 : vector<1x1xbf16> to vector<32x128xbf16>
    %570 = arith.mulf %569, %33 : vector<32x128xbf16>
    %c76 = arith.constant 76 : index
    %571 = memref.load %arg2[%c76] : memref<144xf32, #tpu.memory_space<smem>>
    %572 = vector.broadcast %571 : f32 to vector<1x1xf32>
    %573 = arith.truncf %572 : vector<1x1xf32> to vector<1x1xbf16>
    %574 = vector.broadcast %573 : vector<1x1xbf16> to vector<32x128xbf16>
    %575 = arith.mulf %574, %34 : vector<32x128xbf16>
    %c77 = arith.constant 77 : index
    %576 = memref.load %arg2[%c77] : memref<144xf32, #tpu.memory_space<smem>>
    %577 = vector.broadcast %576 : f32 to vector<1x1xf32>
    %578 = arith.truncf %577 : vector<1x1xf32> to vector<1x1xbf16>
    %579 = vector.broadcast %578 : vector<1x1xbf16> to vector<32x128xbf16>
    %580 = arith.mulf %579, %35 : vector<32x128xbf16>
    %c78 = arith.constant 78 : index
    %581 = memref.load %arg2[%c78] : memref<144xf32, #tpu.memory_space<smem>>
    %582 = vector.broadcast %581 : f32 to vector<1x1xf32>
    %583 = arith.truncf %582 : vector<1x1xf32> to vector<1x1xbf16>
    %584 = vector.broadcast %583 : vector<1x1xbf16> to vector<32x128xbf16>
    %585 = arith.mulf %584, %36 : vector<32x128xbf16>
    %c79 = arith.constant 79 : index
    %586 = memref.load %arg2[%c79] : memref<144xf32, #tpu.memory_space<smem>>
    %587 = vector.broadcast %586 : f32 to vector<1x1xf32>
    %588 = arith.truncf %587 : vector<1x1xf32> to vector<1x1xbf16>
    %589 = vector.broadcast %588 : vector<1x1xbf16> to vector<32x128xbf16>
    %590 = arith.mulf %589, %37 : vector<32x128xbf16>
    %c80 = arith.constant 80 : index
    %591 = memref.load %arg2[%c80] : memref<144xf32, #tpu.memory_space<smem>>
    %592 = vector.broadcast %591 : f32 to vector<1x1xf32>
    %593 = arith.truncf %592 : vector<1x1xf32> to vector<1x1xbf16>
    %594 = vector.broadcast %593 : vector<1x1xbf16> to vector<32x128xbf16>
    %595 = arith.mulf %594, %38 : vector<32x128xbf16>
    %596 = arith.addf %555, %560 : vector<32x128xbf16>
    %597 = arith.addf %565, %570 : vector<32x128xbf16>
    %598 = arith.addf %575, %580 : vector<32x128xbf16>
    %599 = arith.addf %585, %590 : vector<32x128xbf16>
    %600 = arith.addf %596, %597 : vector<32x128xbf16>
    %601 = arith.addf %598, %599 : vector<32x128xbf16>
    %602 = arith.addf %600, %601 : vector<32x128xbf16>
    %603 = arith.addf %602, %595 : vector<32x128xbf16>
    %604 = arith.extf %603 : vector<32x128xbf16> to vector<32x128xf32>
    %c8_79 = arith.constant 8 : index
    %605 = memref.load %arg3[%c8_79] : memref<16xf32, #tpu.memory_space<smem>>
    %606 = vector.broadcast %605 : f32 to vector<32x128xf32>
    %607 = arith.addf %604, %606 : vector<32x128xf32>
    %cst_80 = arith.constant 0.000000e+00 : f32
    %cst_81 = arith.constant 6.000000e+00 : f32
    %608 = vector.broadcast %cst_80 : f32 to vector<32x128xf32>
    %609 = arith.maximumf %608, %607 : vector<32x128xf32>
    %610 = vector.broadcast %cst_81 : f32 to vector<32x128xf32>
    %611 = arith.minimumf %610, %609 : vector<32x128xf32>
    %c0_82 = arith.constant 0 : index
    %c8_83 = arith.constant 8 : index
    %c0_84 = arith.constant 0 : index
    %c0_85 = arith.constant 0 : index
    %612 = vector.load %arg5[%c0_82, %c8_83, %c0_84, %c0_85] : memref<1x16x32x128xf32, #tpu.memory_space<vmem>>, vector<1x1x32x128xf32>
    %613 = vector.shape_cast %612 : vector<1x1x32x128xf32> to vector<32x128xf32>
    %614 = vector.shape_cast %611 : vector<32x128xf32> to vector<1x1x32x128xf32>
    tpu.vector_store %arg5[%c0_82, %c8_83, %c0_84, %c0_85], %614 {strides = array<i32>} : memref<1x16x32x128xf32, #tpu.memory_space<vmem>>, vector<1x1x32x128xf32>,
    %c81 = arith.constant 81 : index
    %615 = memref.load %arg2[%c81] : memref<144xf32, #tpu.memory_space<smem>>
    %616 = vector.broadcast %615 : f32 to vector<1x1xf32>
    %617 = arith.truncf %616 : vector<1x1xf32> to vector<1x1xbf16>
    %618 = vector.broadcast %617 : vector<1x1xbf16> to vector<32x128xbf16>
    %619 = arith.mulf %618, %30 : vector<32x128xbf16>
    %c82 = arith.constant 82 : index
    %620 = memref.load %arg2[%c82] : memref<144xf32, #tpu.memory_space<smem>>
    %621 = vector.broadcast %620 : f32 to vector<1x1xf32>
    %622 = arith.truncf %621 : vector<1x1xf32> to vector<1x1xbf16>
    %623 = vector.broadcast %622 : vector<1x1xbf16> to vector<32x128xbf16>
    %624 = arith.mulf %623, %31 : vector<32x128xbf16>
    %c83 = arith.constant 83 : index
    %625 = memref.load %arg2[%c83] : memref<144xf32, #tpu.memory_space<smem>>
    %626 = vector.broadcast %625 : f32 to vector<1x1xf32>
    %627 = arith.truncf %626 : vector<1x1xf32> to vector<1x1xbf16>
    %628 = vector.broadcast %627 : vector<1x1xbf16> to vector<32x128xbf16>
    %629 = arith.mulf %628, %32 : vector<32x128xbf16>
    %c84 = arith.constant 84 : index
    %630 = memref.load %arg2[%c84] : memref<144xf32, #tpu.memory_space<smem>>
    %631 = vector.broadcast %630 : f32 to vector<1x1xf32>
    %632 = arith.truncf %631 : vector<1x1xf32> to vector<1x1xbf16>
    %633 = vector.broadcast %632 : vector<1x1xbf16> to vector<32x128xbf16>
    %634 = arith.mulf %633, %33 : vector<32x128xbf16>
    %c85 = arith.constant 85 : index
    %635 = memref.load %arg2[%c85] : memref<144xf32, #tpu.memory_space<smem>>
    %636 = vector.broadcast %635 : f32 to vector<1x1xf32>
    %637 = arith.truncf %636 : vector<1x1xf32> to vector<1x1xbf16>
    %638 = vector.broadcast %637 : vector<1x1xbf16> to vector<32x128xbf16>
    %639 = arith.mulf %638, %34 : vector<32x128xbf16>
    %c86 = arith.constant 86 : index
    %640 = memref.load %arg2[%c86] : memref<144xf32, #tpu.memory_space<smem>>
    %641 = vector.broadcast %640 : f32 to vector<1x1xf32>
    %642 = arith.truncf %641 : vector<1x1xf32> to vector<1x1xbf16>
    %643 = vector.broadcast %642 : vector<1x1xbf16> to vector<32x128xbf16>
    %644 = arith.mulf %643, %35 : vector<32x128xbf16>
    %c87 = arith.constant 87 : index
    %645 = memref.load %arg2[%c87] : memref<144xf32, #tpu.memory_space<smem>>
    %646 = vector.broadcast %645 : f32 to vector<1x1xf32>
    %647 = arith.truncf %646 : vector<1x1xf32> to vector<1x1xbf16>
    %648 = vector.broadcast %647 : vector<1x1xbf16> to vector<32x128xbf16>
    %649 = arith.mulf %648, %36 : vector<32x128xbf16>
    %c88 = arith.constant 88 : index
    %650 = memref.load %arg2[%c88] : memref<144xf32, #tpu.memory_space<smem>>
    %651 = vector.broadcast %650 : f32 to vector<1x1xf32>
    %652 = arith.truncf %651 : vector<1x1xf32> to vector<1x1xbf16>
    %653 = vector.broadcast %652 : vector<1x1xbf16> to vector<32x128xbf16>
    %654 = arith.mulf %653, %37 : vector<32x128xbf16>
    %c89 = arith.constant 89 : index
    %655 = memref.load %arg2[%c89] : memref<144xf32, #tpu.memory_space<smem>>
    %656 = vector.broadcast %655 : f32 to vector<1x1xf32>
    %657 = arith.truncf %656 : vector<1x1xf32> to vector<1x1xbf16>
    %658 = vector.broadcast %657 : vector<1x1xbf16> to vector<32x128xbf16>
    %659 = arith.mulf %658, %38 : vector<32x128xbf16>
    %660 = arith.addf %619, %624 : vector<32x128xbf16>
    %661 = arith.addf %629, %634 : vector<32x128xbf16>
    %662 = arith.addf %639, %644 : vector<32x128xbf16>
    %663 = arith.addf %649, %654 : vector<32x128xbf16>
    %664 = arith.addf %660, %661 : vector<32x128xbf16>
    %665 = arith.addf %662, %663 : vector<32x128xbf16>
    %666 = arith.addf %664, %665 : vector<32x128xbf16>
    %667 = arith.addf %666, %659 : vector<32x128xbf16>
    %668 = arith.extf %667 : vector<32x128xbf16> to vector<32x128xf32>
    %c9_86 = arith.constant 9 : index
    %669 = memref.load %arg3[%c9_86] : memref<16xf32, #tpu.memory_space<smem>>
    %670 = vector.broadcast %669 : f32 to vector<32x128xf32>
    %671 = arith.addf %668, %670 : vector<32x128xf32>
    %cst_87 = arith.constant 0.000000e+00 : f32
    %cst_88 = arith.constant 6.000000e+00 : f32
    %672 = vector.broadcast %cst_87 : f32 to vector<32x128xf32>
    %673 = arith.maximumf %672, %671 : vector<32x128xf32>
    %674 = vector.broadcast %cst_88 : f32 to vector<32x128xf32>
    %675 = arith.minimumf %674, %673 : vector<32x128xf32>
    %c0_89 = arith.constant 0 : index
    %c9_90 = arith.constant 9 : index
    %c0_91 = arith.constant 0 : index
    %c0_92 = arith.constant 0 : index
    %676 = vector.load %arg5[%c0_89, %c9_90, %c0_91, %c0_92] : memref<1x16x32x128xf32, #tpu.memory_space<vmem>>, vector<1x1x32x128xf32>
    %677 = vector.shape_cast %676 : vector<1x1x32x128xf32> to vector<32x128xf32>
    %678 = vector.shape_cast %675 : vector<32x128xf32> to vector<1x1x32x128xf32>
    tpu.vector_store %arg5[%c0_89, %c9_90, %c0_91, %c0_92], %678 {strides = array<i32>} : memref<1x16x32x128xf32, #tpu.memory_space<vmem>>, vector<1x1x32x128xf32>,
    %c90 = arith.constant 90 : index
    %679 = memref.load %arg2[%c90] : memref<144xf32, #tpu.memory_space<smem>>
    %680 = vector.broadcast %679 : f32 to vector<1x1xf32>
    %681 = arith.truncf %680 : vector<1x1xf32> to vector<1x1xbf16>
    %682 = vector.broadcast %681 : vector<1x1xbf16> to vector<32x128xbf16>
    %683 = arith.mulf %682, %30 : vector<32x128xbf16>
    %c91 = arith.constant 91 : index
    %684 = memref.load %arg2[%c91] : memref<144xf32, #tpu.memory_space<smem>>
    %685 = vector.broadcast %684 : f32 to vector<1x1xf32>
    %686 = arith.truncf %685 : vector<1x1xf32> to vector<1x1xbf16>
    %687 = vector.broadcast %686 : vector<1x1xbf16> to vector<32x128xbf16>
    %688 = arith.mulf %687, %31 : vector<32x128xbf16>
    %c92 = arith.constant 92 : index
    %689 = memref.load %arg2[%c92] : memref<144xf32, #tpu.memory_space<smem>>
    %690 = vector.broadcast %689 : f32 to vector<1x1xf32>
    %691 = arith.truncf %690 : vector<1x1xf32> to vector<1x1xbf16>
    %692 = vector.broadcast %691 : vector<1x1xbf16> to vector<32x128xbf16>
    %693 = arith.mulf %692, %32 : vector<32x128xbf16>
    %c93 = arith.constant 93 : index
    %694 = memref.load %arg2[%c93] : memref<144xf32, #tpu.memory_space<smem>>
    %695 = vector.broadcast %694 : f32 to vector<1x1xf32>
    %696 = arith.truncf %695 : vector<1x1xf32> to vector<1x1xbf16>
    %697 = vector.broadcast %696 : vector<1x1xbf16> to vector<32x128xbf16>
    %698 = arith.mulf %697, %33 : vector<32x128xbf16>
    %c94 = arith.constant 94 : index
    %699 = memref.load %arg2[%c94] : memref<144xf32, #tpu.memory_space<smem>>
    %700 = vector.broadcast %699 : f32 to vector<1x1xf32>
    %701 = arith.truncf %700 : vector<1x1xf32> to vector<1x1xbf16>
    %702 = vector.broadcast %701 : vector<1x1xbf16> to vector<32x128xbf16>
    %703 = arith.mulf %702, %34 : vector<32x128xbf16>
    %c95 = arith.constant 95 : index
    %704 = memref.load %arg2[%c95] : memref<144xf32, #tpu.memory_space<smem>>
    %705 = vector.broadcast %704 : f32 to vector<1x1xf32>
    %706 = arith.truncf %705 : vector<1x1xf32> to vector<1x1xbf16>
    %707 = vector.broadcast %706 : vector<1x1xbf16> to vector<32x128xbf16>
    %708 = arith.mulf %707, %35 : vector<32x128xbf16>
    %c96 = arith.constant 96 : index
    %709 = memref.load %arg2[%c96] : memref<144xf32, #tpu.memory_space<smem>>
    %710 = vector.broadcast %709 : f32 to vector<1x1xf32>
    %711 = arith.truncf %710 : vector<1x1xf32> to vector<1x1xbf16>
    %712 = vector.broadcast %711 : vector<1x1xbf16> to vector<32x128xbf16>
    %713 = arith.mulf %712, %36 : vector<32x128xbf16>
    %c97 = arith.constant 97 : index
    %714 = memref.load %arg2[%c97] : memref<144xf32, #tpu.memory_space<smem>>
    %715 = vector.broadcast %714 : f32 to vector<1x1xf32>
    %716 = arith.truncf %715 : vector<1x1xf32> to vector<1x1xbf16>
    %717 = vector.broadcast %716 : vector<1x1xbf16> to vector<32x128xbf16>
    %718 = arith.mulf %717, %37 : vector<32x128xbf16>
    %c98 = arith.constant 98 : index
    %719 = memref.load %arg2[%c98] : memref<144xf32, #tpu.memory_space<smem>>
    %720 = vector.broadcast %719 : f32 to vector<1x1xf32>
    %721 = arith.truncf %720 : vector<1x1xf32> to vector<1x1xbf16>
    %722 = vector.broadcast %721 : vector<1x1xbf16> to vector<32x128xbf16>
    %723 = arith.mulf %722, %38 : vector<32x128xbf16>
    %724 = arith.addf %683, %688 : vector<32x128xbf16>
    %725 = arith.addf %693, %698 : vector<32x128xbf16>
    %726 = arith.addf %703, %708 : vector<32x128xbf16>
    %727 = arith.addf %713, %718 : vector<32x128xbf16>
    %728 = arith.addf %724, %725 : vector<32x128xbf16>
    %729 = arith.addf %726, %727 : vector<32x128xbf16>
    %730 = arith.addf %728, %729 : vector<32x128xbf16>
    %731 = arith.addf %730, %723 : vector<32x128xbf16>
    %732 = arith.extf %731 : vector<32x128xbf16> to vector<32x128xf32>
    %c10_93 = arith.constant 10 : index
    %733 = memref.load %arg3[%c10_93] : memref<16xf32, #tpu.memory_space<smem>>
    %734 = vector.broadcast %733 : f32 to vector<32x128xf32>
    %735 = arith.addf %732, %734 : vector<32x128xf32>
    %cst_94 = arith.constant 0.000000e+00 : f32
    %cst_95 = arith.constant 6.000000e+00 : f32
    %736 = vector.broadcast %cst_94 : f32 to vector<32x128xf32>
    %737 = arith.maximumf %736, %735 : vector<32x128xf32>
    %738 = vector.broadcast %cst_95 : f32 to vector<32x128xf32>
    %739 = arith.minimumf %738, %737 : vector<32x128xf32>
    %c0_96 = arith.constant 0 : index
    %c10_97 = arith.constant 10 : index
    %c0_98 = arith.constant 0 : index
    %c0_99 = arith.constant 0 : index
    %740 = vector.load %arg5[%c0_96, %c10_97, %c0_98, %c0_99] : memref<1x16x32x128xf32, #tpu.memory_space<vmem>>, vector<1x1x32x128xf32>
    %741 = vector.shape_cast %740 : vector<1x1x32x128xf32> to vector<32x128xf32>
    %742 = vector.shape_cast %739 : vector<32x128xf32> to vector<1x1x32x128xf32>
    tpu.vector_store %arg5[%c0_96, %c10_97, %c0_98, %c0_99], %742 {strides = array<i32>} : memref<1x16x32x128xf32, #tpu.memory_space<vmem>>, vector<1x1x32x128xf32>,
    %c99 = arith.constant 99 : index
    %743 = memref.load %arg2[%c99] : memref<144xf32, #tpu.memory_space<smem>>
    %744 = vector.broadcast %743 : f32 to vector<1x1xf32>
    %745 = arith.truncf %744 : vector<1x1xf32> to vector<1x1xbf16>
    %746 = vector.broadcast %745 : vector<1x1xbf16> to vector<32x128xbf16>
    %747 = arith.mulf %746, %30 : vector<32x128xbf16>
    %c100 = arith.constant 100 : index
    %748 = memref.load %arg2[%c100] : memref<144xf32, #tpu.memory_space<smem>>
    %749 = vector.broadcast %748 : f32 to vector<1x1xf32>
    %750 = arith.truncf %749 : vector<1x1xf32> to vector<1x1xbf16>
    %751 = vector.broadcast %750 : vector<1x1xbf16> to vector<32x128xbf16>
    %752 = arith.mulf %751, %31 : vector<32x128xbf16>
    %c101 = arith.constant 101 : index
    %753 = memref.load %arg2[%c101] : memref<144xf32, #tpu.memory_space<smem>>
    %754 = vector.broadcast %753 : f32 to vector<1x1xf32>
    %755 = arith.truncf %754 : vector<1x1xf32> to vector<1x1xbf16>
    %756 = vector.broadcast %755 : vector<1x1xbf16> to vector<32x128xbf16>
    %757 = arith.mulf %756, %32 : vector<32x128xbf16>
    %c102 = arith.constant 102 : index
    %758 = memref.load %arg2[%c102] : memref<144xf32, #tpu.memory_space<smem>>
    %759 = vector.broadcast %758 : f32 to vector<1x1xf32>
    %760 = arith.truncf %759 : vector<1x1xf32> to vector<1x1xbf16>
    %761 = vector.broadcast %760 : vector<1x1xbf16> to vector<32x128xbf16>
    %762 = arith.mulf %761, %33 : vector<32x128xbf16>
    %c103 = arith.constant 103 : index
    %763 = memref.load %arg2[%c103] : memref<144xf32, #tpu.memory_space<smem>>
    %764 = vector.broadcast %763 : f32 to vector<1x1xf32>
    %765 = arith.truncf %764 : vector<1x1xf32> to vector<1x1xbf16>
    %766 = vector.broadcast %765 : vector<1x1xbf16> to vector<32x128xbf16>
    %767 = arith.mulf %766, %34 : vector<32x128xbf16>
    %c104 = arith.constant 104 : index
    %768 = memref.load %arg2[%c104] : memref<144xf32, #tpu.memory_space<smem>>
    %769 = vector.broadcast %768 : f32 to vector<1x1xf32>
    %770 = arith.truncf %769 : vector<1x1xf32> to vector<1x1xbf16>
    %771 = vector.broadcast %770 : vector<1x1xbf16> to vector<32x128xbf16>
    %772 = arith.mulf %771, %35 : vector<32x128xbf16>
    %c105 = arith.constant 105 : index
    %773 = memref.load %arg2[%c105] : memref<144xf32, #tpu.memory_space<smem>>
    %774 = vector.broadcast %773 : f32 to vector<1x1xf32>
    %775 = arith.truncf %774 : vector<1x1xf32> to vector<1x1xbf16>
    %776 = vector.broadcast %775 : vector<1x1xbf16> to vector<32x128xbf16>
    %777 = arith.mulf %776, %36 : vector<32x128xbf16>
    %c106 = arith.constant 106 : index
    %778 = memref.load %arg2[%c106] : memref<144xf32, #tpu.memory_space<smem>>
    %779 = vector.broadcast %778 : f32 to vector<1x1xf32>
    %780 = arith.truncf %779 : vector<1x1xf32> to vector<1x1xbf16>
    %781 = vector.broadcast %780 : vector<1x1xbf16> to vector<32x128xbf16>
    %782 = arith.mulf %781, %37 : vector<32x128xbf16>
    %c107 = arith.constant 107 : index
    %783 = memref.load %arg2[%c107] : memref<144xf32, #tpu.memory_space<smem>>
    %784 = vector.broadcast %783 : f32 to vector<1x1xf32>
    %785 = arith.truncf %784 : vector<1x1xf32> to vector<1x1xbf16>
    %786 = vector.broadcast %785 : vector<1x1xbf16> to vector<32x128xbf16>
    %787 = arith.mulf %786, %38 : vector<32x128xbf16>
    %788 = arith.addf %747, %752 : vector<32x128xbf16>
    %789 = arith.addf %757, %762 : vector<32x128xbf16>
    %790 = arith.addf %767, %772 : vector<32x128xbf16>
    %791 = arith.addf %777, %782 : vector<32x128xbf16>
    %792 = arith.addf %788, %789 : vector<32x128xbf16>
    %793 = arith.addf %790, %791 : vector<32x128xbf16>
    %794 = arith.addf %792, %793 : vector<32x128xbf16>
    %795 = arith.addf %794, %787 : vector<32x128xbf16>
    %796 = arith.extf %795 : vector<32x128xbf16> to vector<32x128xf32>
    %c11_100 = arith.constant 11 : index
    %797 = memref.load %arg3[%c11_100] : memref<16xf32, #tpu.memory_space<smem>>
    %798 = vector.broadcast %797 : f32 to vector<32x128xf32>
    %799 = arith.addf %796, %798 : vector<32x128xf32>
    %cst_101 = arith.constant 0.000000e+00 : f32
    %cst_102 = arith.constant 6.000000e+00 : f32
    %800 = vector.broadcast %cst_101 : f32 to vector<32x128xf32>
    %801 = arith.maximumf %800, %799 : vector<32x128xf32>
    %802 = vector.broadcast %cst_102 : f32 to vector<32x128xf32>
    %803 = arith.minimumf %802, %801 : vector<32x128xf32>
    %c0_103 = arith.constant 0 : index
    %c11_104 = arith.constant 11 : index
    %c0_105 = arith.constant 0 : index
    %c0_106 = arith.constant 0 : index
    %804 = vector.load %arg5[%c0_103, %c11_104, %c0_105, %c0_106] : memref<1x16x32x128xf32, #tpu.memory_space<vmem>>, vector<1x1x32x128xf32>
    %805 = vector.shape_cast %804 : vector<1x1x32x128xf32> to vector<32x128xf32>
    %806 = vector.shape_cast %803 : vector<32x128xf32> to vector<1x1x32x128xf32>
    tpu.vector_store %arg5[%c0_103, %c11_104, %c0_105, %c0_106], %806 {strides = array<i32>} : memref<1x16x32x128xf32, #tpu.memory_space<vmem>>, vector<1x1x32x128xf32>,
    %c108 = arith.constant 108 : index
    %807 = memref.load %arg2[%c108] : memref<144xf32, #tpu.memory_space<smem>>
    %808 = vector.broadcast %807 : f32 to vector<1x1xf32>
    %809 = arith.truncf %808 : vector<1x1xf32> to vector<1x1xbf16>
    %810 = vector.broadcast %809 : vector<1x1xbf16> to vector<32x128xbf16>
    %811 = arith.mulf %810, %30 : vector<32x128xbf16>
    %c109 = arith.constant 109 : index
    %812 = memref.load %arg2[%c109] : memref<144xf32, #tpu.memory_space<smem>>
    %813 = vector.broadcast %812 : f32 to vector<1x1xf32>
    %814 = arith.truncf %813 : vector<1x1xf32> to vector<1x1xbf16>
    %815 = vector.broadcast %814 : vector<1x1xbf16> to vector<32x128xbf16>
    %816 = arith.mulf %815, %31 : vector<32x128xbf16>
    %c110 = arith.constant 110 : index
    %817 = memref.load %arg2[%c110] : memref<144xf32, #tpu.memory_space<smem>>
    %818 = vector.broadcast %817 : f32 to vector<1x1xf32>
    %819 = arith.truncf %818 : vector<1x1xf32> to vector<1x1xbf16>
    %820 = vector.broadcast %819 : vector<1x1xbf16> to vector<32x128xbf16>
    %821 = arith.mulf %820, %32 : vector<32x128xbf16>
    %c111 = arith.constant 111 : index
    %822 = memref.load %arg2[%c111] : memref<144xf32, #tpu.memory_space<smem>>
    %823 = vector.broadcast %822 : f32 to vector<1x1xf32>
    %824 = arith.truncf %823 : vector<1x1xf32> to vector<1x1xbf16>
    %825 = vector.broadcast %824 : vector<1x1xbf16> to vector<32x128xbf16>
    %826 = arith.mulf %825, %33 : vector<32x128xbf16>
    %c112 = arith.constant 112 : index
    %827 = memref.load %arg2[%c112] : memref<144xf32, #tpu.memory_space<smem>>
    %828 = vector.broadcast %827 : f32 to vector<1x1xf32>
    %829 = arith.truncf %828 : vector<1x1xf32> to vector<1x1xbf16>
    %830 = vector.broadcast %829 : vector<1x1xbf16> to vector<32x128xbf16>
    %831 = arith.mulf %830, %34 : vector<32x128xbf16>
    %c113 = arith.constant 113 : index
    %832 = memref.load %arg2[%c113] : memref<144xf32, #tpu.memory_space<smem>>
    %833 = vector.broadcast %832 : f32 to vector<1x1xf32>
    %834 = arith.truncf %833 : vector<1x1xf32> to vector<1x1xbf16>
    %835 = vector.broadcast %834 : vector<1x1xbf16> to vector<32x128xbf16>
    %836 = arith.mulf %835, %35 : vector<32x128xbf16>
    %c114 = arith.constant 114 : index
    %837 = memref.load %arg2[%c114] : memref<144xf32, #tpu.memory_space<smem>>
    %838 = vector.broadcast %837 : f32 to vector<1x1xf32>
    %839 = arith.truncf %838 : vector<1x1xf32> to vector<1x1xbf16>
    %840 = vector.broadcast %839 : vector<1x1xbf16> to vector<32x128xbf16>
    %841 = arith.mulf %840, %36 : vector<32x128xbf16>
    %c115 = arith.constant 115 : index
    %842 = memref.load %arg2[%c115] : memref<144xf32, #tpu.memory_space<smem>>
    %843 = vector.broadcast %842 : f32 to vector<1x1xf32>
    %844 = arith.truncf %843 : vector<1x1xf32> to vector<1x1xbf16>
    %845 = vector.broadcast %844 : vector<1x1xbf16> to vector<32x128xbf16>
    %846 = arith.mulf %845, %37 : vector<32x128xbf16>
    %c116 = arith.constant 116 : index
    %847 = memref.load %arg2[%c116] : memref<144xf32, #tpu.memory_space<smem>>
    %848 = vector.broadcast %847 : f32 to vector<1x1xf32>
    %849 = arith.truncf %848 : vector<1x1xf32> to vector<1x1xbf16>
    %850 = vector.broadcast %849 : vector<1x1xbf16> to vector<32x128xbf16>
    %851 = arith.mulf %850, %38 : vector<32x128xbf16>
    %852 = arith.addf %811, %816 : vector<32x128xbf16>
    %853 = arith.addf %821, %826 : vector<32x128xbf16>
    %854 = arith.addf %831, %836 : vector<32x128xbf16>
    %855 = arith.addf %841, %846 : vector<32x128xbf16>
    %856 = arith.addf %852, %853 : vector<32x128xbf16>
    %857 = arith.addf %854, %855 : vector<32x128xbf16>
    %858 = arith.addf %856, %857 : vector<32x128xbf16>
    %859 = arith.addf %858, %851 : vector<32x128xbf16>
    %860 = arith.extf %859 : vector<32x128xbf16> to vector<32x128xf32>
    %c12_107 = arith.constant 12 : index
    %861 = memref.load %arg3[%c12_107] : memref<16xf32, #tpu.memory_space<smem>>
    %862 = vector.broadcast %861 : f32 to vector<32x128xf32>
    %863 = arith.addf %860, %862 : vector<32x128xf32>
    %cst_108 = arith.constant 0.000000e+00 : f32
    %cst_109 = arith.constant 6.000000e+00 : f32
    %864 = vector.broadcast %cst_108 : f32 to vector<32x128xf32>
    %865 = arith.maximumf %864, %863 : vector<32x128xf32>
    %866 = vector.broadcast %cst_109 : f32 to vector<32x128xf32>
    %867 = arith.minimumf %866, %865 : vector<32x128xf32>
    %c0_110 = arith.constant 0 : index
    %c12_111 = arith.constant 12 : index
    %c0_112 = arith.constant 0 : index
    %c0_113 = arith.constant 0 : index
    %868 = vector.load %arg5[%c0_110, %c12_111, %c0_112, %c0_113] : memref<1x16x32x128xf32, #tpu.memory_space<vmem>>, vector<1x1x32x128xf32>
    %869 = vector.shape_cast %868 : vector<1x1x32x128xf32> to vector<32x128xf32>
    %870 = vector.shape_cast %867 : vector<32x128xf32> to vector<1x1x32x128xf32>
    tpu.vector_store %arg5[%c0_110, %c12_111, %c0_112, %c0_113], %870 {strides = array<i32>} : memref<1x16x32x128xf32, #tpu.memory_space<vmem>>, vector<1x1x32x128xf32>,
    %c117 = arith.constant 117 : index
    %871 = memref.load %arg2[%c117] : memref<144xf32, #tpu.memory_space<smem>>
    %872 = vector.broadcast %871 : f32 to vector<1x1xf32>
    %873 = arith.truncf %872 : vector<1x1xf32> to vector<1x1xbf16>
    %874 = vector.broadcast %873 : vector<1x1xbf16> to vector<32x128xbf16>
    %875 = arith.mulf %874, %30 : vector<32x128xbf16>
    %c118 = arith.constant 118 : index
    %876 = memref.load %arg2[%c118] : memref<144xf32, #tpu.memory_space<smem>>
    %877 = vector.broadcast %876 : f32 to vector<1x1xf32>
    %878 = arith.truncf %877 : vector<1x1xf32> to vector<1x1xbf16>
    %879 = vector.broadcast %878 : vector<1x1xbf16> to vector<32x128xbf16>
    %880 = arith.mulf %879, %31 : vector<32x128xbf16>
    %c119 = arith.constant 119 : index
    %881 = memref.load %arg2[%c119] : memref<144xf32, #tpu.memory_space<smem>>
    %882 = vector.broadcast %881 : f32 to vector<1x1xf32>
    %883 = arith.truncf %882 : vector<1x1xf32> to vector<1x1xbf16>
    %884 = vector.broadcast %883 : vector<1x1xbf16> to vector<32x128xbf16>
    %885 = arith.mulf %884, %32 : vector<32x128xbf16>
    %c120 = arith.constant 120 : index
    %886 = memref.load %arg2[%c120] : memref<144xf32, #tpu.memory_space<smem>>
    %887 = vector.broadcast %886 : f32 to vector<1x1xf32>
    %888 = arith.truncf %887 : vector<1x1xf32> to vector<1x1xbf16>
    %889 = vector.broadcast %888 : vector<1x1xbf16> to vector<32x128xbf16>
    %890 = arith.mulf %889, %33 : vector<32x128xbf16>
    %c121 = arith.constant 121 : index
    %891 = memref.load %arg2[%c121] : memref<144xf32, #tpu.memory_space<smem>>
    %892 = vector.broadcast %891 : f32 to vector<1x1xf32>
    %893 = arith.truncf %892 : vector<1x1xf32> to vector<1x1xbf16>
    %894 = vector.broadcast %893 : vector<1x1xbf16> to vector<32x128xbf16>
    %895 = arith.mulf %894, %34 : vector<32x128xbf16>
    %c122 = arith.constant 122 : index
    %896 = memref.load %arg2[%c122] : memref<144xf32, #tpu.memory_space<smem>>
    %897 = vector.broadcast %896 : f32 to vector<1x1xf32>
    %898 = arith.truncf %897 : vector<1x1xf32> to vector<1x1xbf16>
    %899 = vector.broadcast %898 : vector<1x1xbf16> to vector<32x128xbf16>
    %900 = arith.mulf %899, %35 : vector<32x128xbf16>
    %c123 = arith.constant 123 : index
    %901 = memref.load %arg2[%c123] : memref<144xf32, #tpu.memory_space<smem>>
    %902 = vector.broadcast %901 : f32 to vector<1x1xf32>
    %903 = arith.truncf %902 : vector<1x1xf32> to vector<1x1xbf16>
    %904 = vector.broadcast %903 : vector<1x1xbf16> to vector<32x128xbf16>
    %905 = arith.mulf %904, %36 : vector<32x128xbf16>
    %c124 = arith.constant 124 : index
    %906 = memref.load %arg2[%c124] : memref<144xf32, #tpu.memory_space<smem>>
    %907 = vector.broadcast %906 : f32 to vector<1x1xf32>
    %908 = arith.truncf %907 : vector<1x1xf32> to vector<1x1xbf16>
    %909 = vector.broadcast %908 : vector<1x1xbf16> to vector<32x128xbf16>
    %910 = arith.mulf %909, %37 : vector<32x128xbf16>
    %c125 = arith.constant 125 : index
    %911 = memref.load %arg2[%c125] : memref<144xf32, #tpu.memory_space<smem>>
    %912 = vector.broadcast %911 : f32 to vector<1x1xf32>
    %913 = arith.truncf %912 : vector<1x1xf32> to vector<1x1xbf16>
    %914 = vector.broadcast %913 : vector<1x1xbf16> to vector<32x128xbf16>
    %915 = arith.mulf %914, %38 : vector<32x128xbf16>
    %916 = arith.addf %875, %880 : vector<32x128xbf16>
    %917 = arith.addf %885, %890 : vector<32x128xbf16>
    %918 = arith.addf %895, %900 : vector<32x128xbf16>
    %919 = arith.addf %905, %910 : vector<32x128xbf16>
    %920 = arith.addf %916, %917 : vector<32x128xbf16>
    %921 = arith.addf %918, %919 : vector<32x128xbf16>
    %922 = arith.addf %920, %921 : vector<32x128xbf16>
    %923 = arith.addf %922, %915 : vector<32x128xbf16>
    %924 = arith.extf %923 : vector<32x128xbf16> to vector<32x128xf32>
    %c13_114 = arith.constant 13 : index
    %925 = memref.load %arg3[%c13_114] : memref<16xf32, #tpu.memory_space<smem>>
    %926 = vector.broadcast %925 : f32 to vector<32x128xf32>
    %927 = arith.addf %924, %926 : vector<32x128xf32>
    %cst_115 = arith.constant 0.000000e+00 : f32
    %cst_116 = arith.constant 6.000000e+00 : f32
    %928 = vector.broadcast %cst_115 : f32 to vector<32x128xf32>
    %929 = arith.maximumf %928, %927 : vector<32x128xf32>
    %930 = vector.broadcast %cst_116 : f32 to vector<32x128xf32>
    %931 = arith.minimumf %930, %929 : vector<32x128xf32>
    %c0_117 = arith.constant 0 : index
    %c13_118 = arith.constant 13 : index
    %c0_119 = arith.constant 0 : index
    %c0_120 = arith.constant 0 : index
    %932 = vector.load %arg5[%c0_117, %c13_118, %c0_119, %c0_120] : memref<1x16x32x128xf32, #tpu.memory_space<vmem>>, vector<1x1x32x128xf32>
    %933 = vector.shape_cast %932 : vector<1x1x32x128xf32> to vector<32x128xf32>
    %934 = vector.shape_cast %931 : vector<32x128xf32> to vector<1x1x32x128xf32>
    tpu.vector_store %arg5[%c0_117, %c13_118, %c0_119, %c0_120], %934 {strides = array<i32>} : memref<1x16x32x128xf32, #tpu.memory_space<vmem>>, vector<1x1x32x128xf32>,
    %c126 = arith.constant 126 : index
    %935 = memref.load %arg2[%c126] : memref<144xf32, #tpu.memory_space<smem>>
    %936 = vector.broadcast %935 : f32 to vector<1x1xf32>
    %937 = arith.truncf %936 : vector<1x1xf32> to vector<1x1xbf16>
    %938 = vector.broadcast %937 : vector<1x1xbf16> to vector<32x128xbf16>
    %939 = arith.mulf %938, %30 : vector<32x128xbf16>
    %c127 = arith.constant 127 : index
    %940 = memref.load %arg2[%c127] : memref<144xf32, #tpu.memory_space<smem>>
    %941 = vector.broadcast %940 : f32 to vector<1x1xf32>
    %942 = arith.truncf %941 : vector<1x1xf32> to vector<1x1xbf16>
    %943 = vector.broadcast %942 : vector<1x1xbf16> to vector<32x128xbf16>
    %944 = arith.mulf %943, %31 : vector<32x128xbf16>
    %c128 = arith.constant 128 : index
    %945 = memref.load %arg2[%c128] : memref<144xf32, #tpu.memory_space<smem>>
    %946 = vector.broadcast %945 : f32 to vector<1x1xf32>
    %947 = arith.truncf %946 : vector<1x1xf32> to vector<1x1xbf16>
    %948 = vector.broadcast %947 : vector<1x1xbf16> to vector<32x128xbf16>
    %949 = arith.mulf %948, %32 : vector<32x128xbf16>
    %c129 = arith.constant 129 : index
    %950 = memref.load %arg2[%c129] : memref<144xf32, #tpu.memory_space<smem>>
    %951 = vector.broadcast %950 : f32 to vector<1x1xf32>
    %952 = arith.truncf %951 : vector<1x1xf32> to vector<1x1xbf16>
    %953 = vector.broadcast %952 : vector<1x1xbf16> to vector<32x128xbf16>
    %954 = arith.mulf %953, %33 : vector<32x128xbf16>
    %c130 = arith.constant 130 : index
    %955 = memref.load %arg2[%c130] : memref<144xf32, #tpu.memory_space<smem>>
    %956 = vector.broadcast %955 : f32 to vector<1x1xf32>
    %957 = arith.truncf %956 : vector<1x1xf32> to vector<1x1xbf16>
    %958 = vector.broadcast %957 : vector<1x1xbf16> to vector<32x128xbf16>
    %959 = arith.mulf %958, %34 : vector<32x128xbf16>
    %c131 = arith.constant 131 : index
    %960 = memref.load %arg2[%c131] : memref<144xf32, #tpu.memory_space<smem>>
    %961 = vector.broadcast %960 : f32 to vector<1x1xf32>
    %962 = arith.truncf %961 : vector<1x1xf32> to vector<1x1xbf16>
    %963 = vector.broadcast %962 : vector<1x1xbf16> to vector<32x128xbf16>
    %964 = arith.mulf %963, %35 : vector<32x128xbf16>
    %c132 = arith.constant 132 : index
    %965 = memref.load %arg2[%c132] : memref<144xf32, #tpu.memory_space<smem>>
    %966 = vector.broadcast %965 : f32 to vector<1x1xf32>
    %967 = arith.truncf %966 : vector<1x1xf32> to vector<1x1xbf16>
    %968 = vector.broadcast %967 : vector<1x1xbf16> to vector<32x128xbf16>
    %969 = arith.mulf %968, %36 : vector<32x128xbf16>
    %c133 = arith.constant 133 : index
    %970 = memref.load %arg2[%c133] : memref<144xf32, #tpu.memory_space<smem>>
    %971 = vector.broadcast %970 : f32 to vector<1x1xf32>
    %972 = arith.truncf %971 : vector<1x1xf32> to vector<1x1xbf16>
    %973 = vector.broadcast %972 : vector<1x1xbf16> to vector<32x128xbf16>
    %974 = arith.mulf %973, %37 : vector<32x128xbf16>
    %c134 = arith.constant 134 : index
    %975 = memref.load %arg2[%c134] : memref<144xf32, #tpu.memory_space<smem>>
    %976 = vector.broadcast %975 : f32 to vector<1x1xf32>
    %977 = arith.truncf %976 : vector<1x1xf32> to vector<1x1xbf16>
    %978 = vector.broadcast %977 : vector<1x1xbf16> to vector<32x128xbf16>
    %979 = arith.mulf %978, %38 : vector<32x128xbf16>
    %980 = arith.addf %939, %944 : vector<32x128xbf16>
    %981 = arith.addf %949, %954 : vector<32x128xbf16>
    %982 = arith.addf %959, %964 : vector<32x128xbf16>
    %983 = arith.addf %969, %974 : vector<32x128xbf16>
    %984 = arith.addf %980, %981 : vector<32x128xbf16>
    %985 = arith.addf %982, %983 : vector<32x128xbf16>
    %986 = arith.addf %984, %985 : vector<32x128xbf16>
    %987 = arith.addf %986, %979 : vector<32x128xbf16>
    %988 = arith.extf %987 : vector<32x128xbf16> to vector<32x128xf32>
    %c14_121 = arith.constant 14 : index
    %989 = memref.load %arg3[%c14_121] : memref<16xf32, #tpu.memory_space<smem>>
    %990 = vector.broadcast %989 : f32 to vector<32x128xf32>
    %991 = arith.addf %988, %990 : vector<32x128xf32>
    %cst_122 = arith.constant 0.000000e+00 : f32
    %cst_123 = arith.constant 6.000000e+00 : f32
    %992 = vector.broadcast %cst_122 : f32 to vector<32x128xf32>
    %993 = arith.maximumf %992, %991 : vector<32x128xf32>
    %994 = vector.broadcast %cst_123 : f32 to vector<32x128xf32>
    %995 = arith.minimumf %994, %993 : vector<32x128xf32>
    %c0_124 = arith.constant 0 : index
    %c14_125 = arith.constant 14 : index
    %c0_126 = arith.constant 0 : index
    %c0_127 = arith.constant 0 : index
    %996 = vector.load %arg5[%c0_124, %c14_125, %c0_126, %c0_127] : memref<1x16x32x128xf32, #tpu.memory_space<vmem>>, vector<1x1x32x128xf32>
    %997 = vector.shape_cast %996 : vector<1x1x32x128xf32> to vector<32x128xf32>
    %998 = vector.shape_cast %995 : vector<32x128xf32> to vector<1x1x32x128xf32>
    tpu.vector_store %arg5[%c0_124, %c14_125, %c0_126, %c0_127], %998 {strides = array<i32>} : memref<1x16x32x128xf32, #tpu.memory_space<vmem>>, vector<1x1x32x128xf32>,
    %c135 = arith.constant 135 : index
    %999 = memref.load %arg2[%c135] : memref<144xf32, #tpu.memory_space<smem>>
    %1000 = vector.broadcast %999 : f32 to vector<1x1xf32>
    %1001 = arith.truncf %1000 : vector<1x1xf32> to vector<1x1xbf16>
    %1002 = vector.broadcast %1001 : vector<1x1xbf16> to vector<32x128xbf16>
    %1003 = arith.mulf %1002, %30 : vector<32x128xbf16>
    %c136 = arith.constant 136 : index
    %1004 = memref.load %arg2[%c136] : memref<144xf32, #tpu.memory_space<smem>>
    %1005 = vector.broadcast %1004 : f32 to vector<1x1xf32>
    %1006 = arith.truncf %1005 : vector<1x1xf32> to vector<1x1xbf16>
    %1007 = vector.broadcast %1006 : vector<1x1xbf16> to vector<32x128xbf16>
    %1008 = arith.mulf %1007, %31 : vector<32x128xbf16>
    %c137 = arith.constant 137 : index
    %1009 = memref.load %arg2[%c137] : memref<144xf32, #tpu.memory_space<smem>>
    %1010 = vector.broadcast %1009 : f32 to vector<1x1xf32>
    %1011 = arith.truncf %1010 : vector<1x1xf32> to vector<1x1xbf16>
    %1012 = vector.broadcast %1011 : vector<1x1xbf16> to vector<32x128xbf16>
    %1013 = arith.mulf %1012, %32 : vector<32x128xbf16>
    %c138 = arith.constant 138 : index
    %1014 = memref.load %arg2[%c138] : memref<144xf32, #tpu.memory_space<smem>>
    %1015 = vector.broadcast %1014 : f32 to vector<1x1xf32>
    %1016 = arith.truncf %1015 : vector<1x1xf32> to vector<1x1xbf16>
    %1017 = vector.broadcast %1016 : vector<1x1xbf16> to vector<32x128xbf16>
    %1018 = arith.mulf %1017, %33 : vector<32x128xbf16>
    %c139 = arith.constant 139 : index
    %1019 = memref.load %arg2[%c139] : memref<144xf32, #tpu.memory_space<smem>>
    %1020 = vector.broadcast %1019 : f32 to vector<1x1xf32>
    %1021 = arith.truncf %1020 : vector<1x1xf32> to vector<1x1xbf16>
    %1022 = vector.broadcast %1021 : vector<1x1xbf16> to vector<32x128xbf16>
    %1023 = arith.mulf %1022, %34 : vector<32x128xbf16>
    %c140 = arith.constant 140 : index
    %1024 = memref.load %arg2[%c140] : memref<144xf32, #tpu.memory_space<smem>>
    %1025 = vector.broadcast %1024 : f32 to vector<1x1xf32>
    %1026 = arith.truncf %1025 : vector<1x1xf32> to vector<1x1xbf16>
    %1027 = vector.broadcast %1026 : vector<1x1xbf16> to vector<32x128xbf16>
    %1028 = arith.mulf %1027, %35 : vector<32x128xbf16>
    %c141 = arith.constant 141 : index
    %1029 = memref.load %arg2[%c141] : memref<144xf32, #tpu.memory_space<smem>>
    %1030 = vector.broadcast %1029 : f32 to vector<1x1xf32>
    %1031 = arith.truncf %1030 : vector<1x1xf32> to vector<1x1xbf16>
    %1032 = vector.broadcast %1031 : vector<1x1xbf16> to vector<32x128xbf16>
    %1033 = arith.mulf %1032, %36 : vector<32x128xbf16>
    %c142 = arith.constant 142 : index
    %1034 = memref.load %arg2[%c142] : memref<144xf32, #tpu.memory_space<smem>>
    %1035 = vector.broadcast %1034 : f32 to vector<1x1xf32>
    %1036 = arith.truncf %1035 : vector<1x1xf32> to vector<1x1xbf16>
    %1037 = vector.broadcast %1036 : vector<1x1xbf16> to vector<32x128xbf16>
    %1038 = arith.mulf %1037, %37 : vector<32x128xbf16>
    %c143 = arith.constant 143 : index
    %1039 = memref.load %arg2[%c143] : memref<144xf32, #tpu.memory_space<smem>>
    %1040 = vector.broadcast %1039 : f32 to vector<1x1xf32>
    %1041 = arith.truncf %1040 : vector<1x1xf32> to vector<1x1xbf16>
    %1042 = vector.broadcast %1041 : vector<1x1xbf16> to vector<32x128xbf16>
    %1043 = arith.mulf %1042, %38 : vector<32x128xbf16>
    %1044 = arith.addf %1003, %1008 : vector<32x128xbf16>
    %1045 = arith.addf %1013, %1018 : vector<32x128xbf16>
    %1046 = arith.addf %1023, %1028 : vector<32x128xbf16>
    %1047 = arith.addf %1033, %1038 : vector<32x128xbf16>
    %1048 = arith.addf %1044, %1045 : vector<32x128xbf16>
    %1049 = arith.addf %1046, %1047 : vector<32x128xbf16>
    %1050 = arith.addf %1048, %1049 : vector<32x128xbf16>
    %1051 = arith.addf %1050, %1043 : vector<32x128xbf16>
    %1052 = arith.extf %1051 : vector<32x128xbf16> to vector<32x128xf32>
    %c15_128 = arith.constant 15 : index
    %1053 = memref.load %arg3[%c15_128] : memref<16xf32, #tpu.memory_space<smem>>
    %1054 = vector.broadcast %1053 : f32 to vector<32x128xf32>
    %1055 = arith.addf %1052, %1054 : vector<32x128xf32>
    %cst_129 = arith.constant 0.000000e+00 : f32
    %cst_130 = arith.constant 6.000000e+00 : f32
    %1056 = vector.broadcast %cst_129 : f32 to vector<32x128xf32>
    %1057 = arith.maximumf %1056, %1055 : vector<32x128xf32>
    %1058 = vector.broadcast %cst_130 : f32 to vector<32x128xf32>
    %1059 = arith.minimumf %1058, %1057 : vector<32x128xf32>
    %c0_131 = arith.constant 0 : index
    %c15_132 = arith.constant 15 : index
    %c0_133 = arith.constant 0 : index
    %c0_134 = arith.constant 0 : index
    %1060 = vector.load %arg5[%c0_131, %c15_132, %c0_133, %c0_134] : memref<1x16x32x128xf32, #tpu.memory_space<vmem>>, vector<1x1x32x128xf32>
    %1061 = vector.shape_cast %1060 : vector<1x1x32x128xf32> to vector<32x128xf32>
    %1062 = vector.shape_cast %1059 : vector<32x128xf32> to vector<1x1x32x128xf32>
    tpu.vector_store %arg5[%c0_131, %c15_132, %c0_133, %c0_134], %1062 {strides = array<i32>} : memref<1x16x32x128xf32, #tpu.memory_space<vmem>>, vector<1x1x32x128xf32>,
    return
  }
  func.func @transform_0(%arg0: i32, %arg1: i32) -> i32 {
    %c0_i32 = arith.constant 0 : i32
    %c0_i32_0 = arith.constant 0 : i32
    return %c0_i32 : i32
  }
  func.func @transform_1(%arg0: i32, %arg1: i32) -> i32 {
    %c0_i32 = arith.constant 0 : i32
    %c0_i32_0 = arith.constant 0 : i32
    return %c0_i32 : i32
  }
  func.func @transform_2(%arg0: i32, %arg1: i32) -> (i32, i32, i32, i32) {
    %c0_i32 = arith.constant 0 : i32
    %c0_i32_0 = arith.constant 0 : i32
    %c0_i32_1 = arith.constant 0 : i32
    return %arg0, %c0_i32, %arg1, %c0_i32_0 : i32, i32, i32, i32
  }
  func.func @transform_3(%arg0: i32, %arg1: i32) -> (i32, i32, i32, i32) {
    %c0_i32 = arith.constant 0 : i32
    %c0_i32_0 = arith.constant 0 : i32
    %c0_i32_1 = arith.constant 0 : i32
    return %arg0, %c0_i32, %arg1, %c0_i32_0 : i32, i32, i32, i32
  }
}

</mosaic_0001>

<llo_original>
// kernel: feature_extractor_forward.1
$region0: #{feature_extractor_forward.1}
  #allocation0 [shape = 'u32[]', space=smem, size = 0x4, offset = 0x4, fixed_abs, tag = 'smem constant byte address 0x4 - core index']
  #allocation1 [shape = 'u32[144,128]{1,0:T(1,128)}', space=vmem, size = 0x12000, scoped, tag = 'internal scratch']
  %s0 = inlined_call_operand.vmem [shape: f32[144], index: 0, kind: input, shape index: {}]
  %s1 = inlined_call_operand.vmem [shape: f32[16], index: 1, kind: input, shape index: {}]
  %s2 = inlined_call_operand.vmem [shape: u8[2,6,32,256], index: 2, kind: input, shape index: {}]
  %s3 = inlined_call_operand.vmem [shape: f32[2,16,32,128], index: 3, kind: output, shape index: {}]
  %s4 = sld [smem:[#allocation0]]
  $region53: #{feature_extractor_forward.1} parent=0
    _
  %s6 = ssub.s32 1, %s4
  %s7 = scalar_select 0, %s6, %s4
  $region1: #{feature_extractor_forward.1} parent=0
    #allocation2 [shape = 'u8[1024]{0}', space=smem, size = 0x400, scoped, tag = 'input window, operand 0, single buffered']
    #allocation3 [shape = 's32[2]{0}', space=sflag, size = 0x8, scoped, tag = 'scoped memory for feature_extractor_forward.1']
    #allocation4 [shape = 'u8[512]{0}', space=smem, size = 0x200, scoped, tag = 'input window, operand 1, single buffered']
    #allocation5 [shape = 's32[1]{0}', space=sflag, size = 0x4, scoped, tag = 'scoped memory for feature_extractor_forward.1']
    %8 = vsyncpa [#allocation3], 0
    %9 = vsyncpa [#allocation5], 0
    loop: start=0, step=1, limit=4
    $region2: #{feature_extractor_forward.1} parent=1 // loop_pre_header
      _
    $region3: #{feature_extractor_forward.1} parent=1 // loop_header
      %s11 = sphi 0, %s15
      %p12 = scmp.ge.s32.totalorder %s11, 4
      %s18 = sphi 0, %s30
      %s19 = sphi 0, %s26
      %s20 = sphi 0, %s18
      %s21 = sphi 0, %s19
      %s22 = sphi 0, %s20
      %s23 = sphi 0, %s21
      %s31 = sphi 0, %s31
      %s33 = sphi 0, %s31
      %s34 = sphi 0, %s33
      %s48 = sphi 0, %s34
      %s52 = sphi 0, %s52
      %s54 = sphi 0, %s52
      %s55 = sphi 0, %s54
      %s69 = sphi 0, %s55
      %s77 = sphi 0, %s79
      %s80 = sphi 0, %s77
      %s81 = sphi 0, %s80
      %s97 = sphi 0, %s81
      %s105 = sphi 0, %s107
      %s108 = sphi 0, %s105
      %s109 = sphi 0, %s108
      %s125 = sphi 0, %s109
    $region4: #{feature_extractor_forward.1} parent=1 // loop_header_branch
      %14 = sbr.rel (%p12) target = $region8
    $region5: #{feature_extractor_forward.1} parent=1 // loop_body
      %s16 = ssub.s32 %s11, 1
      %s17 = ssub.s32 %s11, 2
      %s24 = sadd.s32 1, %s19
      %p25 = scmp.ge.s32.totalorder %s24, 1
      %s26 = scalar_select %p25, 0, %s24
      %s27 = sadd.s32 1, %s18
      %s28 = scalar_select %p25, %s27, %s18
      %p29 = scmp.ge.s32.totalorder %s28, 2
      %s30 = scalar_select %p29, 0, %s28
      %s32 = sadd.s32 %s31, 1
      %p35 = scmp.eq.s32.totalorder %s11, 1
      %p36 = scmp.ne.s32.totalorder %s31, %s33
      %p37 = scmp.eq.s32.totalorder %s11, 0
      %p38 = por %p36, %p37
      %p39 = scmp.ne.s32.totalorder %s31, %s33
      %p40 = scmp.eq.s32.totalorder %s16, 1
      %p41 = por %p39, %p40
      %p42 = scmp.ne.s32.totalorder %s33, %s34
      %p43 = scmp.eq.s32.totalorder %s16, 0
      %p44 = por %p42, %p43
      %p45 = scmp.ne.s32.totalorder %s33, %s34
      %p46 = scmp.eq.s32.totalorder %s17, 1
      %p47 = por %p45, %p46
      %p49 = scmp.ne.s32.totalorder %s34, %s48
      %p50 = scmp.eq.s32.totalorder %s17, 0
      %p51 = por %p49, %p50
      %s53 = sadd.s32 %s52, 1
      %p56 = scmp.eq.s32.totalorder %s11, 1
      %p57 = scmp.ne.s32.totalorder %s52, %s54
      %p58 = scmp.eq.s32.totalorder %s11, 0
      %p59 = por %p57, %p58
      %p60 = scmp.ne.s32.totalorder %s52, %s54
      %p61 = scmp.eq.s32.totalorder %s16, 1
      %p62 = por %p60, %p61
      %p63 = scmp.ne.s32.totalorder %s54, %s55
      %p64 = scmp.eq.s32.totalorder %s16, 0
      %p65 = por %p63, %p64
      %p66 = scmp.ne.s32.totalorder %s54, %s55
      %p67 = scmp.eq.s32.totalorder %s17, 1
      %p68 = por %p66, %p67
      %p70 = scmp.ne.s32.totalorder %s55, %s69
      %p71 = scmp.eq.s32.totalorder %s17, 0
      %p72 = por %p70, %p71
      %s73 = ssub.s32 %s18, %s30
      %s74 = ssub.s32 %s19, %s26
      %s75 = sor.u32 %s73, %s74
      %p76 = scmp.eq.s32.totalorder %s75, 0
      %s78 = sadd.s32 %s77, 1
      %s79 = scalar_select %p76, %s77, %s78
      %p82 = pneg %p76
      %p83 = scmp.eq.s32.totalorder %s11, 1
      %p84 = por %p82, %p83
      %p85 = scmp.ne.s32.totalorder %s77, %s80
      %p86 = scmp.eq.s32.totalorder %s11, 0
      %p87 = por %p85, %p86
      %p88 = scmp.ne.s32.totalorder %s77, %s80
      %p89 = scmp.eq.s32.totalorder %s16, 1
      %p90 = por %p88, %p89
      %p91 = scmp.ne.s32.totalorder %s80, %s81
      %p92 = scmp.eq.s32.totalorder %s16, 0
      %p93 = por %p91, %p92
      %p94 = scmp.ne.s32.totalorder %s80, %s81
      %p95 = scmp.eq.s32.totalorder %s17, 1
      %p96 = por %p94, %p95
      %p98 = scmp.ne.s32.totalorder %s81, %s97
      %p99 = scmp.eq.s32.totalorder %s17, 0
      %p100 = por %p98, %p99
      %s101 = ssub.s32 %s18, %s30
      %s102 = ssub.s32 %s19, %s26
      %s103 = sor.u32 %s101, %s102
      %p104 = scmp.eq.s32.totalorder %s103, 0
      %s106 = sadd.s32 %s105, 1
      %s107 = scalar_select %p104, %s105, %s106
      %p110 = pneg %p104
      %p111 = scmp.eq.s32.totalorder %s11, 1
      %p112 = por %p110, %p111
      %p113 = scmp.ne.s32.totalorder %s105, %s108
      %p114 = scmp.eq.s32.totalorder %s11, 0
      %p115 = por %p113, %p114
      %p116 = scmp.ne.s32.totalorder %s105, %s108
      %p117 = scmp.eq.s32.totalorder %s16, 1
      %p118 = por %p116, %p117
      %p119 = scmp.ne.s32.totalorder %s108, %s109
      %p120 = scmp.eq.s32.totalorder %s16, 0
      %p121 = por %p119, %p120
      %p122 = scmp.ne.s32.totalorder %s108, %s109
      %p123 = scmp.eq.s32.totalorder %s17, 1
      %p124 = por %p122, %p123
      %p126 = scmp.ne.s32.totalorder %s109, %s125
      %p127 = scmp.eq.s32.totalorder %s17, 0
      %p128 = por %p126, %p127
      %p129 = scmp.le.s32.totalorder 1, %s11
      %p130 = scmp.lt.s32.totalorder %s11, 3
      %p131 = pnand %p129, %p130
      %p132 = pneg %p131
      // Predicated region
      $region9: #{feature_extractor_forward.1} parent=5 // pred_check
        _
      $region10: #{feature_extractor_forward.1} parent=5 // pred_check_branch
        %134 = sbr.rel (%p131) target = $region12
      $region11: #{feature_extractor_forward.1} parent=5 // pred_region
        %s135 = ssub.s32 %s11, 1
        // Predicated region
        $region13: #{feature_extractor_forward.1} parent=11 // pred_check
          %p136 = pneg %p44
        $region14: #{feature_extractor_forward.1} parent=11 // pred_check_branch
          %138 = sbr.rel (%p136) target = $region16
        $region15: #{feature_extractor_forward.1} parent=11 // pred_region
          %s140 = ssub.s32 32, 32
          %141 = vsyncadd [#allocation3], %s140
          %s143 = sshll.u32 %s0, 4
          %s144 = int_to_ptr.vmem [resolvable:$true] %s143
          %146 = dma.vmem_to_smem %s144, 32, [#allocation2], [#allocation3]
        $region16: #{feature_extractor_forward.1} parent=11 // pred_fallthru
          _
        // Predicated region
        $region17: #{feature_extractor_forward.1} parent=11 // pred_check
          %p147 = pneg %p65
        $region18: #{feature_extractor_forward.1} parent=11 // pred_check_branch
          %149 = sbr.rel (%p147) target = $region20
        $region19: #{feature_extractor_forward.1} parent=11 // pred_region
          %s151 = ssub.s32 16, 16
          %152 = vsyncadd [#allocation5], %s151
          %s154 = sshll.u32 %s1, 4
          %s155 = int_to_ptr.vmem [resolvable:$true] %s154
          %157 = dma.vmem_to_smem %s155, 16, [#allocation4], [#allocation5]
        $region20: #{feature_extractor_forward.1} parent=11 // pred_fallthru
          _
      $region12: #{feature_extractor_forward.1} parent=5 // pred_fallthru
        _
      %p158 = scmp.lt.s32.totalorder %s11, 2
      // Predicated region
      $region21: #{feature_extractor_forward.1} parent=5 // pred_check
        %p159 = pneg %p158
      $region22: #{feature_extractor_forward.1} parent=5 // pred_check_branch
        %161 = sbr.rel (%p159) target = $region24
      $region23: #{feature_extractor_forward.1} parent=5 // pred_region
        // Predicated region
        $region25: #{feature_extractor_forward.1} parent=23 // pred_check
          %p162 = pneg %p87
        $region26: #{feature_extractor_forward.1} parent=23 // pred_check_branch
          %164 = sbr.rel (%p162) target = $region28
        $region27: #{feature_extractor_forward.1} parent=23 // pred_region
          %s165 = smul.u32 4, %s19
          %p166 = scmp.lt.s32.totalorder %s18, 1
          %s167 = scalar_select %p166, %s18, 1
          %p168 = scmp.lt.s32.totalorder %s165, 3
          %s169 = scalar_select %p168, %s165, 3
          %s170 = smul.addr %s169, 2
          %s171 = smul.addr %s167, 48
          %s172 = sadd.s32 %s170, %s171
          %s173 = smul.addr %s172, 2
          %s174 = scalar_lea.vmem %s2, %s173
          %s175 = smul.u32 4, %s19
        $region28: #{feature_extractor_forward.1} parent=23 // pred_fallthru
          _
      $region24: #{feature_extractor_forward.1} parent=5 // pred_fallthru
        _
      %p176 = scmp.le.s32.totalorder 1, %s11
      %p177 = scmp.lt.s32.totalorder %s11, 3
      %p178 = pnand %p176, %p177
      %p179 = pneg %p178
      // Predicated region
      $region29: #{feature_extractor_forward.1} parent=5 // pred_check
        _
      $region30: #{feature_extractor_forward.1} parent=5 // pred_check_branch
        %181 = sbr.rel (%p178) target = $region32
      $region31: #{feature_extractor_forward.1} parent=5 // pred_region
        %s182 = ssub.s32 %s11, 1
        // Predicated region
        $region33: #{feature_extractor_forward.1} parent=31 // pred_check
          %p183 = pneg %p44
        $region34: #{feature_extractor_forward.1} parent=31 // pred_check_branch
          %185 = sbr.rel (%p183) target = $region36
        $region35: #{feature_extractor_forward.1} parent=31 // pred_region
          %186 = dma.done [#allocation3], 32
        $region36: #{feature_extractor_forward.1} parent=31 // pred_fallthru
          _
        // Predicated region
        $region37: #{feature_extractor_forward.1} parent=31 // pred_check
          %p187 = pneg %p65
        $region38: #{feature_extractor_forward.1} parent=31 // pred_check_branch
          %189 = sbr.rel (%p187) target = $region40
        $region39: #{feature_extractor_forward.1} parent=31 // pred_region
          %190 = dma.done [#allocation5], 16
        $region40: #{feature_extractor_forward.1} parent=31 // pred_fallthru
          _
        %191 = sfence
        %p192 = pneg %p44
        %p193 = pneg %p41
        %p194 = pneg %p65
        %p195 = pneg %p62
        %s196 = smul.u32 4, %s21
        %p197 = scmp.lt.s32.totalorder %s20, 1
        %s198 = scalar_select %p197, %s20, 1
        %p199 = scmp.lt.s32.totalorder %s196, 3
        %s200 = scalar_select %p199, %s196, 3
        %s201 = smul.addr %s200, 2
        %s202 = smul.addr %s198, 48
        %s203 = sadd.s32 %s201, %s202
        %s204 = smul.addr %s203, 2
        %s205 = scalar_lea.vmem %s2, %s204
        %p206 = pneg %p93
        %p207 = pneg %p90
        %p208 = pneg %p121
        %p209 = pneg %p118
        %s210 = smul.u32 4, %s21
        %p211 = scmp.lt.s32.totalorder %s20, 1
        %s212 = scalar_select %p211, %s20, 1
        %p213 = scmp.lt.s32.totalorder %s210, 3
        %s214 = scalar_select %p213, %s210, 3
        %s215 = smul.addr %s212, 64
        %s216 = sadd.s32 %s214, %s215
        %s217 = smul.addr %s216, 8
        %s218 = scalar_lea.vmem %s3, %s217
        %s219 = smul.u32 4, %s21
        %p220 = scmp.lt.s32.totalorder %s20, 1
        %s221 = scalar_select %p220, %s20, 1
        %p222 = scmp.lt.s32.totalorder %s219, 3
        %s223 = scalar_select %p222, %s219, 3
        %s224 = smul.addr %s223, 2
        %s225 = smul.addr %s221, 48
        %s226 = sadd.s32 %s224, %s225
        %s227 = smul.addr %s226, 2
        %s228 = scalar_lea.vmem %s2, %s227
        %s229 = smul.u32 4, %s21
        %s230 = smul.u32 4, %s21
        %p231 = scmp.lt.s32.totalorder %s20, 1
        %s232 = scalar_select %p231, %s20, 1
        %p233 = scmp.lt.s32.totalorder %s230, 3
        %s234 = scalar_select %p233, %s230, 3
        %s235 = smul.addr %s232, 64
        %s236 = sadd.s32 %s234, %s235
        %s237 = smul.addr %s236, 8
        %s238 = scalar_lea.vmem %s3, %s237
        %s239 = smul.u32 4, %s21
        %v240 = vld [vmem:[%s228] sm:$0xf]
        %v241 = vld [vmem:[%s228 + $0x4] sm:$0xf]
        %v242 = vld [vmem:[%s228 + $0x8] sm:$0xf]
        %v243 = vld [vmem:[%s228 + $0xc] sm:$0xf]
        %v244 = vunpack.c.l.u8.bf16 %v240
        %v245 = vunpack.c.l.u8.bf16 %v241
        %v246 = vunpack.c.l.u8.bf16 %v242
        %v247 = vunpack.c.l.u8.bf16 %v243
        %s248 = scalar_lea.vmem %s228, 16
        %v249 = vld [vmem:[%s248] sm:$0xf]
        %v250 = vld [vmem:[%s248 + $0x4] sm:$0xf]
        %v251 = vld [vmem:[%s248 + $0x8] sm:$0xf]
        %v252 = vld [vmem:[%s248 + $0xc] sm:$0xf]
        %v253 = vunpack.c.l.u8.bf16 %v249
        %v254 = vunpack.c.l.u8.bf16 %v250
        %v255 = vunpack.c.l.u8.bf16 %v251
        %v256 = vunpack.c.l.u8.bf16 %v252
        %s257 = scalar_lea.vmem %s228, 32
        %v258 = vld [vmem:[%s257] sm:$0xf]
        %v259 = vld [vmem:[%s257 + $0x4] sm:$0xf]
        %v260 = vld [vmem:[%s257 + $0x8] sm:$0xf]
        %v261 = vld [vmem:[%s257 + $0xc] sm:$0xf]
        %v262 = vunpack.c.l.u8.bf16 %v258
        %v263 = vunpack.c.l.u8.bf16 %v259
        %v264 = vunpack.c.l.u8.bf16 %v260
        %v265 = vunpack.c.l.u8.bf16 %v261
        %s266 = scalar_lea.vmem %s228, 48
        %v267 = vld [vmem:[%s266] sm:$0xf]
        %v268 = vld [vmem:[%s266 + $0x4] sm:$0xf]
        %v269 = vld [vmem:[%s266 + $0x8] sm:$0xf]
        %v270 = vld [vmem:[%s266 + $0xc] sm:$0xf]
        %v271 = vunpack.c.l.u8.bf16 %v267
        %v272 = vunpack.c.l.u8.bf16 %v268
        %v273 = vunpack.c.l.u8.bf16 %v269
        %v274 = vunpack.c.l.u8.bf16 %v270
        %s275 = scalar_lea.vmem %s228, 64
        %v276 = vld [vmem:[%s275] sm:$0xf]
        %v277 = vld [vmem:[%s275 + $0x4] sm:$0xf]
        %v278 = vld [vmem:[%s275 + $0x8] sm:$0xf]
        %v279 = vld [vmem:[%s275 + $0xc] sm:$0xf]
        %v280 = vunpack.c.l.u8.bf16 %v276
        %v281 = vunpack.c.l.u8.bf16 %v277
        %v282 = vunpack.c.l.u8.bf16 %v278
        %v283 = vunpack.c.l.u8.bf16 %v279
        %s284 = scalar_lea.vmem %s228, 80
        %v285 = vld [vmem:[%s284] sm:$0xf]
        %v286 = vld [vmem:[%s284 + $0x4] sm:$0xf]
        %v287 = vld [vmem:[%s284 + $0x8] sm:$0xf]
        %v288 = vld [vmem:[%s284 + $0xc] sm:$0xf]
        %v289 = vunpack.c.l.u8.bf16 %v285
        %v290 = vunpack.c.l.u8.bf16 %v286
        %v291 = vunpack.c.l.u8.bf16 %v287
        %v292 = vunpack.c.l.u8.bf16 %v288
        %s293 = sld [smem:[#allocation2]]
        %v294 = vstv %s293
        %v295 = vpack.c.bf16 %v294, %v294
        %v296 = vmul.bf16 %v295, %v244
        %v297 = vmul.bf16 %v295, %v245
        %v298 = vmul.bf16 %v295, %v246
        %v299 = vmul.bf16 %v295, %v247
        %s300 = sld [smem:[#allocation2 + $0x1]]
        %v301 = vstv %s300
        %v302 = vpack.c.bf16 %v301, %v301
        %v303 = vmul.bf16 %v302, %v253
        %v304 = vmul.bf16 %v302, %v254
        %v305 = vmul.bf16 %v302, %v255
        %v306 = vmul.bf16 %v302, %v256
        %s307 = sld [smem:[#allocation2 + $0x2]]
        %v308 = vstv %s307
        %v309 = vpack.c.bf16 %v308, %v308
        %v310 = vmul.bf16 %v309, %v244
        %v311 = vmul.bf16 %v309, %v245
        %v312 = vmul.bf16 %v309, %v246
        %v313 = vmul.bf16 %v309, %v247
        %s314 = sld [smem:[#allocation2 + $0x3]]
        %v315 = vstv %s314
        %v316 = vpack.c.bf16 %v315, %v315
        %v317 = vmul.bf16 %v316, %v262
        %v318 = vmul.bf16 %v316, %v263
        %v319 = vmul.bf16 %v316, %v264
        %v320 = vmul.bf16 %v316, %v265
        %s321 = sld [smem:[#allocation2 + $0x4]]
        %v322 = vstv %s321
        %v323 = vpack.c.bf16 %v322, %v322
        %v324 = vmul.bf16 %v323, %v271
        %v325 = vmul.bf16 %v323, %v272
        %v326 = vmul.bf16 %v323, %v273
        %v327 = vmul.bf16 %v323, %v274
        %s328 = sld [smem:[#allocation2 + $0x5]]
        %v329 = vstv %s328
        %v330 = vpack.c.bf16 %v329, %v329
        %v331 = vmul.bf16 %v330, %v262
        %v332 = vmul.bf16 %v330, %v263
        %v333 = vmul.bf16 %v330, %v264
        %v334 = vmul.bf16 %v330, %v265
        %s335 = sld [smem:[#allocation2 + $0x6]]
        %v336 = vstv %s335
        %v337 = vpack.c.bf16 %v336, %v336
        %v338 = vmul.bf16 %v337, %v280
        %v339 = vmul.bf16 %v337, %v281
        %v340 = vmul.bf16 %v337, %v282
        %v341 = vmul.bf16 %v337, %v283
        %s342 = sld [smem:[#allocation2 + $0x7]]
        %v343 = vstv %s342
        %v344 = vpack.c.bf16 %v343, %v343
        %v345 = vmul.bf16 %v344, %v289
        %v346 = vmul.bf16 %v344, %v290
        %v347 = vmul.bf16 %v344, %v291
        %v348 = vmul.bf16 %v344, %v292
        %s349 = sld [smem:[#allocation2 + $0x8]]
        %v350 = vstv %s349
        %v351 = vpack.c.bf16 %v350, %v350
        %v352 = vmul.bf16 %v351, %v280
        %v353 = vmul.bf16 %v351, %v281
        %v354 = vmul.bf16 %v351, %v282
        %v355 = vmul.bf16 %v351, %v283
        %v356 = vadd.bf16 %v296, %v303
        %v357 = vadd.bf16 %v297, %v304
        %v358 = vadd.bf16 %v298, %v305
        %v359 = vadd.bf16 %v299, %v306
        %364 = vrot.lane.b32.xlu0 %v317, 1
        %v365 = vpop.permute.xlu0 %364
        %366 = vrot.lane.b32.xlu0 %v318, 1
        %v367 = vpop.permute.xlu0 %366
        %368 = vrot.lane.b32.xlu0 %v319, 1
        %v369 = vpop.permute.xlu0 %368
        %370 = vrot.lane.b32.xlu0 %v320, 1
        %v371 = vpop.permute.xlu0 %370
        %v372 = vrot.slane %v365, 4
        %v373 = vrot.slane %v367, 4
        %v374 = vrot.slane %v369, 4
        %v375 = vrot.slane %v371, 4
        %vm376 = vcmask 7168
        %v377 = vsel %vm376, %v372, %v365
        %v378 = vsel %vm376, %v373, %v367
        %v379 = vsel %vm376, %v374, %v369
        %v380 = vsel %vm376, %v375, %v371
        %v385 = vadd.bf16 %v310, %v377
        %v386 = vadd.bf16 %v311, %v378
        %v387 = vadd.bf16 %v312, %v379
        %v388 = vadd.bf16 %v313, %v380
        %393 = vrot.lane.b32.xlu0 %v331, 127
        %v394 = vpop.permute.xlu0 %393
        %395 = vrot.lane.b32.xlu0 %v332, 127
        %v396 = vpop.permute.xlu0 %395
        %397 = vrot.lane.b32.xlu0 %v333, 127
        %v398 = vpop.permute.xlu0 %397
        %399 = vrot.lane.b32.xlu0 %v334, 127
        %v400 = vpop.permute.xlu0 %399
        %v401 = vrot.slane %v394, 4
        %v402 = vrot.slane %v396, 4
        %v403 = vrot.slane %v398, 4
        %v404 = vrot.slane %v400, 4
        %vm405 = vcmask 1039360
        %v406 = vsel %vm405, %v394, %v401
        %v407 = vsel %vm405, %v396, %v402
        %v408 = vsel %vm405, %v398, %v403
        %v409 = vsel %vm405, %v400, %v404
        %v414 = vadd.bf16 %v324, %v406
        %v415 = vadd.bf16 %v325, %v407
        %v416 = vadd.bf16 %v326, %v408
        %v417 = vadd.bf16 %v327, %v409
        %v418 = vadd.bf16 %v338, %v345
        %v419 = vadd.bf16 %v339, %v346
        %v420 = vadd.bf16 %v340, %v347
        %v421 = vadd.bf16 %v341, %v348
        %426 = vrot.lane.b32.xlu0 %v385, 127
        %v427 = vpop.permute.xlu0 %426
        %428 = vrot.lane.b32.xlu0 %v386, 127
        %v429 = vpop.permute.xlu0 %428
        %430 = vrot.lane.b32.xlu0 %v387, 127
        %v431 = vpop.permute.xlu0 %430
        %432 = vrot.lane.b32.xlu0 %v388, 127
        %v433 = vpop.permute.xlu0 %432
        %v434 = vrot.slane %v427, 4
        %v435 = vrot.slane %v429, 4
        %v436 = vrot.slane %v431, 4
        %v437 = vrot.slane %v433, 4
        %v438 = vsel %vm405, %v427, %v434
        %v439 = vsel %vm405, %v429, %v435
        %v440 = vsel %vm405, %v431, %v436
        %v441 = vsel %vm405, %v433, %v437
        %v446 = vadd.bf16 %v356, %v438
        %v447 = vadd.bf16 %v357, %v439
        %v448 = vadd.bf16 %v358, %v440
        %v449 = vadd.bf16 %v359, %v441
        %v450 = vadd.bf16 %v414, %v418
        %v451 = vadd.bf16 %v415, %v419
        %v452 = vadd.bf16 %v416, %v420
        %v453 = vadd.bf16 %v417, %v421
        %v454 = vadd.bf16 %v446, %v450
        %v455 = vadd.bf16 %v447, %v451
        %v456 = vadd.bf16 %v448, %v452
        %v457 = vadd.bf16 %v449, %v453
        %462 = vrot.lane.b32.xlu0 %v352, 127
        %v463 = vpop.permute.xlu0 %462
        %464 = vrot.lane.b32.xlu0 %v353, 127
        %v465 = vpop.permute.xlu0 %464
        %466 = vrot.lane.b32.xlu0 %v354, 127
        %v467 = vpop.permute.xlu0 %466
        %468 = vrot.lane.b32.xlu0 %v355, 127
        %v469 = vpop.permute.xlu0 %468
        %v470 = vrot.slane %v463, 4
        %v471 = vrot.slane %v465, 4
        %v472 = vrot.slane %v467, 4
        %v473 = vrot.slane %v469, 4
        %v474 = vsel %vm405, %v463, %v470
        %v475 = vsel %vm405, %v465, %v471
        %v476 = vsel %vm405, %v467, %v472
        %v477 = vsel %vm405, %v469, %v473
        %v482 = vadd.bf16 %v454, %v474
        %v483 = vadd.bf16 %v455, %v475
        %v484 = vadd.bf16 %v456, %v476
        %v485 = vadd.bf16 %v457, %v477
        %v486 = vunpack.c.l.bf16 %v482
        %v487 = vunpack.c.l.bf16 %v483
        %v488 = vunpack.c.l.bf16 %v484
        %v489 = vunpack.c.l.bf16 %v485
        %s490 = sld [smem:[#allocation4]]
        %v491 = vstv %s490
        %v492 = vadd.f32 %v486, %v491
        %v493 = vadd.f32 %v487, %v491
        %v494 = vadd.f32 %v488, %v491
        %v495 = vadd.f32 %v489, %v491
        %v496 = vmax.f32 %v492, 0.0
        %v497 = vmax.f32 %v493, 0.0
        %v498 = vmax.f32 %v494, 0.0
        %v499 = vmax.f32 %v495, 0.0
        %v500 = vmin.f32 %v496, 6.0
        %v501 = vmin.f32 %v497, 6.0
        %v502 = vmin.f32 %v498, 6.0
        %v503 = vmin.f32 %v499, 6.0
        %504 = vst [vmem:[%s238] sm:$0xff] %v500
        %505 = vst [vmem:[%s238 + $0x8] sm:$0xff] %v501
        %506 = vst [vmem:[%s238 + $0x10] sm:$0xff] %v502
        %507 = vst [vmem:[%s238 + $0x18] sm:$0xff] %v503
        %s508 = sld [smem:[#allocation2 + $0x9]]
        %v509 = vstv %s508
        %v510 = vpack.c.bf16 %v509, %v509
        %v511 = vmul.bf16 %v510, %v244
        %v512 = vmul.bf16 %v510, %v245
        %v513 = vmul.bf16 %v510, %v246
        %v514 = vmul.bf16 %v510, %v247
        %s515 = sld [smem:[#allocation2 + $0xa]]
        %v516 = vstv %s515
        %v517 = vpack.c.bf16 %v516, %v516
        %v518 = vmul.bf16 %v517, %v253
        %v519 = vmul.bf16 %v517, %v254
        %v520 = vmul.bf16 %v517, %v255
        %v521 = vmul.bf16 %v517, %v256
        %s522 = sld [smem:[#allocation2 + $0xb]]
        %v523 = vstv %s522
        %v524 = vpack.c.bf16 %v523, %v523
        %v525 = vmul.bf16 %v524, %v244
        %v526 = vmul.bf16 %v524, %v245
        %v527 = vmul.bf16 %v524, %v246
        %v528 = vmul.bf16 %v524, %v247
        %s529 = sld [smem:[#allocation2 + $0xc]]
        %v530 = vstv %s529
        %v531 = vpack.c.bf16 %v530, %v530
        %v532 = vmul.bf16 %v531, %v262
        %v533 = vmul.bf16 %v531, %v263
        %v534 = vmul.bf16 %v531, %v264
        %v535 = vmul.bf16 %v531, %v265
        %s536 = sld [smem:[#allocation2 + $0xd]]
        %v537 = vstv %s536
        %v538 = vpack.c.bf16 %v537, %v537
        %v539 = vmul.bf16 %v538, %v271
        %v540 = vmul.bf16 %v538, %v272
        %v541 = vmul.bf16 %v538, %v273
        %v542 = vmul.bf16 %v538, %v274
        %s543 = sld [smem:[#allocation2 + $0xe]]
        %v544 = vstv %s543
        %v545 = vpack.c.bf16 %v544, %v544
        %v546 = vmul.bf16 %v545, %v262
        %v547 = vmul.bf16 %v545, %v263
        %v548 = vmul.bf16 %v545, %v264
        %v549 = vmul.bf16 %v545, %v265
        %s550 = sld [smem:[#allocation2 + $0xf]]
        %v551 = vstv %s550
        %v552 = vpack.c.bf16 %v551, %v551
        %v553 = vmul.bf16 %v552, %v280
        %v554 = vmul.bf16 %v552, %v281
        %v555 = vmul.bf16 %v552, %v282
        %v556 = vmul.bf16 %v552, %v283
        %s557 = sld [smem:[#allocation2 + $0x10]]
        %v558 = vstv %s557
        %v559 = vpack.c.bf16 %v558, %v558
        %v560 = vmul.bf16 %v559, %v289
        %v561 = vmul.bf16 %v559, %v290
        %v562 = vmul.bf16 %v559, %v291
        %v563 = vmul.bf16 %v559, %v292
        %s564 = sld [smem:[#allocation2 + $0x11]]
        %v565 = vstv %s564
        %v566 = vpack.c.bf16 %v565, %v565
        %v567 = vmul.bf16 %v566, %v280
        %v568 = vmul.bf16 %v566, %v281
        %v569 = vmul.bf16 %v566, %v282
        %v570 = vmul.bf16 %v566, %v283
        %v571 = vadd.bf16 %v511, %v518
        %v572 = vadd.bf16 %v512, %v519
        %v573 = vadd.bf16 %v513, %v520
        %v574 = vadd.bf16 %v514, %v521
        %579 = vrot.lane.b32.xlu0 %v532, 1
        %v580 = vpop.permute.xlu0 %579
        %581 = vrot.lane.b32.xlu0 %v533, 1
        %v582 = vpop.permute.xlu0 %581
        %583 = vrot.lane.b32.xlu0 %v534, 1
        %v584 = vpop.permute.xlu0 %583
        %585 = vrot.lane.b32.xlu0 %v535, 1
        %v586 = vpop.permute.xlu0 %585
        %v587 = vrot.slane %v580, 4
        %v588 = vrot.slane %v582, 4
        %v589 = vrot.slane %v584, 4
        %v590 = vrot.slane %v586, 4
        %v591 = vsel %vm376, %v587, %v580
        %v592 = vsel %vm376, %v588, %v582
        %v593 = vsel %vm376, %v589, %v584
        %v594 = vsel %vm376, %v590, %v586
        %v599 = vadd.bf16 %v525, %v591
        %v600 = vadd.bf16 %v526, %v592
        %v601 = vadd.bf16 %v527, %v593
        %v602 = vadd.bf16 %v528, %v594
        %607 = vrot.lane.b32.xlu0 %v546, 127
        %v608 = vpop.permute.xlu0 %607
        %609 = vrot.lane.b32.xlu0 %v547, 127
        %v610 = vpop.permute.xlu0 %609
        %611 = vrot.lane.b32.xlu0 %v548, 127
        %v612 = vpop.permute.xlu0 %611
        %613 = vrot.lane.b32.xlu0 %v549, 127
        %v614 = vpop.permute.xlu0 %613
        %v615 = vrot.slane %v608, 4
        %v616 = vrot.slane %v610, 4
        %v617 = vrot.slane %v612, 4
        %v618 = vrot.slane %v614, 4
        %v619 = vsel %vm405, %v608, %v615
        %v620 = vsel %vm405, %v610, %v616
        %v621 = vsel %vm405, %v612, %v617
        %v622 = vsel %vm405, %v614, %v618
        %v627 = vadd.bf16 %v539, %v619
        %v628 = vadd.bf16 %v540, %v620
        %v629 = vadd.bf16 %v541, %v621
        %v630 = vadd.bf16 %v542, %v622
        %v631 = vadd.bf16 %v553, %v560
        %v632 = vadd.bf16 %v554, %v561
        %v633 = vadd.bf16 %v555, %v562
        %v634 = vadd.bf16 %v556, %v563
        %639 = vrot.lane.b32.xlu0 %v599, 127
        %v640 = vpop.permute.xlu0 %639
        %641 = vrot.lane.b32.xlu0 %v600, 127
        %v642 = vpop.permute.xlu0 %641
        %643 = vrot.lane.b32.xlu0 %v601, 127
        %v644 = vpop.permute.xlu0 %643
        %645 = vrot.lane.b32.xlu0 %v602, 127
        %v646 = vpop.permute.xlu0 %645
        %v647 = vrot.slane %v640, 4
        %v648 = vrot.slane %v642, 4
        %v649 = vrot.slane %v644, 4
        %v650 = vrot.slane %v646, 4
        %v651 = vsel %vm405, %v640, %v647
        %v652 = vsel %vm405, %v642, %v648
        %v653 = vsel %vm405, %v644, %v649
        %v654 = vsel %vm405, %v646, %v650
        %v659 = vadd.bf16 %v571, %v651
        %v660 = vadd.bf16 %v572, %v652
        %v661 = vadd.bf16 %v573, %v653
        %v662 = vadd.bf16 %v574, %v654
        %v663 = vadd.bf16 %v627, %v631
        %v664 = vadd.bf16 %v628, %v632
        %v665 = vadd.bf16 %v629, %v633
        %v666 = vadd.bf16 %v630, %v634
        %v667 = vadd.bf16 %v659, %v663
        %v668 = vadd.bf16 %v660, %v664
        %v669 = vadd.bf16 %v661, %v665
        %v670 = vadd.bf16 %v662, %v666
        %675 = vrot.lane.b32.xlu0 %v567, 127
        %v676 = vpop.permute.xlu0 %675
        %677 = vrot.lane.b32.xlu0 %v568, 127
        %v678 = vpop.permute.xlu0 %677
        %679 = vrot.lane.b32.xlu0 %v569, 127
        %v680 = vpop.permute.xlu0 %679
        %681 = vrot.lane.b32.xlu0 %v570, 127
        %v682 = vpop.permute.xlu0 %681
        %v683 = vrot.slane %v676, 4
        %v684 = vrot.slane %v678, 4
        %v685 = vrot.slane %v680, 4
        %v686 = vrot.slane %v682, 4
        %v687 = vsel %vm405, %v676, %v683
        %v688 = vsel %vm405, %v678, %v684
        %v689 = vsel %vm405, %v680, %v685
        %v690 = vsel %vm405, %v682, %v686
        %v695 = vadd.bf16 %v667, %v687
        %v696 = vadd.bf16 %v668, %v688
        %v697 = vadd.bf16 %v669, %v689
        %v698 = vadd.bf16 %v670, %v690
        %v699 = vunpack.c.l.bf16 %v695
        %v700 = vunpack.c.l.bf16 %v696
        %v701 = vunpack.c.l.bf16 %v697
        %v702 = vunpack.c.l.bf16 %v698
        %s703 = sld [smem:[#allocation4 + $0x1]]
        %v704 = vstv %s703
        %v705 = vadd.f32 %v699, %v704
        %v706 = vadd.f32 %v700, %v704
        %v707 = vadd.f32 %v701, %v704
        %v708 = vadd.f32 %v702, %v704
        %v709 = vmax.f32 %v705, 0.0
        %v710 = vmax.f32 %v706, 0.0
        %v711 = vmax.f32 %v707, 0.0
        %v712 = vmax.f32 %v708, 0.0
        %v713 = vmin.f32 %v709, 6.0
        %v714 = vmin.f32 %v710, 6.0
        %v715 = vmin.f32 %v711, 6.0
        %v716 = vmin.f32 %v712, 6.0
        %s717 = scalar_lea.vmem %s238, 32
        %718 = vst [vmem:[%s717] sm:$0xff] %v713
        %719 = vst [vmem:[%s717 + $0x8] sm:$0xff] %v714
        %720 = vst [vmem:[%s717 + $0x10] sm:$0xff] %v715
        %721 = vst [vmem:[%s717 + $0x18] sm:$0xff] %v716
        %s722 = sld [smem:[#allocation2 + $0x12]]
        %v723 = vstv %s722
        %v724 = vpack.c.bf16 %v723, %v723
        %v725 = vmul.bf16 %v724, %v244
        %v726 = vmul.bf16 %v724, %v245
        %v727 = vmul.bf16 %v724, %v246
        %v728 = vmul.bf16 %v724, %v247
        %s729 = sld [smem:[#allocation2 + $0x13]]
        %v730 = vstv %s729
        %v731 = vpack.c.bf16 %v730, %v730
        %v732 = vmul.bf16 %v731, %v253
        %v733 = vmul.bf16 %v731, %v254
        %v734 = vmul.bf16 %v731, %v255
        %v735 = vmul.bf16 %v731, %v256
        %s736 = sld [smem:[#allocation2 + $0x14]]
        %v737 = vstv %s736
        %v738 = vpack.c.bf16 %v737, %v737
        %v739 = vmul.bf16 %v738, %v244
        %v740 = vmul.bf16 %v738, %v245
        %v741 = vmul.bf16 %v738, %v246
        %v742 = vmul.bf16 %v738, %v247
        %s743 = sld [smem:[#allocation2 + $0x15]]
        %v744 = vstv %s743
        %v745 = vpack.c.bf16 %v744, %v744
        %v746 = vmul.bf16 %v745, %v262
        %v747 = vmul.bf16 %v745, %v263
        %v748 = vmul.bf16 %v745, %v264
        %v749 = vmul.bf16 %v745, %v265
        %s750 = sld [smem:[#allocation2 + $0x16]]
        %v751 = vstv %s750
        %v752 = vpack.c.bf16 %v751, %v751
        %v753 = vmul.bf16 %v752, %v271
        %v754 = vmul.bf16 %v752, %v272
        %v755 = vmul.bf16 %v752, %v273
        %v756 = vmul.bf16 %v752, %v274
        %s757 = sld [smem:[#allocation2 + $0x17]]
        %v758 = vstv %s757
        %v759 = vpack.c.bf16 %v758, %v758
        %v760 = vmul.bf16 %v759, %v262
        %v761 = vmul.bf16 %v759, %v263
        %v762 = vmul.bf16 %v759, %v264
        %v763 = vmul.bf16 %v759, %v265
        %s764 = sld [smem:[#allocation2 + $0x18]]
        %v765 = vstv %s764
        %v766 = vpack.c.bf16 %v765, %v765
        %v767 = vmul.bf16 %v766, %v280
        %v768 = vmul.bf16 %v766, %v281
        %v769 = vmul.bf16 %v766, %v282
        %v770 = vmul.bf16 %v766, %v283
        %s771 = sld [smem:[#allocation2 + $0x19]]
        %v772 = vstv %s771
        %v773 = vpack.c.bf16 %v772, %v772
        %v774 = vmul.bf16 %v773, %v289
        %v775 = vmul.bf16 %v773, %v290
        %v776 = vmul.bf16 %v773, %v291
        %v777 = vmul.bf16 %v773, %v292
        %s778 = sld [smem:[#allocation2 + $0x1a]]
        %v779 = vstv %s778
        %v780 = vpack.c.bf16 %v779, %v779
        %v781 = vmul.bf16 %v780, %v280
        %v782 = vmul.bf16 %v780, %v281
        %v783 = vmul.bf16 %v780, %v282
        %v784 = vmul.bf16 %v780, %v283
        %v785 = vadd.bf16 %v725, %v732
        %v786 = vadd.bf16 %v726, %v733
        %v787 = vadd.bf16 %v727, %v734
        %v788 = vadd.bf16 %v728, %v735
        %793 = vrot.lane.b32.xlu0 %v746, 1
        %v794 = vpop.permute.xlu0 %793
        %795 = vrot.lane.b32.xlu0 %v747, 1
        %v796 = vpop.permute.xlu0 %795
        %797 = vrot.lane.b32.xlu0 %v748, 1
        %v798 = vpop.permute.xlu0 %797
        %799 = vrot.lane.b32.xlu0 %v749, 1
        %v800 = vpop.permute.xlu0 %799
        %v801 = vrot.slane %v794, 4
        %v802 = vrot.slane %v796, 4
        %v803 = vrot.slane %v798, 4
        %v804 = vrot.slane %v800, 4
        %v805 = vsel %vm376, %v801, %v794
        %v806 = vsel %vm376, %v802, %v796
        %v807 = vsel %vm376, %v803, %v798
        %v808 = vsel %vm376, %v804, %v800
        %v813 = vadd.bf16 %v739, %v805
        %v814 = vadd.bf16 %v740, %v806
        %v815 = vadd.bf16 %v741, %v807
        %v816 = vadd.bf16 %v742, %v808
        %821 = vrot.lane.b32.xlu0 %v760, 127
        %v822 = vpop.permute.xlu0 %821
        %823 = vrot.lane.b32.xlu0 %v761, 127
        %v824 = vpop.permute.xlu0 %823
        %825 = vrot.lane.b32.xlu0 %v762, 127
        %v826 = vpop.permute.xlu0 %825
        %827 = vrot.lane.b32.xlu0 %v763, 127
        %v828 = vpop.permute.xlu0 %827
        %v829 = vrot.slane %v822, 4
        %v830 = vrot.slane %v824, 4
        %v831 = vrot.slane %v826, 4
        %v832 = vrot.slane %v828, 4
        %v833 = vsel %vm405, %v822, %v829
        %v834 = vsel %vm405, %v824, %v830
        %v835 = vsel %vm405, %v826, %v831
        %v836 = vsel %vm405, %v828, %v832
        %v841 = vadd.bf16 %v753, %v833
        %v842 = vadd.bf16 %v754, %v834
        %v843 = vadd.bf16 %v755, %v835
        %v844 = vadd.bf16 %v756, %v836
        %v845 = vadd.bf16 %v767, %v774
        %v846 = vadd.bf16 %v768, %v775
        %v847 = vadd.bf16 %v769, %v776
        %v848 = vadd.bf16 %v770, %v777
        %853 = vrot.lane.b32.xlu0 %v813, 127
        %v854 = vpop.permute.xlu0 %853
        %855 = vrot.lane.b32.xlu0 %v814, 127
        %v856 = vpop.permute.xlu0 %855
        %857 = vrot.lane.b32.xlu0 %v815, 127
        %v858 = vpop.permute.xlu0 %857
        %859 = vrot.lane.b32.xlu0 %v816, 127
        %v860 = vpop.permute.xlu0 %859
        %v861 = vrot.slane %v854, 4
        %v862 = vrot.slane %v856, 4
        %v863 = vrot.slane %v858, 4
        %v864 = vrot.slane %v860, 4
        %v865 = vsel %vm405, %v854, %v861
        %v866 = vsel %vm405, %v856, %v862
        %v867 = vsel %vm405, %v858, %v863
        %v868 = vsel %vm405, %v860, %v864
        %v873 = vadd.bf16 %v785, %v865
        %v874 = vadd.bf16 %v786, %v866
        %v875 = vadd.bf16 %v787, %v867
        %v876 = vadd.bf16 %v788, %v868
        %v877 = vadd.bf16 %v841, %v845
        %v878 = vadd.bf16 %v842, %v846
        %v879 = vadd.bf16 %v843, %v847
        %v880 = vadd.bf16 %v844, %v848
        %v881 = vadd.bf16 %v873, %v877
        %v882 = vadd.bf16 %v874, %v878
        %v883 = vadd.bf16 %v875, %v879
        %v884 = vadd.bf16 %v876, %v880
        %889 = vrot.lane.b32.xlu0 %v781, 127
        %v890 = vpop.permute.xlu0 %889
        %891 = vrot.lane.b32.xlu0 %v782, 127
        %v892 = vpop.permute.xlu0 %891
        %893 = vrot.lane.b32.xlu0 %v783, 127
        %v894 = vpop.permute.xlu0 %893
        %895 = vrot.lane.b32.xlu0 %v784, 127
        %v896 = vpop.permute.xlu0 %895
        %v897 = vrot.slane %v890, 4
        %v898 = vrot.slane %v892, 4
        %v899 = vrot.slane %v894, 4
        %v900 = vrot.slane %v896, 4
        %v901 = vsel %vm405, %v890, %v897
        %v902 = vsel %vm405, %v892, %v898
        %v903 = vsel %vm405, %v894, %v899
        %v904 = vsel %vm405, %v896, %v900
        %v909 = vadd.bf16 %v881, %v901
        %v910 = vadd.bf16 %v882, %v902
        %v911 = vadd.bf16 %v883, %v903
        %v912 = vadd.bf16 %v884, %v904
        %v913 = vunpack.c.l.bf16 %v909
        %v914 = vunpack.c.l.bf16 %v910
        %v915 = vunpack.c.l.bf16 %v911
        %v916 = vunpack.c.l.bf16 %v912
        %s917 = sld [smem:[#allocation4 + $0x2]]
        %v918 = vstv %s917
        %v919 = vadd.f32 %v913, %v918
        %v920 = vadd.f32 %v914, %v918
        %v921 = vadd.f32 %v915, %v918
        %v922 = vadd.f32 %v916, %v918
        %v923 = vmax.f32 %v919, 0.0
        %v924 = vmax.f32 %v920, 0.0
        %v925 = vmax.f32 %v921, 0.0
        %v926 = vmax.f32 %v922, 0.0
        %v927 = vmin.f32 %v923, 6.0
        %v928 = vmin.f32 %v924, 6.0
        %v929 = vmin.f32 %v925, 6.0
        %v930 = vmin.f32 %v926, 6.0
        %s931 = scalar_lea.vmem %s238, 64
        %932 = vst [vmem:[%s931] sm:$0xff] %v927
        %933 = vst [vmem:[%s931 + $0x8] sm:$0xff] %v928
        %934 = vst [vmem:[%s931 + $0x10] sm:$0xff] %v929
        %935 = vst [vmem:[%s931 + $0x18] sm:$0xff] %v930
        %s936 = sld [smem:[#allocation2 + $0x1b]]
        %v937 = vstv %s936
        %v938 = vpack.c.bf16 %v937, %v937
        %v939 = vmul.bf16 %v938, %v244
        %v940 = vmul.bf16 %v938, %v245
        %v941 = vmul.bf16 %v938, %v246
        %v942 = vmul.bf16 %v938, %v247
        %s943 = sld [smem:[#allocation2 + $0x1c]]
        %v944 = vstv %s943
        %v945 = vpack.c.bf16 %v944, %v944
        %v946 = vmul.bf16 %v945, %v253
        %v947 = vmul.bf16 %v945, %v254
        %v948 = vmul.bf16 %v945, %v255
        %v949 = vmul.bf16 %v945, %v256
        %s950 = sld [smem:[#allocation2 + $0x1d]]
        %v951 = vstv %s950
        %v952 = vpack.c.bf16 %v951, %v951
        %v953 = vmul.bf16 %v952, %v244
        %v954 = vmul.bf16 %v952, %v245
        %v955 = vmul.bf16 %v952, %v246
        %v956 = vmul.bf16 %v952, %v247
        %s957 = sld [smem:[#allocation2 + $0x1e]]
        %v958 = vstv %s957
        %v959 = vpack.c.bf16 %v958, %v958
        %v960 = vmul.bf16 %v959, %v262
        %v961 = vmul.bf16 %v959, %v263
        %v962 = vmul.bf16 %v959, %v264
        %v963 = vmul.bf16 %v959, %v265
        %s964 = sld [smem:[#allocation2 + $0x1f]]
        %v965 = vstv %s964
        %v966 = vpack.c.bf16 %v965, %v965
        %v967 = vmul.bf16 %v966, %v271
        %v968 = vmul.bf16 %v966, %v272
        %v969 = vmul.bf16 %v966, %v273
        %v970 = vmul.bf16 %v966, %v274
        %s971 = sld [smem:[#allocation2 + $0x20]]
        %v972 = vstv %s971
        %v973 = vpack.c.bf16 %v972, %v972
        %v974 = vmul.bf16 %v973, %v262
        %v975 = vmul.bf16 %v973, %v263
        %v976 = vmul.bf16 %v973, %v264
        %v977 = vmul.bf16 %v973, %v265
        %s978 = sld [smem:[#allocation2 + $0x21]]
        %v979 = vstv %s978
        %v980 = vpack.c.bf16 %v979, %v979
        %v981 = vmul.bf16 %v980, %v280
        %v982 = vmul.bf16 %v980, %v281
        %v983 = vmul.bf16 %v980, %v282
        %v984 = vmul.bf16 %v980, %v283
        %s985 = sld [smem:[#allocation2 + $0x22]]
        %v986 = vstv %s985
        %v987 = vpack.c.bf16 %v986, %v986
        %v988 = vmul.bf16 %v987, %v289
        %v989 = vmul.bf16 %v987, %v290
        %v990 = vmul.bf16 %v987, %v291
        %v991 = vmul.bf16 %v987, %v292
        %s992 = sld [smem:[#allocation2 + $0x23]]
        %v993 = vstv %s992
        %v994 = vpack.c.bf16 %v993, %v993
        %v995 = vmul.bf16 %v994, %v280
        %v996 = vmul.bf16 %v994, %v281
        %v997 = vmul.bf16 %v994, %v282
        %v998 = vmul.bf16 %v994, %v283
        %v999 = vadd.bf16 %v939, %v946
        %v1000 = vadd.bf16 %v940, %v947
        %v1001 = vadd.bf16 %v941, %v948
        %v1002 = vadd.bf16 %v942, %v949
        %1007 = vrot.lane.b32.xlu0 %v960, 1
        %v1008 = vpop.permute.xlu0 %1007
        %1009 = vrot.lane.b32.xlu0 %v961, 1
        %v1010 = vpop.permute.xlu0 %1009
        %1011 = vrot.lane.b32.xlu0 %v962, 1
        %v1012 = vpop.permute.xlu0 %1011
        %1013 = vrot.lane.b32.xlu0 %v963, 1
        %v1014 = vpop.permute.xlu0 %1013
        %v1015 = vrot.slane %v1008, 4
        %v1016 = vrot.slane %v1010, 4
        %v1017 = vrot.slane %v1012, 4
        %v1018 = vrot.slane %v1014, 4
        %v1019 = vsel %vm376, %v1015, %v1008
        %v1020 = vsel %vm376, %v1016, %v1010
        %v1021 = vsel %vm376, %v1017, %v1012
        %v1022 = vsel %vm376, %v1018, %v1014
        %v1027 = vadd.bf16 %v953, %v1019
        %v1028 = vadd.bf16 %v954, %v1020
        %v1029 = vadd.bf16 %v955, %v1021
        %v1030 = vadd.bf16 %v956, %v1022
        %1035 = vrot.lane.b32.xlu0 %v974, 127
        %v1036 = vpop.permute.xlu0 %1035
        %1037 = vrot.lane.b32.xlu0 %v975, 127
        %v1038 = vpop.permute.xlu0 %1037
        %1039 = vrot.lane.b32.xlu0 %v976, 127
        %v1040 = vpop.permute.xlu0 %1039
        %1041 = vrot.lane.b32.xlu0 %v977, 127
        %v1042 = vpop.permute.xlu0 %1041
        %v1043 = vrot.slane %v1036, 4
        %v1044 = vrot.slane %v1038, 4
        %v1045 = vrot.slane %v1040, 4
        %v1046 = vrot.slane %v1042, 4
        %v1047 = vsel %vm405, %v1036, %v1043
        %v1048 = vsel %vm405, %v1038, %v1044
        %v1049 = vsel %vm405, %v1040, %v1045
        %v1050 = vsel %vm405, %v1042, %v1046
        %v1055 = vadd.bf16 %v967, %v1047
        %v1056 = vadd.bf16 %v968, %v1048
        %v1057 = vadd.bf16 %v969, %v1049
        %v1058 = vadd.bf16 %v970, %v1050
        %v1059 = vadd.bf16 %v981, %v988
        %v1060 = vadd.bf16 %v982, %v989
        %v1061 = vadd.bf16 %v983, %v990
        %v1062 = vadd.bf16 %v984, %v991
        %1067 = vrot.lane.b32.xlu0 %v1027, 127
        %v1068 = vpop.permute.xlu0 %1067
        %1069 = vrot.lane.b32.xlu0 %v1028, 127
        %v1070 = vpop.permute.xlu0 %1069
        %1071 = vrot.lane.b32.xlu0 %v1029, 127
        %v1072 = vpop.permute.xlu0 %1071
        %1073 = vrot.lane.b32.xlu0 %v1030, 127
        %v1074 = vpop.permute.xlu0 %1073
        %v1075 = vrot.slane %v1068, 4
        %v1076 = vrot.slane %v1070, 4
        %v1077 = vrot.slane %v1072, 4
        %v1078 = vrot.slane %v1074, 4
        %v1079 = vsel %vm405, %v1068, %v1075
        %v1080 = vsel %vm405, %v1070, %v1076
        %v1081 = vsel %vm405, %v1072, %v1077
        %v1082 = vsel %vm405, %v1074, %v1078
        %v1087 = vadd.bf16 %v999, %v1079
        %v1088 = vadd.bf16 %v1000, %v1080
        %v1089 = vadd.bf16 %v1001, %v1081
        %v1090 = vadd.bf16 %v1002, %v1082
        %v1091 = vadd.bf16 %v1055, %v1059
        %v1092 = vadd.bf16 %v1056, %v1060
        %v1093 = vadd.bf16 %v1057, %v1061
        %v1094 = vadd.bf16 %v1058, %v1062
        %v1095 = vadd.bf16 %v1087, %v1091
        %v1096 = vadd.bf16 %v1088, %v1092
        %v1097 = vadd.bf16 %v1089, %v1093
        %v1098 = vadd.bf16 %v1090, %v1094
        %1103 = vrot.lane.b32.xlu0 %v995, 127
        %v1104 = vpop.permute.xlu0 %1103
        %1105 = vrot.lane.b32.xlu0 %v996, 127
        %v1106 = vpop.permute.xlu0 %1105
        %1107 = vrot.lane.b32.xlu0 %v997, 127
        %v1108 = vpop.permute.xlu0 %1107
        %1109 = vrot.lane.b32.xlu0 %v998, 127
        %v1110 = vpop.permute.xlu0 %1109
        %v1111 = vrot.slane %v1104, 4
        %v1112 = vrot.slane %v1106, 4
        %v1113 = vrot.slane %v1108, 4
        %v1114 = vrot.slane %v1110, 4
        %v1115 = vsel %vm405, %v1104, %v1111
        %v1116 = vsel %vm405, %v1106, %v1112
        %v1117 = vsel %vm405, %v1108, %v1113
        %v1118 = vsel %vm405, %v1110, %v1114
        %v1123 = vadd.bf16 %v1095, %v1115
        %v1124 = vadd.bf16 %v1096, %v1116
        %v1125 = vadd.bf16 %v1097, %v1117
        %v1126 = vadd.bf16 %v1098, %v1118
        %v1127 = vunpack.c.l.bf16 %v1123
        %v1128 = vunpack.c.l.bf16 %v1124
        %v1129 = vunpack.c.l.bf16 %v1125
        %v1130 = vunpack.c.l.bf16 %v1126
        %s1131 = sld [smem:[#allocation4 + $0x3]]
        %v1132 = vstv %s1131
        %v1133 = vadd.f32 %v1127, %v1132
        %v1134 = vadd.f32 %v1128, %v1132
        %v1135 = vadd.f32 %v1129, %v1132
        %v1136 = vadd.f32 %v1130, %v1132
        %v1137 = vmax.f32 %v1133, 0.0
        %v1138 = vmax.f32 %v1134, 0.0
        %v1139 = vmax.f32 %v1135, 0.0
        %v1140 = vmax.f32 %v1136, 0.0
        %v1141 = vmin.f32 %v1137, 6.0
        %v1142 = vmin.f32 %v1138, 6.0
        %v1143 = vmin.f32 %v1139, 6.0
        %v1144 = vmin.f32 %v1140, 6.0
        %s1145 = scalar_lea.vmem %s238, 96
        %1146 = vst [vmem:[%s1145] sm:$0xff] %v1141
        %1147 = vst [vmem:[%s1145 + $0x8] sm:$0xff] %v1142
        %1148 = vst [vmem:[%s1145 + $0x10] sm:$0xff] %v1143
        %1149 = vst [vmem:[%s1145 + $0x18] sm:$0xff] %v1144
        %s1150 = sld [smem:[#allocation2 + $0x24]]
        %v1151 = vstv %s1150
        %v1152 = vpack.c.bf16 %v1151, %v1151
        %v1153 = vmul.bf16 %v1152, %v244
        %v1154 = vmul.bf16 %v1152, %v245
        %v1155 = vmul.bf16 %v1152, %v246
        %v1156 = vmul.bf16 %v1152, %v247
        %s1157 = sld [smem:[#allocation2 + $0x25]]
        %v1158 = vstv %s1157
        %v1159 = vpack.c.bf16 %v1158, %v1158
        %v1160 = vmul.bf16 %v1159, %v253
        %v1161 = vmul.bf16 %v1159, %v254
        %v1162 = vmul.bf16 %v1159, %v255
        %v1163 = vmul.bf16 %v1159, %v256
        %s1164 = sld [smem:[#allocation2 + $0x26]]
        %v1165 = vstv %s1164
        %v1166 = vpack.c.bf16 %v1165, %v1165
        %v1167 = vmul.bf16 %v1166, %v244
        %v1168 = vmul.bf16 %v1166, %v245
        %v1169 = vmul.bf16 %v1166, %v246
        %v1170 = vmul.bf16 %v1166, %v247
        %s1171 = sld [smem:[#allocation2 + $0x27]]
        %v1172 = vstv %s1171
        %v1173 = vpack.c.bf16 %v1172, %v1172
        %v1174 = vmul.bf16 %v1173, %v262
        %v1175 = vmul.bf16 %v1173, %v263
        %v1176 = vmul.bf16 %v1173, %v264
        %v1177 = vmul.bf16 %v1173, %v265
        %s1178 = sld [smem:[#allocation2 + $0x28]]
        %v1179 = vstv %s1178
        %v1180 = vpack.c.bf16 %v1179, %v1179
        %v1181 = vmul.bf16 %v1180, %v271
        %v1182 = vmul.bf16 %v1180, %v272
        %v1183 = vmul.bf16 %v1180, %v273
        %v1184 = vmul.bf16 %v1180, %v274
        %s1185 = sld [smem:[#allocation2 + $0x29]]
        %v1186 = vstv %s1185
        %v1187 = vpack.c.bf16 %v1186, %v1186
        %v1188 = vmul.bf16 %v1187, %v262
        %v1189 = vmul.bf16 %v1187, %v263
        %v1190 = vmul.bf16 %v1187, %v264
        %v1191 = vmul.bf16 %v1187, %v265
        %s1192 = sld [smem:[#allocation2 + $0x2a]]
        %v1193 = vstv %s1192
        %v1194 = vpack.c.bf16 %v1193, %v1193
        %v1195 = vmul.bf16 %v1194, %v280
        %v1196 = vmul.bf16 %v1194, %v281
        %v1197 = vmul.bf16 %v1194, %v282
        %v1198 = vmul.bf16 %v1194, %v283
        %s1199 = sld [smem:[#allocation2 + $0x2b]]
        %v1200 = vstv %s1199
        %v1201 = vpack.c.bf16 %v1200, %v1200
        %v1202 = vmul.bf16 %v1201, %v289
        %v1203 = vmul.bf16 %v1201, %v290
        %v1204 = vmul.bf16 %v1201, %v291
        %v1205 = vmul.bf16 %v1201, %v292
        %s1206 = sld [smem:[#allocation2 + $0x2c]]
        %v1207 = vstv %s1206
        %v1208 = vpack.c.bf16 %v1207, %v1207
        %v1209 = vmul.bf16 %v1208, %v280
        %v1210 = vmul.bf16 %v1208, %v281
        %v1211 = vmul.bf16 %v1208, %v282
        %v1212 = vmul.bf16 %v1208, %v283
        %v1213 = vadd.bf16 %v1153, %v1160
        %v1214 = vadd.bf16 %v1154, %v1161
        %v1215 = vadd.bf16 %v1155, %v1162
        %v1216 = vadd.bf16 %v1156, %v1163
        %1221 = vrot.lane.b32.xlu0 %v1174, 1
        %v1222 = vpop.permute.xlu0 %1221
        %1223 = vrot.lane.b32.xlu0 %v1175, 1
        %v1224 = vpop.permute.xlu0 %1223
        %1225 = vrot.lane.b32.xlu0 %v1176, 1
        %v1226 = vpop.permute.xlu0 %1225
        %1227 = vrot.lane.b32.xlu0 %v1177, 1
        %v1228 = vpop.permute.xlu0 %1227
        %v1229 = vrot.slane %v1222, 4
        %v1230 = vrot.slane %v1224, 4
        %v1231 = vrot.slane %v1226, 4
        %v1232 = vrot.slane %v1228, 4
        %v1233 = vsel %vm376, %v1229, %v1222
        %v1234 = vsel %vm376, %v1230, %v1224
        %v1235 = vsel %vm376, %v1231, %v1226
        %v1236 = vsel %vm376, %v1232, %v1228
        %v1241 = vadd.bf16 %v1167, %v1233
        %v1242 = vadd.bf16 %v1168, %v1234
        %v1243 = vadd.bf16 %v1169, %v1235
        %v1244 = vadd.bf16 %v1170, %v1236
        %1249 = vrot.lane.b32.xlu0 %v1188, 127
        %v1250 = vpop.permute.xlu0 %1249
        %1251 = vrot.lane.b32.xlu0 %v1189, 127
        %v1252 = vpop.permute.xlu0 %1251
        %1253 = vrot.lane.b32.xlu0 %v1190, 127
        %v1254 = vpop.permute.xlu0 %1253
        %1255 = vrot.lane.b32.xlu0 %v1191, 127
        %v1256 = vpop.permute.xlu0 %1255
        %v1257 = vrot.slane %v1250, 4
        %v1258 = vrot.slane %v1252, 4
        %v1259 = vrot.slane %v1254, 4
        %v1260 = vrot.slane %v1256, 4
        %v1261 = vsel %vm405, %v1250, %v1257
        %v1262 = vsel %vm405, %v1252, %v1258
        %v1263 = vsel %vm405, %v1254, %v1259
        %v1264 = vsel %vm405, %v1256, %v1260
        %v1269 = vadd.bf16 %v1181, %v1261
        %v1270 = vadd.bf16 %v1182, %v1262
        %v1271 = vadd.bf16 %v1183, %v1263
        %v1272 = vadd.bf16 %v1184, %v1264
        %v1273 = vadd.bf16 %v1195, %v1202
        %v1274 = vadd.bf16 %v1196, %v1203
        %v1275 = vadd.bf16 %v1197, %v1204
        %v1276 = vadd.bf16 %v1198, %v1205
        %1281 = vrot.lane.b32.xlu0 %v1241, 127
        %v1282 = vpop.permute.xlu0 %1281
        %1283 = vrot.lane.b32.xlu0 %v1242, 127
        %v1284 = vpop.permute.xlu0 %1283
        %1285 = vrot.lane.b32.xlu0 %v1243, 127
        %v1286 = vpop.permute.xlu0 %1285
        %1287 = vrot.lane.b32.xlu0 %v1244, 127
        %v1288 = vpop.permute.xlu0 %1287
        %v1289 = vrot.slane %v1282, 4
        %v1290 = vrot.slane %v1284, 4
        %v1291 = vrot.slane %v1286, 4
        %v1292 = vrot.slane %v1288, 4
        %v1293 = vsel %vm405, %v1282, %v1289
        %v1294 = vsel %vm405, %v1284, %v1290
        %v1295 = vsel %vm405, %v1286, %v1291
        %v1296 = vsel %vm405, %v1288, %v1292
        %v1301 = vadd.bf16 %v1213, %v1293
        %v1302 = vadd.bf16 %v1214, %v1294
        %v1303 = vadd.bf16 %v1215, %v1295
        %v1304 = vadd.bf16 %v1216, %v1296
        %v1305 = vadd.bf16 %v1269, %v1273
        %v1306 = vadd.bf16 %v1270, %v1274
        %v1307 = vadd.bf16 %v1271, %v1275
        %v1308 = vadd.bf16 %v1272, %v1276
        %v1309 = vadd.bf16 %v1301, %v1305
        %v1310 = vadd.bf16 %v1302, %v1306
        %v1311 = vadd.bf16 %v1303, %v1307
        %v1312 = vadd.bf16 %v1304, %v1308
        %1317 = vrot.lane.b32.xlu0 %v1209, 127
        %v1318 = vpop.permute.xlu0 %1317
        %1319 = vrot.lane.b32.xlu0 %v1210, 127
        %v1320 = vpop.permute.xlu0 %1319
        %1321 = vrot.lane.b32.xlu0 %v1211, 127
        %v1322 = vpop.permute.xlu0 %1321
        %1323 = vrot.lane.b32.xlu0 %v1212, 127
        %v1324 = vpop.permute.xlu0 %1323
        %v1325 = vrot.slane %v1318, 4
        %v1326 = vrot.slane %v1320, 4
        %v1327 = vrot.slane %v1322, 4
        %v1328 = vrot.slane %v1324, 4
        %v1329 = vsel %vm405, %v1318, %v1325
        %v1330 = vsel %vm405, %v1320, %v1326
        %v1331 = vsel %vm405, %v1322, %v1327
        %v1332 = vsel %vm405, %v1324, %v1328
        %v1337 = vadd.bf16 %v1309, %v1329
        %v1338 = vadd.bf16 %v1310, %v1330
        %v1339 = vadd.bf16 %v1311, %v1331
        %v1340 = vadd.bf16 %v1312, %v1332
        %v1341 = vunpack.c.l.bf16 %v1337
        %v1342 = vunpack.c.l.bf16 %v1338
        %v1343 = vunpack.c.l.bf16 %v1339
        %v1344 = vunpack.c.l.bf16 %v1340
        %s1345 = sld [smem:[#allocation4 + $0x4]]
        %v1346 = vstv %s1345
        %v1347 = vadd.f32 %v1341, %v1346
        %v1348 = vadd.f32 %v1342, %v1346
        %v1349 = vadd.f32 %v1343, %v1346
        %v1350 = vadd.f32 %v1344, %v1346
        %v1351 = vmax.f32 %v1347, 0.0
        %v1352 = vmax.f32 %v1348, 0.0
        %v1353 = vmax.f32 %v1349, 0.0
        %v1354 = vmax.f32 %v1350, 0.0
        %v1355 = vmin.f32 %v1351, 6.0
        %v1356 = vmin.f32 %v1352, 6.0
        %v1357 = vmin.f32 %v1353, 6.0
        %v1358 = vmin.f32 %v1354, 6.0
        %s1359 = scalar_lea.vmem %s238, 128
        %1360 = vst [vmem:[%s1359] sm:$0xff] %v1355
        %1361 = vst [vmem:[%s1359 + $0x8] sm:$0xff] %v1356
        %1362 = vst [vmem:[%s1359 + $0x10] sm:$0xff] %v1357
        %1363 = vst [vmem:[%s1359 + $0x18] sm:$0xff] %v1358
        %s1364 = sld [smem:[#allocation2 + $0x2d]]
        %v1365 = vstv %s1364
        %v1366 = vpack.c.bf16 %v1365, %v1365
        %v1367 = vmul.bf16 %v1366, %v244
        %v1368 = vmul.bf16 %v1366, %v245
        %v1369 = vmul.bf16 %v1366, %v246
        %v1370 = vmul.bf16 %v1366, %v247
        %s1371 = sld [smem:[#allocation2 + $0x2e]]
        %v1372 = vstv %s1371
        %v1373 = vpack.c.bf16 %v1372, %v1372
        %v1374 = vmul.bf16 %v1373, %v253
        %v1375 = vmul.bf16 %v1373, %v254
        %v1376 = vmul.bf16 %v1373, %v255
        %v1377 = vmul.bf16 %v1373, %v256
        %s1378 = sld [smem:[#allocation2 + $0x2f]]
        %v1379 = vstv %s1378
        %v1380 = vpack.c.bf16 %v1379, %v1379
        %v1381 = vmul.bf16 %v1380, %v244
        %v1382 = vmul.bf16 %v1380, %v245
        %v1383 = vmul.bf16 %v1380, %v246
        %v1384 = vmul.bf16 %v1380, %v247
        %s1385 = sld [smem:[#allocation2 + $0x30]]
        %v1386 = vstv %s1385
        %v1387 = vpack.c.bf16 %v1386, %v1386
        %v1388 = vmul.bf16 %v1387, %v262
        %v1389 = vmul.bf16 %v1387, %v263
        %v1390 = vmul.bf16 %v1387, %v264
        %v1391 = vmul.bf16 %v1387, %v265
        %s1392 = sld [smem:[#allocation2 + $0x31]]
        %v1393 = vstv %s1392
        %v1394 = vpack.c.bf16 %v1393, %v1393
        %v1395 = vmul.bf16 %v1394, %v271
        %v1396 = vmul.bf16 %v1394, %v272
        %v1397 = vmul.bf16 %v1394, %v273
        %v1398 = vmul.bf16 %v1394, %v274
        %s1399 = sld [smem:[#allocation2 + $0x32]]
        %v1400 = vstv %s1399
        %v1401 = vpack.c.bf16 %v1400, %v1400
        %v1402 = vmul.bf16 %v1401, %v262
        %v1403 = vmul.bf16 %v1401, %v263
        %v1404 = vmul.bf16 %v1401, %v264
        %v1405 = vmul.bf16 %v1401, %v265
        %s1406 = sld [smem:[#allocation2 + $0x33]]
        %v1407 = vstv %s1406
        %v1408 = vpack.c.bf16 %v1407, %v1407
        %v1409 = vmul.bf16 %v1408, %v280
        %v1410 = vmul.bf16 %v1408, %v281
        %v1411 = vmul.bf16 %v1408, %v282
        %v1412 = vmul.bf16 %v1408, %v283
        %s1413 = sld [smem:[#allocation2 + $0x34]]
        %v1414 = vstv %s1413
        %v1415 = vpack.c.bf16 %v1414, %v1414
        %v1416 = vmul.bf16 %v1415, %v289
        %v1417 = vmul.bf16 %v1415, %v290
        %v1418 = vmul.bf16 %v1415, %v291
        %v1419 = vmul.bf16 %v1415, %v292
        %s1420 = sld [smem:[#allocation2 + $0x35]]
        %v1421 = vstv %s1420
        %v1422 = vpack.c.bf16 %v1421, %v1421
        %v1423 = vmul.bf16 %v1422, %v280
        %v1424 = vmul.bf16 %v1422, %v281
        %v1425 = vmul.bf16 %v1422, %v282
        %v1426 = vmul.bf16 %v1422, %v283
        %v1427 = vadd.bf16 %v1367, %v1374
        %v1428 = vadd.bf16 %v1368, %v1375
        %v1429 = vadd.bf16 %v1369, %v1376
        %v1430 = vadd.bf16 %v1370, %v1377
        %1435 = vrot.lane.b32.xlu0 %v1388, 1
        %v1436 = vpop.permute.xlu0 %1435
        %1437 = vrot.lane.b32.xlu0 %v1389, 1
        %v1438 = vpop.permute.xlu0 %1437
        %1439 = vrot.lane.b32.xlu0 %v1390, 1
        %v1440 = vpop.permute.xlu0 %1439
        %1441 = vrot.lane.b32.xlu0 %v1391, 1
        %v1442 = vpop.permute.xlu0 %1441
        %v1443 = vrot.slane %v1436, 4
        %v1444 = vrot.slane %v1438, 4
        %v1445 = vrot.slane %v1440, 4
        %v1446 = vrot.slane %v1442, 4
        %v1447 = vsel %vm376, %v1443, %v1436
        %v1448 = vsel %vm376, %v1444, %v1438
        %v1449 = vsel %vm376, %v1445, %v1440
        %v1450 = vsel %vm376, %v1446, %v1442
        %v1455 = vadd.bf16 %v1381, %v1447
        %v1456 = vadd.bf16 %v1382, %v1448
        %v1457 = vadd.bf16 %v1383, %v1449
        %v1458 = vadd.bf16 %v1384, %v1450
        %1463 = vrot.lane.b32.xlu0 %v1402, 127
        %v1464 = vpop.permute.xlu0 %1463
        %1465 = vrot.lane.b32.xlu0 %v1403, 127
        %v1466 = vpop.permute.xlu0 %1465
        %1467 = vrot.lane.b32.xlu0 %v1404, 127
        %v1468 = vpop.permute.xlu0 %1467
        %1469 = vrot.lane.b32.xlu0 %v1405, 127
        %v1470 = vpop.permute.xlu0 %1469
        %v1471 = vrot.slane %v1464, 4
        %v1472 = vrot.slane %v1466, 4
        %v1473 = vrot.slane %v1468, 4
        %v1474 = vrot.slane %v1470, 4
        %v1475 = vsel %vm405, %v1464, %v1471
        %v1476 = vsel %vm405, %v1466, %v1472
        %v1477 = vsel %vm405, %v1468, %v1473
        %v1478 = vsel %vm405, %v1470, %v1474
        %v1483 = vadd.bf16 %v1395, %v1475
        %v1484 = vadd.bf16 %v1396, %v1476
        %v1485 = vadd.bf16 %v1397, %v1477
        %v1486 = vadd.bf16 %v1398, %v1478
        %v1487 = vadd.bf16 %v1409, %v1416
        %v1488 = vadd.bf16 %v1410, %v1417
        %v1489 = vadd.bf16 %v1411, %v1418
        %v1490 = vadd.bf16 %v1412, %v1419
        %1495 = vrot.lane.b32.xlu0 %v1455, 127
        %v1496 = vpop.permute.xlu0 %1495
        %1497 = vrot.lane.b32.xlu0 %v1456, 127
        %v1498 = vpop.permute.xlu0 %1497
        %1499 = vrot.lane.b32.xlu0 %v1457, 127
        %v1500 = vpop.permute.xlu0 %1499
        %1501 = vrot.lane.b32.xlu0 %v1458, 127
        %v1502 = vpop.permute.xlu0 %1501
        %v1503 = vrot.slane %v1496, 4
        %v1504 = vrot.slane %v1498, 4
        %v1505 = vrot.slane %v1500, 4
        %v1506 = vrot.slane %v1502, 4
        %v1507 = vsel %vm405, %v1496, %v1503
        %v1508 = vsel %vm405, %v1498, %v1504
        %v1509 = vsel %vm405, %v1500, %v1505
        %v1510 = vsel %vm405, %v1502, %v1506
        %v1515 = vadd.bf16 %v1427, %v1507
        %v1516 = vadd.bf16 %v1428, %v1508
        %v1517 = vadd.bf16 %v1429, %v1509
        %v1518 = vadd.bf16 %v1430, %v1510
        %v1519 = vadd.bf16 %v1483, %v1487
        %v1520 = vadd.bf16 %v1484, %v1488
        %v1521 = vadd.bf16 %v1485, %v1489
        %v1522 = vadd.bf16 %v1486, %v1490
        %v1523 = vadd.bf16 %v1515, %v1519
        %v1524 = vadd.bf16 %v1516, %v1520
        %v1525 = vadd.bf16 %v1517, %v1521
        %v1526 = vadd.bf16 %v1518, %v1522
        %1531 = vrot.lane.b32.xlu0 %v1423, 127
        %v1532 = vpop.permute.xlu0 %1531
        %1533 = vrot.lane.b32.xlu0 %v1424, 127
        %v1534 = vpop.permute.xlu0 %1533
        %1535 = vrot.lane.b32.xlu0 %v1425, 127
        %v1536 = vpop.permute.xlu0 %1535
        %1537 = vrot.lane.b32.xlu0 %v1426, 127
        %v1538 = vpop.permute.xlu0 %1537
        %v1539 = vrot.slane %v1532, 4
        %v1540 = vrot.slane %v1534, 4
        %v1541 = vrot.slane %v1536, 4
        %v1542 = vrot.slane %v1538, 4
        %v1543 = vsel %vm405, %v1532, %v1539
        %v1544 = vsel %vm405, %v1534, %v1540
        %v1545 = vsel %vm405, %v1536, %v1541
        %v1546 = vsel %vm405, %v1538, %v1542
        %v1551 = vadd.bf16 %v1523, %v1543
        %v1552 = vadd.bf16 %v1524, %v1544
        %v1553 = vadd.bf16 %v1525, %v1545
        %v1554 = vadd.bf16 %v1526, %v1546
        %v1555 = vunpack.c.l.bf16 %v1551
        %v1556 = vunpack.c.l.bf16 %v1552
        %v1557 = vunpack.c.l.bf16 %v1553
        %v1558 = vunpack.c.l.bf16 %v1554
        %s1559 = sld [smem:[#allocation4 + $0x5]]
        %v1560 = vstv %s1559
        %v1561 = vadd.f32 %v1555, %v1560
        %v1562 = vadd.f32 %v1556, %v1560
        %v1563 = vadd.f32 %v1557, %v1560
        %v1564 = vadd.f32 %v1558, %v1560
        %v1565 = vmax.f32 %v1561, 0.0
        %v1566 = vmax.f32 %v1562, 0.0
        %v1567 = vmax.f32 %v1563, 0.0
        %v1568 = vmax.f32 %v1564, 0.0
        %v1569 = vmin.f32 %v1565, 6.0
        %v1570 = vmin.f32 %v1566, 6.0
        %v1571 = vmin.f32 %v1567, 6.0
        %v1572 = vmin.f32 %v1568, 6.0
        %s1573 = scalar_lea.vmem %s238, 160
        %1574 = vst [vmem:[%s1573] sm:$0xff] %v1569
        %1575 = vst [vmem:[%s1573 + $0x8] sm:$0xff] %v1570
        %1576 = vst [vmem:[%s1573 + $0x10] sm:$0xff] %v1571
        %1577 = vst [vmem:[%s1573 + $0x18] sm:$0xff] %v1572
        %s1578 = sld [smem:[#allocation2 + $0x36]]
        %v1579 = vstv %s1578
        %v1580 = vpack.c.bf16 %v1579, %v1579
        %v1581 = vmul.bf16 %v1580, %v244
        %v1582 = vmul.bf16 %v1580, %v245
        %v1583 = vmul.bf16 %v1580, %v246
        %v1584 = vmul.bf16 %v1580, %v247
        %s1585 = sld [smem:[#allocation2 + $0x37]]
        %v1586 = vstv %s1585
        %v1587 = vpack.c.bf16 %v1586, %v1586
        %v1588 = vmul.bf16 %v1587, %v253
        %v1589 = vmul.bf16 %v1587, %v254
        %v1590 = vmul.bf16 %v1587, %v255
        %v1591 = vmul.bf16 %v1587, %v256
        %s1592 = sld [smem:[#allocation2 + $0x38]]
        %v1593 = vstv %s1592
        %v1594 = vpack.c.bf16 %v1593, %v1593
        %v1595 = vmul.bf16 %v1594, %v244
        %v1596 = vmul.bf16 %v1594, %v245
        %v1597 = vmul.bf16 %v1594, %v246
        %v1598 = vmul.bf16 %v1594, %v247
        %s1599 = sld [smem:[#allocation2 + $0x39]]
        %v1600 = vstv %s1599
        %v1601 = vpack.c.bf16 %v1600, %v1600
        %v1602 = vmul.bf16 %v1601, %v262
        %v1603 = vmul.bf16 %v1601, %v263
        %v1604 = vmul.bf16 %v1601, %v264
        %v1605 = vmul.bf16 %v1601, %v265
        %s1606 = sld [smem:[#allocation2 + $0x3a]]
        %v1607 = vstv %s1606
        %v1608 = vpack.c.bf16 %v1607, %v1607
        %v1609 = vmul.bf16 %v1608, %v271
        %v1610 = vmul.bf16 %v1608, %v272
        %v1611 = vmul.bf16 %v1608, %v273
        %v1612 = vmul.bf16 %v1608, %v274
        %s1613 = sld [smem:[#allocation2 + $0x3b]]
        %v1614 = vstv %s1613
        %v1615 = vpack.c.bf16 %v1614, %v1614
        %v1616 = vmul.bf16 %v1615, %v262
        %v1617 = vmul.bf16 %v1615, %v263
        %v1618 = vmul.bf16 %v1615, %v264
        %v1619 = vmul.bf16 %v1615, %v265
        %s1620 = sld [smem:[#allocation2 + $0x3c]]
        %v1621 = vstv %s1620
        %v1622 = vpack.c.bf16 %v1621, %v1621
        %v1623 = vmul.bf16 %v1622, %v280
        %v1624 = vmul.bf16 %v1622, %v281
        %v1625 = vmul.bf16 %v1622, %v282
        %v1626 = vmul.bf16 %v1622, %v283
        %s1627 = sld [smem:[#allocation2 + $0x3d]]
        %v1628 = vstv %s1627
        %v1629 = vpack.c.bf16 %v1628, %v1628
        %v1630 = vmul.bf16 %v1629, %v289
        %v1631 = vmul.bf16 %v1629, %v290
        %v1632 = vmul.bf16 %v1629, %v291
        %v1633 = vmul.bf16 %v1629, %v292
        %s1634 = sld [smem:[#allocation2 + $0x3e]]
        %v1635 = vstv %s1634
        %v1636 = vpack.c.bf16 %v1635, %v1635
        %v1637 = vmul.bf16 %v1636, %v280
        %v1638 = vmul.bf16 %v1636, %v281
        %v1639 = vmul.bf16 %v1636, %v282
        %v1640 = vmul.bf16 %v1636, %v283
        %v1641 = vadd.bf16 %v1581, %v1588
        %v1642 = vadd.bf16 %v1582, %v1589
        %v1643 = vadd.bf16 %v1583, %v1590
        %v1644 = vadd.bf16 %v1584, %v1591
        %1649 = vrot.lane.b32.xlu0 %v1602, 1
        %v1650 = vpop.permute.xlu0 %1649
        %1651 = vrot.lane.b32.xlu0 %v1603, 1
        %v1652 = vpop.permute.xlu0 %1651
        %1653 = vrot.lane.b32.xlu0 %v1604, 1
        %v1654 = vpop.permute.xlu0 %1653
        %1655 = vrot.lane.b32.xlu0 %v1605, 1
        %v1656 = vpop.permute.xlu0 %1655
        %v1657 = vrot.slane %v1650, 4
        %v1658 = vrot.slane %v1652, 4
        %v1659 = vrot.slane %v1654, 4
        %v1660 = vrot.slane %v1656, 4
        %v1661 = vsel %vm376, %v1657, %v1650
        %v1662 = vsel %vm376, %v1658, %v1652
        %v1663 = vsel %vm376, %v1659, %v1654
        %v1664 = vsel %vm376, %v1660, %v1656
        %v1669 = vadd.bf16 %v1595, %v1661
        %v1670 = vadd.bf16 %v1596, %v1662
        %v1671 = vadd.bf16 %v1597, %v1663
        %v1672 = vadd.bf16 %v1598, %v1664
        %1677 = vrot.lane.b32.xlu0 %v1616, 127
        %v1678 = vpop.permute.xlu0 %1677
        %1679 = vrot.lane.b32.xlu0 %v1617, 127
        %v1680 = vpop.permute.xlu0 %1679
        %1681 = vrot.lane.b32.xlu0 %v1618, 127
        %v1682 = vpop.permute.xlu0 %1681
        %1683 = vrot.lane.b32.xlu0 %v1619, 127
        %v1684 = vpop.permute.xlu0 %1683
        %v1685 = vrot.slane %v1678, 4
        %v1686 = vrot.slane %v1680, 4
        %v1687 = vrot.slane %v1682, 4
        %v1688 = vrot.slane %v1684, 4
        %v1689 = vsel %vm405, %v1678, %v1685
        %v1690 = vsel %vm405, %v1680, %v1686
        %v1691 = vsel %vm405, %v1682, %v1687
        %v1692 = vsel %vm405, %v1684, %v1688
        %v1697 = vadd.bf16 %v1609, %v1689
        %v1698 = vadd.bf16 %v1610, %v1690
        %v1699 = vadd.bf16 %v1611, %v1691
        %v1700 = vadd.bf16 %v1612, %v1692
        %v1701 = vadd.bf16 %v1623, %v1630
        %v1702 = vadd.bf16 %v1624, %v1631
        %v1703 = vadd.bf16 %v1625, %v1632
        %v1704 = vadd.bf16 %v1626, %v1633
        %1709 = vrot.lane.b32.xlu0 %v1669, 127
        %v1710 = vpop.permute.xlu0 %1709
        %1711 = vrot.lane.b32.xlu0 %v1670, 127
        %v1712 = vpop.permute.xlu0 %1711
        %1713 = vrot.lane.b32.xlu0 %v1671, 127
        %v1714 = vpop.permute.xlu0 %1713
        %1715 = vrot.lane.b32.xlu0 %v1672, 127
        %v1716 = vpop.permute.xlu0 %1715
        %v1717 = vrot.slane %v1710, 4
        %v1718 = vrot.slane %v1712, 4
        %v1719 = vrot.slane %v1714, 4
        %v1720 = vrot.slane %v1716, 4
        %v1721 = vsel %vm405, %v1710, %v1717
        %v1722 = vsel %vm405, %v1712, %v1718
        %v1723 = vsel %vm405, %v1714, %v1719
        %v1724 = vsel %vm405, %v1716, %v1720
        %v1729 = vadd.bf16 %v1641, %v1721
        %v1730 = vadd.bf16 %v1642, %v1722
        %v1731 = vadd.bf16 %v1643, %v1723
        %v1732 = vadd.bf16 %v1644, %v1724
        %v1733 = vadd.bf16 %v1697, %v1701
        %v1734 = vadd.bf16 %v1698, %v1702
        %v1735 = vadd.bf16 %v1699, %v1703
        %v1736 = vadd.bf16 %v1700, %v1704
        %v1737 = vadd.bf16 %v1729, %v1733
        %v1738 = vadd.bf16 %v1730, %v1734
        %v1739 = vadd.bf16 %v1731, %v1735
        %v1740 = vadd.bf16 %v1732, %v1736
        %1745 = vrot.lane.b32.xlu0 %v1637, 127
        %v1746 = vpop.permute.xlu0 %1745
        %1747 = vrot.lane.b32.xlu0 %v1638, 127
        %v1748 = vpop.permute.xlu0 %1747
        %1749 = vrot.lane.b32.xlu0 %v1639, 127
        %v1750 = vpop.permute.xlu0 %1749
        %1751 = vrot.lane.b32.xlu0 %v1640, 127
        %v1752 = vpop.permute.xlu0 %1751
        %v1753 = vrot.slane %v1746, 4
        %v1754 = vrot.slane %v1748, 4
        %v1755 = vrot.slane %v1750, 4
        %v1756 = vrot.slane %v1752, 4
        %v1757 = vsel %vm405, %v1746, %v1753
        %v1758 = vsel %vm405, %v1748, %v1754
        %v1759 = vsel %vm405, %v1750, %v1755
        %v1760 = vsel %vm405, %v1752, %v1756
        %v1765 = vadd.bf16 %v1737, %v1757
        %v1766 = vadd.bf16 %v1738, %v1758
        %v1767 = vadd.bf16 %v1739, %v1759
        %v1768 = vadd.bf16 %v1740, %v1760
        %v1769 = vunpack.c.l.bf16 %v1765
        %v1770 = vunpack.c.l.bf16 %v1766
        %v1771 = vunpack.c.l.bf16 %v1767
        %v1772 = vunpack.c.l.bf16 %v1768
        %s1773 = sld [smem:[#allocation4 + $0x6]]
        %v1774 = vstv %s1773
        %v1775 = vadd.f32 %v1769, %v1774
        %v1776 = vadd.f32 %v1770, %v1774
        %v1777 = vadd.f32 %v1771, %v1774
        %v1778 = vadd.f32 %v1772, %v1774
        %v1779 = vmax.f32 %v1775, 0.0
        %v1780 = vmax.f32 %v1776, 0.0
        %v1781 = vmax.f32 %v1777, 0.0
        %v1782 = vmax.f32 %v1778, 0.0
        %v1783 = vmin.f32 %v1779, 6.0
        %v1784 = vmin.f32 %v1780, 6.0
        %v1785 = vmin.f32 %v1781, 6.0
        %v1786 = vmin.f32 %v1782, 6.0
        %s1787 = scalar_lea.vmem %s238, 192
        %1788 = vst [vmem:[%s1787] sm:$0xff] %v1783
        %1789 = vst [vmem:[%s1787 + $0x8] sm:$0xff] %v1784
        %1790 = vst [vmem:[%s1787 + $0x10] sm:$0xff] %v1785
        %1791 = vst [vmem:[%s1787 + $0x18] sm:$0xff] %v1786
        %s1792 = sld [smem:[#allocation2 + $0x3f]]
        %v1793 = vstv %s1792
        %v1794 = vpack.c.bf16 %v1793, %v1793
        %v1795 = vmul.bf16 %v1794, %v244
        %v1796 = vmul.bf16 %v1794, %v245
        %v1797 = vmul.bf16 %v1794, %v246
        %v1798 = vmul.bf16 %v1794, %v247
        %s1799 = sld [smem:[#allocation2 + $0x40]]
        %v1800 = vstv %s1799
        %v1801 = vpack.c.bf16 %v1800, %v1800
        %v1802 = vmul.bf16 %v1801, %v253
        %v1803 = vmul.bf16 %v1801, %v254
        %v1804 = vmul.bf16 %v1801, %v255
        %v1805 = vmul.bf16 %v1801, %v256
        %s1806 = sld [smem:[#allocation2 + $0x41]]
        %v1807 = vstv %s1806
        %v1808 = vpack.c.bf16 %v1807, %v1807
        %v1809 = vmul.bf16 %v1808, %v244
        %v1810 = vmul.bf16 %v1808, %v245
        %v1811 = vmul.bf16 %v1808, %v246
        %v1812 = vmul.bf16 %v1808, %v247
        %s1813 = sld [smem:[#allocation2 + $0x42]]
        %v1814 = vstv %s1813
        %v1815 = vpack.c.bf16 %v1814, %v1814
        %v1816 = vmul.bf16 %v1815, %v262
        %v1817 = vmul.bf16 %v1815, %v263
        %v1818 = vmul.bf16 %v1815, %v264
        %v1819 = vmul.bf16 %v1815, %v265
        %s1820 = sld [smem:[#allocation2 + $0x43]]
        %v1821 = vstv %s1820
        %v1822 = vpack.c.bf16 %v1821, %v1821
        %v1823 = vmul.bf16 %v1822, %v271
        %v1824 = vmul.bf16 %v1822, %v272
        %v1825 = vmul.bf16 %v1822, %v273
        %v1826 = vmul.bf16 %v1822, %v274
        %s1827 = sld [smem:[#allocation2 + $0x44]]
        %v1828 = vstv %s1827
        %v1829 = vpack.c.bf16 %v1828, %v1828
        %v1830 = vmul.bf16 %v1829, %v262
        %v1831 = vmul.bf16 %v1829, %v263
        %v1832 = vmul.bf16 %v1829, %v264
        %v1833 = vmul.bf16 %v1829, %v265
        %s1834 = sld [smem:[#allocation2 + $0x45]]
        %v1835 = vstv %s1834
        %v1836 = vpack.c.bf16 %v1835, %v1835
        %v1837 = vmul.bf16 %v1836, %v280
        %v1838 = vmul.bf16 %v1836, %v281
        %v1839 = vmul.bf16 %v1836, %v282
        %v1840 = vmul.bf16 %v1836, %v283
        %s1841 = sld [smem:[#allocation2 + $0x46]]
        %v1842 = vstv %s1841
        %v1843 = vpack.c.bf16 %v1842, %v1842
        %v1844 = vmul.bf16 %v1843, %v289
        %v1845 = vmul.bf16 %v1843, %v290
        %v1846 = vmul.bf16 %v1843, %v291
        %v1847 = vmul.bf16 %v1843, %v292
        %s1848 = sld [smem:[#allocation2 + $0x47]]
        %v1849 = vstv %s1848
        %v1850 = vpack.c.bf16 %v1849, %v1849
        %v1851 = vmul.bf16 %v1850, %v280
        %v1852 = vmul.bf16 %v1850, %v281
        %v1853 = vmul.bf16 %v1850, %v282
        %v1854 = vmul.bf16 %v1850, %v283
        %v1855 = vadd.bf16 %v1795, %v1802
        %v1856 = vadd.bf16 %v1796, %v1803
        %v1857 = vadd.bf16 %v1797, %v1804
        %v1858 = vadd.bf16 %v1798, %v1805
        %1863 = vrot.lane.b32.xlu0 %v1816, 1
        %v1864 = vpop.permute.xlu0 %1863
        %1865 = vrot.lane.b32.xlu0 %v1817, 1
        %v1866 = vpop.permute.xlu0 %1865
        %1867 = vrot.lane.b32.xlu0 %v1818, 1
        %v1868 = vpop.permute.xlu0 %1867
        %1869 = vrot.lane.b32.xlu0 %v1819, 1
        %v1870 = vpop.permute.xlu0 %1869
        %v1871 = vrot.slane %v1864, 4
        %v1872 = vrot.slane %v1866, 4
        %v1873 = vrot.slane %v1868, 4
        %v1874 = vrot.slane %v1870, 4
        %v1875 = vsel %vm376, %v1871, %v1864
        %v1876 = vsel %vm376, %v1872, %v1866
        %v1877 = vsel %vm376, %v1873, %v1868
        %v1878 = vsel %vm376, %v1874, %v1870
        %v1883 = vadd.bf16 %v1809, %v1875
        %v1884 = vadd.bf16 %v1810, %v1876
        %v1885 = vadd.bf16 %v1811, %v1877
        %v1886 = vadd.bf16 %v1812, %v1878
        %1891 = vrot.lane.b32.xlu0 %v1830, 127
        %v1892 = vpop.permute.xlu0 %1891
        %1893 = vrot.lane.b32.xlu0 %v1831, 127
        %v1894 = vpop.permute.xlu0 %1893
        %1895 = vrot.lane.b32.xlu0 %v1832, 127
        %v1896 = vpop.permute.xlu0 %1895
        %1897 = vrot.lane.b32.xlu0 %v1833, 127
        %v1898 = vpop.permute.xlu0 %1897
        %v1899 = vrot.slane %v1892, 4
        %v1900 = vrot.slane %v1894, 4
        %v1901 = vrot.slane %v1896, 4
        %v1902 = vrot.slane %v1898, 4
        %v1903 = vsel %vm405, %v1892, %v1899
        %v1904 = vsel %vm405, %v1894, %v1900
        %v1905 = vsel %vm405, %v1896, %v1901
        %v1906 = vsel %vm405, %v1898, %v1902
        %v1911 = vadd.bf16 %v1823, %v1903
        %v1912 = vadd.bf16 %v1824, %v1904
        %v1913 = vadd.bf16 %v1825, %v1905
        %v1914 = vadd.bf16 %v1826, %v1906
        %v1915 = vadd.bf16 %v1837, %v1844
        %v1916 = vadd.bf16 %v1838, %v1845
        %v1917 = vadd.bf16 %v1839, %v1846
        %v1918 = vadd.bf16 %v1840, %v1847
        %1923 = vrot.lane.b32.xlu0 %v1883, 127
        %v1924 = vpop.permute.xlu0 %1923
        %1925 = vrot.lane.b32.xlu0 %v1884, 127
        %v1926 = vpop.permute.xlu0 %1925
        %1927 = vrot.lane.b32.xlu0 %v1885, 127
        %v1928 = vpop.permute.xlu0 %1927
        %1929 = vrot.lane.b32.xlu0 %v1886, 127
        %v1930 = vpop.permute.xlu0 %1929
        %v1931 = vrot.slane %v1924, 4
        %v1932 = vrot.slane %v1926, 4
        %v1933 = vrot.slane %v1928, 4
        %v1934 = vrot.slane %v1930, 4
        %v1935 = vsel %vm405, %v1924, %v1931
        %v1936 = vsel %vm405, %v1926, %v1932
        %v1937 = vsel %vm405, %v1928, %v1933
        %v1938 = vsel %vm405, %v1930, %v1934
        %v1943 = vadd.bf16 %v1855, %v1935
        %v1944 = vadd.bf16 %v1856, %v1936
        %v1945 = vadd.bf16 %v1857, %v1937
        %v1946 = vadd.bf16 %v1858, %v1938
        %v1947 = vadd.bf16 %v1911, %v1915
        %v1948 = vadd.bf16 %v1912, %v1916
        %v1949 = vadd.bf16 %v1913, %v1917
        %v1950 = vadd.bf16 %v1914, %v1918
        %v1951 = vadd.bf16 %v1943, %v1947
        %v1952 = vadd.bf16 %v1944, %v1948
        %v1953 = vadd.bf16 %v1945, %v1949
        %v1954 = vadd.bf16 %v1946, %v1950
        %1959 = vrot.lane.b32.xlu0 %v1851, 127
        %v1960 = vpop.permute.xlu0 %1959
        %1961 = vrot.lane.b32.xlu0 %v1852, 127
        %v1962 = vpop.permute.xlu0 %1961
        %1963 = vrot.lane.b32.xlu0 %v1853, 127
        %v1964 = vpop.permute.xlu0 %1963
        %1965 = vrot.lane.b32.xlu0 %v1854, 127
        %v1966 = vpop.permute.xlu0 %1965
        %v1967 = vrot.slane %v1960, 4
        %v1968 = vrot.slane %v1962, 4
        %v1969 = vrot.slane %v1964, 4
        %v1970 = vrot.slane %v1966, 4
        %v1971 = vsel %vm405, %v1960, %v1967
        %v1972 = vsel %vm405, %v1962, %v1968
        %v1973 = vsel %vm405, %v1964, %v1969
        %v1974 = vsel %vm405, %v1966, %v1970
        %v1979 = vadd.bf16 %v1951, %v1971
        %v1980 = vadd.bf16 %v1952, %v1972
        %v1981 = vadd.bf16 %v1953, %v1973
        %v1982 = vadd.bf16 %v1954, %v1974
        %v1983 = vunpack.c.l.bf16 %v1979
        %v1984 = vunpack.c.l.bf16 %v1980
        %v1985 = vunpack.c.l.bf16 %v1981
        %v1986 = vunpack.c.l.bf16 %v1982
        %s1987 = sld [smem:[#allocation4 + $0x7]]
        %v1988 = vstv %s1987
        %v1989 = vadd.f32 %v1983, %v1988
        %v1990 = vadd.f32 %v1984, %v1988
        %v1991 = vadd.f32 %v1985, %v1988
        %v1992 = vadd.f32 %v1986, %v1988
        %v1993 = vmax.f32 %v1989, 0.0
        %v1994 = vmax.f32 %v1990, 0.0
        %v1995 = vmax.f32 %v1991, 0.0
        %v1996 = vmax.f32 %v1992, 0.0
        %v1997 = vmin.f32 %v1993, 6.0
        %v1998 = vmin.f32 %v1994, 6.0
        %v1999 = vmin.f32 %v1995, 6.0
        %v2000 = vmin.f32 %v1996, 6.0
        %s2001 = scalar_lea.vmem %s238, 224
        %2002 = vst [vmem:[%s2001] sm:$0xff] %v1997
        %2003 = vst [vmem:[%s2001 + $0x8] sm:$0xff] %v1998
        %2004 = vst [vmem:[%s2001 + $0x10] sm:$0xff] %v1999
        %2005 = vst [vmem:[%s2001 + $0x18] sm:$0xff] %v2000
        %s2006 = sld [smem:[#allocation2 + $0x48]]
        %v2007 = vstv %s2006
        %v2008 = vpack.c.bf16 %v2007, %v2007
        %v2009 = vmul.bf16 %v2008, %v244
        %v2010 = vmul.bf16 %v2008, %v245
        %v2011 = vmul.bf16 %v2008, %v246
        %v2012 = vmul.bf16 %v2008, %v247
        %s2013 = sld [smem:[#allocation2 + $0x49]]
        %v2014 = vstv %s2013
        %v2015 = vpack.c.bf16 %v2014, %v2014
        %v2016 = vmul.bf16 %v2015, %v253
        %v2017 = vmul.bf16 %v2015, %v254
        %v2018 = vmul.bf16 %v2015, %v255
        %v2019 = vmul.bf16 %v2015, %v256
        %s2020 = sld [smem:[#allocation2 + $0x4a]]
        %v2021 = vstv %s2020
        %v2022 = vpack.c.bf16 %v2021, %v2021
        %v2023 = vmul.bf16 %v2022, %v244
        %v2024 = vmul.bf16 %v2022, %v245
        %v2025 = vmul.bf16 %v2022, %v246
        %v2026 = vmul.bf16 %v2022, %v247
        %s2027 = sld [smem:[#allocation2 + $0x4b]]
        %v2028 = vstv %s2027
        %v2029 = vpack.c.bf16 %v2028, %v2028
        %v2030 = vmul.bf16 %v2029, %v262
        %v2031 = vmul.bf16 %v2029, %v263
        %v2032 = vmul.bf16 %v2029, %v264
        %v2033 = vmul.bf16 %v2029, %v265
        %s2034 = sld [smem:[#allocation2 + $0x4c]]
        %v2035 = vstv %s2034
        %v2036 = vpack.c.bf16 %v2035, %v2035
        %v2037 = vmul.bf16 %v2036, %v271
        %v2038 = vmul.bf16 %v2036, %v272
        %v2039 = vmul.bf16 %v2036, %v273
        %v2040 = vmul.bf16 %v2036, %v274
        %s2041 = sld [smem:[#allocation2 + $0x4d]]
        %v2042 = vstv %s2041
        %v2043 = vpack.c.bf16 %v2042, %v2042
        %v2044 = vmul.bf16 %v2043, %v262
        %v2045 = vmul.bf16 %v2043, %v263
        %v2046 = vmul.bf16 %v2043, %v264
        %v2047 = vmul.bf16 %v2043, %v265
        %s2048 = sld [smem:[#allocation2 + $0x4e]]
        %v2049 = vstv %s2048
        %v2050 = vpack.c.bf16 %v2049, %v2049
        %v2051 = vmul.bf16 %v2050, %v280
        %v2052 = vmul.bf16 %v2050, %v281
        %v2053 = vmul.bf16 %v2050, %v282
        %v2054 = vmul.bf16 %v2050, %v283
        %s2055 = sld [smem:[#allocation2 + $0x4f]]
        %v2056 = vstv %s2055
        %v2057 = vpack.c.bf16 %v2056, %v2056
        %v2058 = vmul.bf16 %v2057, %v289
        %v2059 = vmul.bf16 %v2057, %v290
        %v2060 = vmul.bf16 %v2057, %v291
        %v2061 = vmul.bf16 %v2057, %v292
        %s2062 = sld [smem:[#allocation2 + $0x50]]
        %v2063 = vstv %s2062
        %v2064 = vpack.c.bf16 %v2063, %v2063
        %v2065 = vmul.bf16 %v2064, %v280
        %v2066 = vmul.bf16 %v2064, %v281
        %v2067 = vmul.bf16 %v2064, %v282
        %v2068 = vmul.bf16 %v2064, %v283
        %v2069 = vadd.bf16 %v2009, %v2016
        %v2070 = vadd.bf16 %v2010, %v2017
        %v2071 = vadd.bf16 %v2011, %v2018
        %v2072 = vadd.bf16 %v2012, %v2019
        %2077 = vrot.lane.b32.xlu0 %v2030, 1
        %v2078 = vpop.permute.xlu0 %2077
        %2079 = vrot.lane.b32.xlu0 %v2031, 1
        %v2080 = vpop.permute.xlu0 %2079
        %2081 = vrot.lane.b32.xlu0 %v2032, 1
        %v2082 = vpop.permute.xlu0 %2081
        %2083 = vrot.lane.b32.xlu0 %v2033, 1
        %v2084 = vpop.permute.xlu0 %2083
        %v2085 = vrot.slane %v2078, 4
        %v2086 = vrot.slane %v2080, 4
        %v2087 = vrot.slane %v2082, 4
        %v2088 = vrot.slane %v2084, 4
        %v2089 = vsel %vm376, %v2085, %v2078
        %v2090 = vsel %vm376, %v2086, %v2080
        %v2091 = vsel %vm376, %v2087, %v2082
        %v2092 = vsel %vm376, %v2088, %v2084
        %v2097 = vadd.bf16 %v2023, %v2089
        %v2098 = vadd.bf16 %v2024, %v2090
        %v2099 = vadd.bf16 %v2025, %v2091
        %v2100 = vadd.bf16 %v2026, %v2092
        %2105 = vrot.lane.b32.xlu0 %v2044, 127
        %v2106 = vpop.permute.xlu0 %2105
        %2107 = vrot.lane.b32.xlu0 %v2045, 127
        %v2108 = vpop.permute.xlu0 %2107
        %2109 = vrot.lane.b32.xlu0 %v2046, 127
        %v2110 = vpop.permute.xlu0 %2109
        %2111 = vrot.lane.b32.xlu0 %v2047, 127
        %v2112 = vpop.permute.xlu0 %2111
        %v2113 = vrot.slane %v2106, 4
        %v2114 = vrot.slane %v2108, 4
        %v2115 = vrot.slane %v2110, 4
        %v2116 = vrot.slane %v2112, 4
        %v2117 = vsel %vm405, %v2106, %v2113
        %v2118 = vsel %vm405, %v2108, %v2114
        %v2119 = vsel %vm405, %v2110, %v2115
        %v2120 = vsel %vm405, %v2112, %v2116
        %v2125 = vadd.bf16 %v2037, %v2117
        %v2126 = vadd.bf16 %v2038, %v2118
        %v2127 = vadd.bf16 %v2039, %v2119
        %v2128 = vadd.bf16 %v2040, %v2120
        %v2129 = vadd.bf16 %v2051, %v2058
        %v2130 = vadd.bf16 %v2052, %v2059
        %v2131 = vadd.bf16 %v2053, %v2060
        %v2132 = vadd.bf16 %v2054, %v2061
        %2137 = vrot.lane.b32.xlu0 %v2097, 127
        %v2138 = vpop.permute.xlu0 %2137
        %2139 = vrot.lane.b32.xlu0 %v2098, 127
        %v2140 = vpop.permute.xlu0 %2139
        %2141 = vrot.lane.b32.xlu0 %v2099, 127
        %v2142 = vpop.permute.xlu0 %2141
        %2143 = vrot.lane.b32.xlu0 %v2100, 127
        %v2144 = vpop.permute.xlu0 %2143
        %v2145 = vrot.slane %v2138, 4
        %v2146 = vrot.slane %v2140, 4
        %v2147 = vrot.slane %v2142, 4
        %v2148 = vrot.slane %v2144, 4
        %v2149 = vsel %vm405, %v2138, %v2145
        %v2150 = vsel %vm405, %v2140, %v2146
        %v2151 = vsel %vm405, %v2142, %v2147
        %v2152 = vsel %vm405, %v2144, %v2148
        %v2157 = vadd.bf16 %v2069, %v2149
        %v2158 = vadd.bf16 %v2070, %v2150
        %v2159 = vadd.bf16 %v2071, %v2151
        %v2160 = vadd.bf16 %v2072, %v2152
        %v2161 = vadd.bf16 %v2125, %v2129
        %v2162 = vadd.bf16 %v2126, %v2130
        %v2163 = vadd.bf16 %v2127, %v2131
        %v2164 = vadd.bf16 %v2128, %v2132
        %v2165 = vadd.bf16 %v2157, %v2161
        %v2166 = vadd.bf16 %v2158, %v2162
        %v2167 = vadd.bf16 %v2159, %v2163
        %v2168 = vadd.bf16 %v2160, %v2164
        %2173 = vrot.lane.b32.xlu0 %v2065, 127
        %v2174 = vpop.permute.xlu0 %2173
        %2175 = vrot.lane.b32.xlu0 %v2066, 127
        %v2176 = vpop.permute.xlu0 %2175
        %2177 = vrot.lane.b32.xlu0 %v2067, 127
        %v2178 = vpop.permute.xlu0 %2177
        %2179 = vrot.lane.b32.xlu0 %v2068, 127
        %v2180 = vpop.permute.xlu0 %2179
        %v2181 = vrot.slane %v2174, 4
        %v2182 = vrot.slane %v2176, 4
        %v2183 = vrot.slane %v2178, 4
        %v2184 = vrot.slane %v2180, 4
        %v2185 = vsel %vm405, %v2174, %v2181
        %v2186 = vsel %vm405, %v2176, %v2182
        %v2187 = vsel %vm405, %v2178, %v2183
        %v2188 = vsel %vm405, %v2180, %v2184
        %v2193 = vadd.bf16 %v2165, %v2185
        %v2194 = vadd.bf16 %v2166, %v2186
        %v2195 = vadd.bf16 %v2167, %v2187
        %v2196 = vadd.bf16 %v2168, %v2188
        %v2197 = vunpack.c.l.bf16 %v2193
        %v2198 = vunpack.c.l.bf16 %v2194
        %v2199 = vunpack.c.l.bf16 %v2195
        %v2200 = vunpack.c.l.bf16 %v2196
        %s2201 = sld [smem:[#allocation4 + $0x8]]
        %v2202 = vstv %s2201
        %v2203 = vadd.f32 %v2197, %v2202
        %v2204 = vadd.f32 %v2198, %v2202
        %v2205 = vadd.f32 %v2199, %v2202
        %v2206 = vadd.f32 %v2200, %v2202
        %v2207 = vmax.f32 %v2203, 0.0
        %v2208 = vmax.f32 %v2204, 0.0
        %v2209 = vmax.f32 %v2205, 0.0
        %v2210 = vmax.f32 %v2206, 0.0
        %v2211 = vmin.f32 %v2207, 6.0
        %v2212 = vmin.f32 %v2208, 6.0
        %v2213 = vmin.f32 %v2209, 6.0
        %v2214 = vmin.f32 %v2210, 6.0
        %s2215 = scalar_lea.vmem %s238, 256
        %2216 = vst [vmem:[%s2215] sm:$0xff] %v2211
        %2217 = vst [vmem:[%s2215 + $0x8] sm:$0xff] %v2212
        %2218 = vst [vmem:[%s2215 + $0x10] sm:$0xff] %v2213
        %2219 = vst [vmem:[%s2215 + $0x18] sm:$0xff] %v2214
        %s2220 = sld [smem:[#allocation2 + $0x51]]
        %v2221 = vstv %s2220
        %v2222 = vpack.c.bf16 %v2221, %v2221
        %v2223 = vmul.bf16 %v2222, %v244
        %v2224 = vmul.bf16 %v2222, %v245
        %v2225 = vmul.bf16 %v2222, %v246
        %v2226 = vmul.bf16 %v2222, %v247
        %s2227 = sld [smem:[#allocation2 + $0x52]]
        %v2228 = vstv %s2227
        %v2229 = vpack.c.bf16 %v2228, %v2228
        %v2230 = vmul.bf16 %v2229, %v253
        %v2231 = vmul.bf16 %v2229, %v254
        %v2232 = vmul.bf16 %v2229, %v255
        %v2233 = vmul.bf16 %v2229, %v256
        %s2234 = sld [smem:[#allocation2 + $0x53]]
        %v2235 = vstv %s2234
        %v2236 = vpack.c.bf16 %v2235, %v2235
        %v2237 = vmul.bf16 %v2236, %v244
        %v2238 = vmul.bf16 %v2236, %v245
        %v2239 = vmul.bf16 %v2236, %v246
        %v2240 = vmul.bf16 %v2236, %v247
        %s2241 = sld [smem:[#allocation2 + $0x54]]
        %v2242 = vstv %s2241
        %v2243 = vpack.c.bf16 %v2242, %v2242
        %v2244 = vmul.bf16 %v2243, %v262
        %v2245 = vmul.bf16 %v2243, %v263
        %v2246 = vmul.bf16 %v2243, %v264
        %v2247 = vmul.bf16 %v2243, %v265
        %s2248 = sld [smem:[#allocation2 + $0x55]]
        %v2249 = vstv %s2248
        %v2250 = vpack.c.bf16 %v2249, %v2249
        %v2251 = vmul.bf16 %v2250, %v271
        %v2252 = vmul.bf16 %v2250, %v272
        %v2253 = vmul.bf16 %v2250, %v273
        %v2254 = vmul.bf16 %v2250, %v274
        %s2255 = sld [smem:[#allocation2 + $0x56]]
        %v2256 = vstv %s2255
        %v2257 = vpack.c.bf16 %v2256, %v2256
        %v2258 = vmul.bf16 %v2257, %v262
        %v2259 = vmul.bf16 %v2257, %v263
        %v2260 = vmul.bf16 %v2257, %v264
        %v2261 = vmul.bf16 %v2257, %v265
        %s2262 = sld [smem:[#allocation2 + $0x57]]
        %v2263 = vstv %s2262
        %v2264 = vpack.c.bf16 %v2263, %v2263
        %v2265 = vmul.bf16 %v2264, %v280
        %v2266 = vmul.bf16 %v2264, %v281
        %v2267 = vmul.bf16 %v2264, %v282
        %v2268 = vmul.bf16 %v2264, %v283
        %s2269 = sld [smem:[#allocation2 + $0x58]]
        %v2270 = vstv %s2269
        %v2271 = vpack.c.bf16 %v2270, %v2270
        %v2272 = vmul.bf16 %v2271, %v289
        %v2273 = vmul.bf16 %v2271, %v290
        %v2274 = vmul.bf16 %v2271, %v291
        %v2275 = vmul.bf16 %v2271, %v292
        %s2276 = sld [smem:[#allocation2 + $0x59]]
        %v2277 = vstv %s2276
        %v2278 = vpack.c.bf16 %v2277, %v2277
        %v2279 = vmul.bf16 %v2278, %v280
        %v2280 = vmul.bf16 %v2278, %v281
        %v2281 = vmul.bf16 %v2278, %v282
        %v2282 = vmul.bf16 %v2278, %v283
        %v2283 = vadd.bf16 %v2223, %v2230
        %v2284 = vadd.bf16 %v2224, %v2231
        %v2285 = vadd.bf16 %v2225, %v2232
        %v2286 = vadd.bf16 %v2226, %v2233
        %2291 = vrot.lane.b32.xlu0 %v2244, 1
        %v2292 = vpop.permute.xlu0 %2291
        %2293 = vrot.lane.b32.xlu0 %v2245, 1
        %v2294 = vpop.permute.xlu0 %2293
        %2295 = vrot.lane.b32.xlu0 %v2246, 1
        %v2296 = vpop.permute.xlu0 %2295
        %2297 = vrot.lane.b32.xlu0 %v2247, 1
        %v2298 = vpop.permute.xlu0 %2297
        %v2299 = vrot.slane %v2292, 4
        %v2300 = vrot.slane %v2294, 4
        %v2301 = vrot.slane %v2296, 4
        %v2302 = vrot.slane %v2298, 4
        %v2303 = vsel %vm376, %v2299, %v2292
        %v2304 = vsel %vm376, %v2300, %v2294
        %v2305 = vsel %vm376, %v2301, %v2296
        %v2306 = vsel %vm376, %v2302, %v2298
        %v2311 = vadd.bf16 %v2237, %v2303
        %v2312 = vadd.bf16 %v2238, %v2304
        %v2313 = vadd.bf16 %v2239, %v2305
        %v2314 = vadd.bf16 %v2240, %v2306
        %2319 = vrot.lane.b32.xlu0 %v2258, 127
        %v2320 = vpop.permute.xlu0 %2319
        %2321 = vrot.lane.b32.xlu0 %v2259, 127
        %v2322 = vpop.permute.xlu0 %2321
        %2323 = vrot.lane.b32.xlu0 %v2260, 127
        %v2324 = vpop.permute.xlu0 %2323
        %2325 = vrot.lane.b32.xlu0 %v2261, 127
        %v2326 = vpop.permute.xlu0 %2325
        %v2327 = vrot.slane %v2320, 4
        %v2328 = vrot.slane %v2322, 4
        %v2329 = vrot.slane %v2324, 4
        %v2330 = vrot.slane %v2326, 4
        %v2331 = vsel %vm405, %v2320, %v2327
        %v2332 = vsel %vm405, %v2322, %v2328
        %v2333 = vsel %vm405, %v2324, %v2329
        %v2334 = vsel %vm405, %v2326, %v2330
        %v2339 = vadd.bf16 %v2251, %v2331
        %v2340 = vadd.bf16 %v2252, %v2332
        %v2341 = vadd.bf16 %v2253, %v2333
        %v2342 = vadd.bf16 %v2254, %v2334
        %v2343 = vadd.bf16 %v2265, %v2272
        %v2344 = vadd.bf16 %v2266, %v2273
        %v2345 = vadd.bf16 %v2267, %v2274
        %v2346 = vadd.bf16 %v2268, %v2275
        %2351 = vrot.lane.b32.xlu0 %v2311, 127
        %v2352 = vpop.permute.xlu0 %2351
        %2353 = vrot.lane.b32.xlu0 %v2312, 127
        %v2354 = vpop.permute.xlu0 %2353
        %2355 = vrot.lane.b32.xlu0 %v2313, 127
        %v2356 = vpop.permute.xlu0 %2355
        %2357 = vrot.lane.b32.xlu0 %v2314, 127
        %v2358 = vpop.permute.xlu0 %2357
        %v2359 = vrot.slane %v2352, 4
        %v2360 = vrot.slane %v2354, 4
        %v2361 = vrot.slane %v2356, 4
        %v2362 = vrot.slane %v2358, 4
        %v2363 = vsel %vm405, %v2352, %v2359
        %v2364 = vsel %vm405, %v2354, %v2360
        %v2365 = vsel %vm405, %v2356, %v2361
        %v2366 = vsel %vm405, %v2358, %v2362
        %v2371 = vadd.bf16 %v2283, %v2363
        %v2372 = vadd.bf16 %v2284, %v2364
        %v2373 = vadd.bf16 %v2285, %v2365
        %v2374 = vadd.bf16 %v2286, %v2366
        %v2375 = vadd.bf16 %v2339, %v2343
        %v2376 = vadd.bf16 %v2340, %v2344
        %v2377 = vadd.bf16 %v2341, %v2345
        %v2378 = vadd.bf16 %v2342, %v2346
        %v2379 = vadd.bf16 %v2371, %v2375
        %v2380 = vadd.bf16 %v2372, %v2376
        %v2381 = vadd.bf16 %v2373, %v2377
        %v2382 = vadd.bf16 %v2374, %v2378
        %2387 = vrot.lane.b32.xlu0 %v2279, 127
        %v2388 = vpop.permute.xlu0 %2387
        %2389 = vrot.lane.b32.xlu0 %v2280, 127
        %v2390 = vpop.permute.xlu0 %2389
        %2391 = vrot.lane.b32.xlu0 %v2281, 127
        %v2392 = vpop.permute.xlu0 %2391
        %2393 = vrot.lane.b32.xlu0 %v2282, 127
        %v2394 = vpop.permute.xlu0 %2393
        %v2395 = vrot.slane %v2388, 4
        %v2396 = vrot.slane %v2390, 4
        %v2397 = vrot.slane %v2392, 4
        %v2398 = vrot.slane %v2394, 4
        %v2399 = vsel %vm405, %v2388, %v2395
        %v2400 = vsel %vm405, %v2390, %v2396
        %v2401 = vsel %vm405, %v2392, %v2397
        %v2402 = vsel %vm405, %v2394, %v2398
        %v2407 = vadd.bf16 %v2379, %v2399
        %v2408 = vadd.bf16 %v2380, %v2400
        %v2409 = vadd.bf16 %v2381, %v2401
        %v2410 = vadd.bf16 %v2382, %v2402
        %v2411 = vunpack.c.l.bf16 %v2407
        %v2412 = vunpack.c.l.bf16 %v2408
        %v2413 = vunpack.c.l.bf16 %v2409
        %v2414 = vunpack.c.l.bf16 %v2410
        %s2415 = sld [smem:[#allocation4 + $0x9]]
        %v2416 = vstv %s2415
        %v2417 = vadd.f32 %v2411, %v2416
        %v2418 = vadd.f32 %v2412, %v2416
        %v2419 = vadd.f32 %v2413, %v2416
        %v2420 = vadd.f32 %v2414, %v2416
        %v2421 = vmax.f32 %v2417, 0.0
        %v2422 = vmax.f32 %v2418, 0.0
        %v2423 = vmax.f32 %v2419, 0.0
        %v2424 = vmax.f32 %v2420, 0.0
        %v2425 = vmin.f32 %v2421, 6.0
        %v2426 = vmin.f32 %v2422, 6.0
        %v2427 = vmin.f32 %v2423, 6.0
        %v2428 = vmin.f32 %v2424, 6.0
        %s2429 = scalar_lea.vmem %s238, 288
        %2430 = vst [vmem:[%s2429] sm:$0xff] %v2425
        %2431 = vst [vmem:[%s2429 + $0x8] sm:$0xff] %v2426
        %2432 = vst [vmem:[%s2429 + $0x10] sm:$0xff] %v2427
        %2433 = vst [vmem:[%s2429 + $0x18] sm:$0xff] %v2428
        %s2434 = sld [smem:[#allocation2 + $0x5a]]
        %v2435 = vstv %s2434
        %v2436 = vpack.c.bf16 %v2435, %v2435
        %v2437 = vmul.bf16 %v2436, %v244
        %v2438 = vmul.bf16 %v2436, %v245
        %v2439 = vmul.bf16 %v2436, %v246
        %v2440 = vmul.bf16 %v2436, %v247
        %s2441 = sld [smem:[#allocation2 + $0x5b]]
        %v2442 = vstv %s2441
        %v2443 = vpack.c.bf16 %v2442, %v2442
        %v2444 = vmul.bf16 %v2443, %v253
        %v2445 = vmul.bf16 %v2443, %v254
        %v2446 = vmul.bf16 %v2443, %v255
        %v2447 = vmul.bf16 %v2443, %v256
        %s2448 = sld [smem:[#allocation2 + $0x5c]]
        %v2449 = vstv %s2448
        %v2450 = vpack.c.bf16 %v2449, %v2449
        %v2451 = vmul.bf16 %v2450, %v244
        %v2452 = vmul.bf16 %v2450, %v245
        %v2453 = vmul.bf16 %v2450, %v246
        %v2454 = vmul.bf16 %v2450, %v247
        %s2455 = sld [smem:[#allocation2 + $0x5d]]
        %v2456 = vstv %s2455
        %v2457 = vpack.c.bf16 %v2456, %v2456
        %v2458 = vmul.bf16 %v2457, %v262
        %v2459 = vmul.bf16 %v2457, %v263
        %v2460 = vmul.bf16 %v2457, %v264
        %v2461 = vmul.bf16 %v2457, %v265
        %s2462 = sld [smem:[#allocation2 + $0x5e]]
        %v2463 = vstv %s2462
        %v2464 = vpack.c.bf16 %v2463, %v2463
        %v2465 = vmul.bf16 %v2464, %v271
        %v2466 = vmul.bf16 %v2464, %v272
        %v2467 = vmul.bf16 %v2464, %v273
        %v2468 = vmul.bf16 %v2464, %v274
        %s2469 = sld [smem:[#allocation2 + $0x5f]]
        %v2470 = vstv %s2469
        %v2471 = vpack.c.bf16 %v2470, %v2470
        %v2472 = vmul.bf16 %v2471, %v262
        %v2473 = vmul.bf16 %v2471, %v263
        %v2474 = vmul.bf16 %v2471, %v264
        %v2475 = vmul.bf16 %v2471, %v265
        %s2476 = sld [smem:[#allocation2 + $0x60]]
        %v2477 = vstv %s2476
        %v2478 = vpack.c.bf16 %v2477, %v2477
        %v2479 = vmul.bf16 %v2478, %v280
        %v2480 = vmul.bf16 %v2478, %v281
        %v2481 = vmul.bf16 %v2478, %v282
        %v2482 = vmul.bf16 %v2478, %v283
        %s2483 = sld [smem:[#allocation2 + $0x61]]
        %v2484 = vstv %s2483
        %v2485 = vpack.c.bf16 %v2484, %v2484
        %v2486 = vmul.bf16 %v2485, %v289
        %v2487 = vmul.bf16 %v2485, %v290
        %v2488 = vmul.bf16 %v2485, %v291
        %v2489 = vmul.bf16 %v2485, %v292
        %s2490 = sld [smem:[#allocation2 + $0x62]]
        %v2491 = vstv %s2490
        %v2492 = vpack.c.bf16 %v2491, %v2491
        %v2493 = vmul.bf16 %v2492, %v280
        %v2494 = vmul.bf16 %v2492, %v281
        %v2495 = vmul.bf16 %v2492, %v282
        %v2496 = vmul.bf16 %v2492, %v283
        %v2497 = vadd.bf16 %v2437, %v2444
        %v2498 = vadd.bf16 %v2438, %v2445
        %v2499 = vadd.bf16 %v2439, %v2446
        %v2500 = vadd.bf16 %v2440, %v2447
        %2505 = vrot.lane.b32.xlu0 %v2458, 1
        %v2506 = vpop.permute.xlu0 %2505
        %2507 = vrot.lane.b32.xlu0 %v2459, 1
        %v2508 = vpop.permute.xlu0 %2507
        %2509 = vrot.lane.b32.xlu0 %v2460, 1
        %v2510 = vpop.permute.xlu0 %2509
        %2511 = vrot.lane.b32.xlu0 %v2461, 1
        %v2512 = vpop.permute.xlu0 %2511
        %v2513 = vrot.slane %v2506, 4
        %v2514 = vrot.slane %v2508, 4
        %v2515 = vrot.slane %v2510, 4
        %v2516 = vrot.slane %v2512, 4
        %v2517 = vsel %vm376, %v2513, %v2506
        %v2518 = vsel %vm376, %v2514, %v2508
        %v2519 = vsel %vm376, %v2515, %v2510
        %v2520 = vsel %vm376, %v2516, %v2512
        %v2525 = vadd.bf16 %v2451, %v2517
        %v2526 = vadd.bf16 %v2452, %v2518
        %v2527 = vadd.bf16 %v2453, %v2519
        %v2528 = vadd.bf16 %v2454, %v2520
        %2533 = vrot.lane.b32.xlu0 %v2472, 127
        %v2534 = vpop.permute.xlu0 %2533
        %2535 = vrot.lane.b32.xlu0 %v2473, 127
        %v2536 = vpop.permute.xlu0 %2535
        %2537 = vrot.lane.b32.xlu0 %v2474, 127
        %v2538 = vpop.permute.xlu0 %2537
        %2539 = vrot.lane.b32.xlu0 %v2475, 127
        %v2540 = vpop.permute.xlu0 %2539
        %v2541 = vrot.slane %v2534, 4
        %v2542 = vrot.slane %v2536, 4
        %v2543 = vrot.slane %v2538, 4
        %v2544 = vrot.slane %v2540, 4
        %v2545 = vsel %vm405, %v2534, %v2541
        %v2546 = vsel %vm405, %v2536, %v2542
        %v2547 = vsel %vm405, %v2538, %v2543
        %v2548 = vsel %vm405, %v2540, %v2544
        %v2553 = vadd.bf16 %v2465, %v2545
        %v2554 = vadd.bf16 %v2466, %v2546
        %v2555 = vadd.bf16 %v2467, %v2547
        %v2556 = vadd.bf16 %v2468, %v2548
        %v2557 = vadd.bf16 %v2479, %v2486
        %v2558 = vadd.bf16 %v2480, %v2487
        %v2559 = vadd.bf16 %v2481, %v2488
        %v2560 = vadd.bf16 %v2482, %v2489
        %2565 = vrot.lane.b32.xlu0 %v2525, 127
        %v2566 = vpop.permute.xlu0 %2565
        %2567 = vrot.lane.b32.xlu0 %v2526, 127
        %v2568 = vpop.permute.xlu0 %2567
        %2569 = vrot.lane.b32.xlu0 %v2527, 127
        %v2570 = vpop.permute.xlu0 %2569
        %2571 = vrot.lane.b32.xlu0 %v2528, 127
        %v2572 = vpop.permute.xlu0 %2571
        %v2573 = vrot.slane %v2566, 4
        %v2574 = vrot.slane %v2568, 4
        %v2575 = vrot.slane %v2570, 4
        %v2576 = vrot.slane %v2572, 4
        %v2577 = vsel %vm405, %v2566, %v2573
        %v2578 = vsel %vm405, %v2568, %v2574
        %v2579 = vsel %vm405, %v2570, %v2575
        %v2580 = vsel %vm405, %v2572, %v2576
        %v2585 = vadd.bf16 %v2497, %v2577
        %v2586 = vadd.bf16 %v2498, %v2578
        %v2587 = vadd.bf16 %v2499, %v2579
        %v2588 = vadd.bf16 %v2500, %v2580
        %v2589 = vadd.bf16 %v2553, %v2557
        %v2590 = vadd.bf16 %v2554, %v2558
        %v2591 = vadd.bf16 %v2555, %v2559
        %v2592 = vadd.bf16 %v2556, %v2560
        %v2593 = vadd.bf16 %v2585, %v2589
        %v2594 = vadd.bf16 %v2586, %v2590
        %v2595 = vadd.bf16 %v2587, %v2591
        %v2596 = vadd.bf16 %v2588, %v2592
        %2601 = vrot.lane.b32.xlu0 %v2493, 127
        %v2602 = vpop.permute.xlu0 %2601
        %2603 = vrot.lane.b32.xlu0 %v2494, 127
        %v2604 = vpop.permute.xlu0 %2603
        %2605 = vrot.lane.b32.xlu0 %v2495, 127
        %v2606 = vpop.permute.xlu0 %2605
        %2607 = vrot.lane.b32.xlu0 %v2496, 127
        %v2608 = vpop.permute.xlu0 %2607
        %v2609 = vrot.slane %v2602, 4
        %v2610 = vrot.slane %v2604, 4
        %v2611 = vrot.slane %v2606, 4
        %v2612 = vrot.slane %v2608, 4
        %v2613 = vsel %vm405, %v2602, %v2609
        %v2614 = vsel %vm405, %v2604, %v2610
        %v2615 = vsel %vm405, %v2606, %v2611
        %v2616 = vsel %vm405, %v2608, %v2612
        %v2621 = vadd.bf16 %v2593, %v2613
        %v2622 = vadd.bf16 %v2594, %v2614
        %v2623 = vadd.bf16 %v2595, %v2615
        %v2624 = vadd.bf16 %v2596, %v2616
        %v2625 = vunpack.c.l.bf16 %v2621
        %v2626 = vunpack.c.l.bf16 %v2622
        %v2627 = vunpack.c.l.bf16 %v2623
        %v2628 = vunpack.c.l.bf16 %v2624
        %s2629 = sld [smem:[#allocation4 + $0xa]]
        %v2630 = vstv %s2629
        %v2631 = vadd.f32 %v2625, %v2630
        %v2632 = vadd.f32 %v2626, %v2630
        %v2633 = vadd.f32 %v2627, %v2630
        %v2634 = vadd.f32 %v2628, %v2630
        %v2635 = vmax.f32 %v2631, 0.0
        %v2636 = vmax.f32 %v2632, 0.0
        %v2637 = vmax.f32 %v2633, 0.0
        %v2638 = vmax.f32 %v2634, 0.0
        %v2639 = vmin.f32 %v2635, 6.0
        %v2640 = vmin.f32 %v2636, 6.0
        %v2641 = vmin.f32 %v2637, 6.0
        %v2642 = vmin.f32 %v2638, 6.0
        %s2643 = scalar_lea.vmem %s238, 320
        %2644 = vst [vmem:[%s2643] sm:$0xff] %v2639
        %2645 = vst [vmem:[%s2643 + $0x8] sm:$0xff] %v2640
        %2646 = vst [vmem:[%s2643 + $0x10] sm:$0xff] %v2641
        %2647 = vst [vmem:[%s2643 + $0x18] sm:$0xff] %v2642
        %s2648 = sld [smem:[#allocation2 + $0x63]]
        %v2649 = vstv %s2648
        %v2650 = vpack.c.bf16 %v2649, %v2649
        %v2651 = vmul.bf16 %v2650, %v244
        %v2652 = vmul.bf16 %v2650, %v245
        %v2653 = vmul.bf16 %v2650, %v246
        %v2654 = vmul.bf16 %v2650, %v247
        %s2655 = sld [smem:[#allocation2 + $0x64]]
        %v2656 = vstv %s2655
        %v2657 = vpack.c.bf16 %v2656, %v2656
        %v2658 = vmul.bf16 %v2657, %v253
        %v2659 = vmul.bf16 %v2657, %v254
        %v2660 = vmul.bf16 %v2657, %v255
        %v2661 = vmul.bf16 %v2657, %v256
        %s2662 = sld [smem:[#allocation2 + $0x65]]
        %v2663 = vstv %s2662
        %v2664 = vpack.c.bf16 %v2663, %v2663
        %v2665 = vmul.bf16 %v2664, %v244
        %v2666 = vmul.bf16 %v2664, %v245
        %v2667 = vmul.bf16 %v2664, %v246
        %v2668 = vmul.bf16 %v2664, %v247
        %s2669 = sld [smem:[#allocation2 + $0x66]]
        %v2670 = vstv %s2669
        %v2671 = vpack.c.bf16 %v2670, %v2670
        %v2672 = vmul.bf16 %v2671, %v262
        %v2673 = vmul.bf16 %v2671, %v263
        %v2674 = vmul.bf16 %v2671, %v264
        %v2675 = vmul.bf16 %v2671, %v265
        %s2676 = sld [smem:[#allocation2 + $0x67]]
        %v2677 = vstv %s2676
        %v2678 = vpack.c.bf16 %v2677, %v2677
        %v2679 = vmul.bf16 %v2678, %v271
        %v2680 = vmul.bf16 %v2678, %v272
        %v2681 = vmul.bf16 %v2678, %v273
        %v2682 = vmul.bf16 %v2678, %v274
        %s2683 = sld [smem:[#allocation2 + $0x68]]
        %v2684 = vstv %s2683
        %v2685 = vpack.c.bf16 %v2684, %v2684
        %v2686 = vmul.bf16 %v2685, %v262
        %v2687 = vmul.bf16 %v2685, %v263
        %v2688 = vmul.bf16 %v2685, %v264
        %v2689 = vmul.bf16 %v2685, %v265
        %s2690 = sld [smem:[#allocation2 + $0x69]]
        %v2691 = vstv %s2690
        %v2692 = vpack.c.bf16 %v2691, %v2691
        %v2693 = vmul.bf16 %v2692, %v280
        %v2694 = vmul.bf16 %v2692, %v281
        %v2695 = vmul.bf16 %v2692, %v282
        %v2696 = vmul.bf16 %v2692, %v283
        %s2697 = sld [smem:[#allocation2 + $0x6a]]
        %v2698 = vstv %s2697
        %v2699 = vpack.c.bf16 %v2698, %v2698
        %v2700 = vmul.bf16 %v2699, %v289
        %v2701 = vmul.bf16 %v2699, %v290
        %v2702 = vmul.bf16 %v2699, %v291
        %v2703 = vmul.bf16 %v2699, %v292
        %s2704 = sld [smem:[#allocation2 + $0x6b]]
        %v2705 = vstv %s2704
        %v2706 = vpack.c.bf16 %v2705, %v2705
        %v2707 = vmul.bf16 %v2706, %v280
        %v2708 = vmul.bf16 %v2706, %v281
        %v2709 = vmul.bf16 %v2706, %v282
        %v2710 = vmul.bf16 %v2706, %v283
        %v2711 = vadd.bf16 %v2651, %v2658
        %v2712 = vadd.bf16 %v2652, %v2659
        %v2713 = vadd.bf16 %v2653, %v2660
        %v2714 = vadd.bf16 %v2654, %v2661
        %2719 = vrot.lane.b32.xlu0 %v2672, 1
        %v2720 = vpop.permute.xlu0 %2719
        %2721 = vrot.lane.b32.xlu0 %v2673, 1
        %v2722 = vpop.permute.xlu0 %2721
        %2723 = vrot.lane.b32.xlu0 %v2674, 1
        %v2724 = vpop.permute.xlu0 %2723
        %2725 = vrot.lane.b32.xlu0 %v2675, 1
        %v2726 = vpop.permute.xlu0 %2725
        %v2727 = vrot.slane %v2720, 4
        %v2728 = vrot.slane %v2722, 4
        %v2729 = vrot.slane %v2724, 4
        %v2730 = vrot.slane %v2726, 4
        %v2731 = vsel %vm376, %v2727, %v2720
        %v2732 = vsel %vm376, %v2728, %v2722
        %v2733 = vsel %vm376, %v2729, %v2724
        %v2734 = vsel %vm376, %v2730, %v2726
        %v2739 = vadd.bf16 %v2665, %v2731
        %v2740 = vadd.bf16 %v2666, %v2732
        %v2741 = vadd.bf16 %v2667, %v2733
        %v2742 = vadd.bf16 %v2668, %v2734
        %2747 = vrot.lane.b32.xlu0 %v2686, 127
        %v2748 = vpop.permute.xlu0 %2747
        %2749 = vrot.lane.b32.xlu0 %v2687, 127
        %v2750 = vpop.permute.xlu0 %2749
        %2751 = vrot.lane.b32.xlu0 %v2688, 127
        %v2752 = vpop.permute.xlu0 %2751
        %2753 = vrot.lane.b32.xlu0 %v2689, 127
        %v2754 = vpop.permute.xlu0 %2753
        %v2755 = vrot.slane %v2748, 4
        %v2756 = vrot.slane %v2750, 4
        %v2757 = vrot.slane %v2752, 4
        %v2758 = vrot.slane %v2754, 4
        %v2759 = vsel %vm405, %v2748, %v2755
        %v2760 = vsel %vm405, %v2750, %v2756
        %v2761 = vsel %vm405, %v2752, %v2757
        %v2762 = vsel %vm405, %v2754, %v2758
        %v2767 = vadd.bf16 %v2679, %v2759
        %v2768 = vadd.bf16 %v2680, %v2760
        %v2769 = vadd.bf16 %v2681, %v2761
        %v2770 = vadd.bf16 %v2682, %v2762
        %v2771 = vadd.bf16 %v2693, %v2700
        %v2772 = vadd.bf16 %v2694, %v2701
        %v2773 = vadd.bf16 %v2695, %v2702
        %v2774 = vadd.bf16 %v2696, %v2703
        %2779 = vrot.lane.b32.xlu0 %v2739, 127
        %v2780 = vpop.permute.xlu0 %2779
        %2781 = vrot.lane.b32.xlu0 %v2740, 127
        %v2782 = vpop.permute.xlu0 %2781
        %2783 = vrot.lane.b32.xlu0 %v2741, 127
        %v2784 = vpop.permute.xlu0 %2783
        %2785 = vrot.lane.b32.xlu0 %v2742, 127
        %v2786 = vpop.permute.xlu0 %2785
        %v2787 = vrot.slane %v2780, 4
        %v2788 = vrot.slane %v2782, 4
        %v2789 = vrot.slane %v2784, 4
        %v2790 = vrot.slane %v2786, 4
        %v2791 = vsel %vm405, %v2780, %v2787
        %v2792 = vsel %vm405, %v2782, %v2788
        %v2793 = vsel %vm405, %v2784, %v2789
        %v2794 = vsel %vm405, %v2786, %v2790
        %v2799 = vadd.bf16 %v2711, %v2791
        %v2800 = vadd.bf16 %v2712, %v2792
        %v2801 = vadd.bf16 %v2713, %v2793
        %v2802 = vadd.bf16 %v2714, %v2794
        %v2803 = vadd.bf16 %v2767, %v2771
        %v2804 = vadd.bf16 %v2768, %v2772
        %v2805 = vadd.bf16 %v2769, %v2773
        %v2806 = vadd.bf16 %v2770, %v2774
        %v2807 = vadd.bf16 %v2799, %v2803
        %v2808 = vadd.bf16 %v2800, %v2804
        %v2809 = vadd.bf16 %v2801, %v2805
        %v2810 = vadd.bf16 %v2802, %v2806
        %2815 = vrot.lane.b32.xlu0 %v2707, 127
        %v2816 = vpop.permute.xlu0 %2815
        %2817 = vrot.lane.b32.xlu0 %v2708, 127
        %v2818 = vpop.permute.xlu0 %2817
        %2819 = vrot.lane.b32.xlu0 %v2709, 127
        %v2820 = vpop.permute.xlu0 %2819
        %2821 = vrot.lane.b32.xlu0 %v2710, 127
        %v2822 = vpop.permute.xlu0 %2821
        %v2823 = vrot.slane %v2816, 4
        %v2824 = vrot.slane %v2818, 4
        %v2825 = vrot.slane %v2820, 4
        %v2826 = vrot.slane %v2822, 4
        %v2827 = vsel %vm405, %v2816, %v2823
        %v2828 = vsel %vm405, %v2818, %v2824
        %v2829 = vsel %vm405, %v2820, %v2825
        %v2830 = vsel %vm405, %v2822, %v2826
        %v2835 = vadd.bf16 %v2807, %v2827
        %v2836 = vadd.bf16 %v2808, %v2828
        %v2837 = vadd.bf16 %v2809, %v2829
        %v2838 = vadd.bf16 %v2810, %v2830
        %v2839 = vunpack.c.l.bf16 %v2835
        %v2840 = vunpack.c.l.bf16 %v2836
        %v2841 = vunpack.c.l.bf16 %v2837
        %v2842 = vunpack.c.l.bf16 %v2838
        %s2843 = sld [smem:[#allocation4 + $0xb]]
        %v2844 = vstv %s2843
        %v2845 = vadd.f32 %v2839, %v2844
        %v2846 = vadd.f32 %v2840, %v2844
        %v2847 = vadd.f32 %v2841, %v2844
        %v2848 = vadd.f32 %v2842, %v2844
        %v2849 = vmax.f32 %v2845, 0.0
        %v2850 = vmax.f32 %v2846, 0.0
        %v2851 = vmax.f32 %v2847, 0.0
        %v2852 = vmax.f32 %v2848, 0.0
        %v2853 = vmin.f32 %v2849, 6.0
        %v2854 = vmin.f32 %v2850, 6.0
        %v2855 = vmin.f32 %v2851, 6.0
        %v2856 = vmin.f32 %v2852, 6.0
        %s2857 = scalar_lea.vmem %s238, 352
        %2858 = vst [vmem:[%s2857] sm:$0xff] %v2853
        %2859 = vst [vmem:[%s2857 + $0x8] sm:$0xff] %v2854
        %2860 = vst [vmem:[%s2857 + $0x10] sm:$0xff] %v2855
        %2861 = vst [vmem:[%s2857 + $0x18] sm:$0xff] %v2856
        %s2862 = sld [smem:[#allocation2 + $0x6c]]
        %v2863 = vstv %s2862
        %v2864 = vpack.c.bf16 %v2863, %v2863
        %v2865 = vmul.bf16 %v2864, %v244
        %v2866 = vmul.bf16 %v2864, %v245
        %v2867 = vmul.bf16 %v2864, %v246
        %v2868 = vmul.bf16 %v2864, %v247
        %s2869 = sld [smem:[#allocation2 + $0x6d]]
        %v2870 = vstv %s2869
        %v2871 = vpack.c.bf16 %v2870, %v2870
        %v2872 = vmul.bf16 %v2871, %v253
        %v2873 = vmul.bf16 %v2871, %v254
        %v2874 = vmul.bf16 %v2871, %v255
        %v2875 = vmul.bf16 %v2871, %v256
        %s2876 = sld [smem:[#allocation2 + $0x6e]]
        %v2877 = vstv %s2876
        %v2878 = vpack.c.bf16 %v2877, %v2877
        %v2879 = vmul.bf16 %v2878, %v244
        %v2880 = vmul.bf16 %v2878, %v245
        %v2881 = vmul.bf16 %v2878, %v246
        %v2882 = vmul.bf16 %v2878, %v247
        %s2883 = sld [smem:[#allocation2 + $0x6f]]
        %v2884 = vstv %s2883
        %v2885 = vpack.c.bf16 %v2884, %v2884
        %v2886 = vmul.bf16 %v2885, %v262
        %v2887 = vmul.bf16 %v2885, %v263
        %v2888 = vmul.bf16 %v2885, %v264
        %v2889 = vmul.bf16 %v2885, %v265
        %s2890 = sld [smem:[#allocation2 + $0x70]]
        %v2891 = vstv %s2890
        %v2892 = vpack.c.bf16 %v2891, %v2891
        %v2893 = vmul.bf16 %v2892, %v271
        %v2894 = vmul.bf16 %v2892, %v272
        %v2895 = vmul.bf16 %v2892, %v273
        %v2896 = vmul.bf16 %v2892, %v274
        %s2897 = sld [smem:[#allocation2 + $0x71]]
        %v2898 = vstv %s2897
        %v2899 = vpack.c.bf16 %v2898, %v2898
        %v2900 = vmul.bf16 %v2899, %v262
        %v2901 = vmul.bf16 %v2899, %v263
        %v2902 = vmul.bf16 %v2899, %v264
        %v2903 = vmul.bf16 %v2899, %v265
        %s2904 = sld [smem:[#allocation2 + $0x72]]
        %v2905 = vstv %s2904
        %v2906 = vpack.c.bf16 %v2905, %v2905
        %v2907 = vmul.bf16 %v2906, %v280
        %v2908 = vmul.bf16 %v2906, %v281
        %v2909 = vmul.bf16 %v2906, %v282
        %v2910 = vmul.bf16 %v2906, %v283
        %s2911 = sld [smem:[#allocation2 + $0x73]]
        %v2912 = vstv %s2911
        %v2913 = vpack.c.bf16 %v2912, %v2912
        %v2914 = vmul.bf16 %v2913, %v289
        %v2915 = vmul.bf16 %v2913, %v290
        %v2916 = vmul.bf16 %v2913, %v291
        %v2917 = vmul.bf16 %v2913, %v292
        %s2918 = sld [smem:[#allocation2 + $0x74]]
        %v2919 = vstv %s2918
        %v2920 = vpack.c.bf16 %v2919, %v2919
        %v2921 = vmul.bf16 %v2920, %v280
        %v2922 = vmul.bf16 %v2920, %v281
        %v2923 = vmul.bf16 %v2920, %v282
        %v2924 = vmul.bf16 %v2920, %v283
        %v2925 = vadd.bf16 %v2865, %v2872
        %v2926 = vadd.bf16 %v2866, %v2873
        %v2927 = vadd.bf16 %v2867, %v2874
        %v2928 = vadd.bf16 %v2868, %v2875
        %2933 = vrot.lane.b32.xlu0 %v2886, 1
        %v2934 = vpop.permute.xlu0 %2933
        %2935 = vrot.lane.b32.xlu0 %v2887, 1
        %v2936 = vpop.permute.xlu0 %2935
        %2937 = vrot.lane.b32.xlu0 %v2888, 1
        %v2938 = vpop.permute.xlu0 %2937
        %2939 = vrot.lane.b32.xlu0 %v2889, 1
        %v2940 = vpop.permute.xlu0 %2939
        %v2941 = vrot.slane %v2934, 4
        %v2942 = vrot.slane %v2936, 4
        %v2943 = vrot.slane %v2938, 4
        %v2944 = vrot.slane %v2940, 4
        %v2945 = vsel %vm376, %v2941, %v2934
        %v2946 = vsel %vm376, %v2942, %v2936
        %v2947 = vsel %vm376, %v2943, %v2938
        %v2948 = vsel %vm376, %v2944, %v2940
        %v2953 = vadd.bf16 %v2879, %v2945
        %v2954 = vadd.bf16 %v2880, %v2946
        %v2955 = vadd.bf16 %v2881, %v2947
        %v2956 = vadd.bf16 %v2882, %v2948
        %2961 = vrot.lane.b32.xlu0 %v2900, 127
        %v2962 = vpop.permute.xlu0 %2961
        %2963 = vrot.lane.b32.xlu0 %v2901, 127
        %v2964 = vpop.permute.xlu0 %2963
        %2965 = vrot.lane.b32.xlu0 %v2902, 127
        %v2966 = vpop.permute.xlu0 %2965
        %2967 = vrot.lane.b32.xlu0 %v2903, 127
        %v2968 = vpop.permute.xlu0 %2967
        %v2969 = vrot.slane %v2962, 4
        %v2970 = vrot.slane %v2964, 4
        %v2971 = vrot.slane %v2966, 4
        %v2972 = vrot.slane %v2968, 4
        %v2973 = vsel %vm405, %v2962, %v2969
        %v2974 = vsel %vm405, %v2964, %v2970
        %v2975 = vsel %vm405, %v2966, %v2971
        %v2976 = vsel %vm405, %v2968, %v2972
        %v2981 = vadd.bf16 %v2893, %v2973
        %v2982 = vadd.bf16 %v2894, %v2974
        %v2983 = vadd.bf16 %v2895, %v2975
        %v2984 = vadd.bf16 %v2896, %v2976
        %v2985 = vadd.bf16 %v2907, %v2914
        %v2986 = vadd.bf16 %v2908, %v2915
        %v2987 = vadd.bf16 %v2909, %v2916
        %v2988 = vadd.bf16 %v2910, %v2917
        %2993 = vrot.lane.b32.xlu0 %v2953, 127
        %v2994 = vpop.permute.xlu0 %2993
        %2995 = vrot.lane.b32.xlu0 %v2954, 127
        %v2996 = vpop.permute.xlu0 %2995
        %2997 = vrot.lane.b32.xlu0 %v2955, 127
        %v2998 = vpop.permute.xlu0 %2997
        %2999 = vrot.lane.b32.xlu0 %v2956, 127
        %v3000 = vpop.permute.xlu0 %2999
        %v3001 = vrot.slane %v2994, 4
        %v3002 = vrot.slane %v2996, 4
        %v3003 = vrot.slane %v2998, 4
        %v3004 = vrot.slane %v3000, 4
        %v3005 = vsel %vm405, %v2994, %v3001
        %v3006 = vsel %vm405, %v2996, %v3002
        %v3007 = vsel %vm405, %v2998, %v3003
        %v3008 = vsel %vm405, %v3000, %v3004
        %v3013 = vadd.bf16 %v2925, %v3005
        %v3014 = vadd.bf16 %v2926, %v3006
        %v3015 = vadd.bf16 %v2927, %v3007
        %v3016 = vadd.bf16 %v2928, %v3008
        %v3017 = vadd.bf16 %v2981, %v2985
        %v3018 = vadd.bf16 %v2982, %v2986
        %v3019 = vadd.bf16 %v2983, %v2987
        %v3020 = vadd.bf16 %v2984, %v2988
        %v3021 = vadd.bf16 %v3013, %v3017
        %v3022 = vadd.bf16 %v3014, %v3018
        %v3023 = vadd.bf16 %v3015, %v3019
        %v3024 = vadd.bf16 %v3016, %v3020
        %3029 = vrot.lane.b32.xlu0 %v2921, 127
        %v3030 = vpop.permute.xlu0 %3029
        %3031 = vrot.lane.b32.xlu0 %v2922, 127
        %v3032 = vpop.permute.xlu0 %3031
        %3033 = vrot.lane.b32.xlu0 %v2923, 127
        %v3034 = vpop.permute.xlu0 %3033
        %3035 = vrot.lane.b32.xlu0 %v2924, 127
        %v3036 = vpop.permute.xlu0 %3035
        %v3037 = vrot.slane %v3030, 4
        %v3038 = vrot.slane %v3032, 4
        %v3039 = vrot.slane %v3034, 4
        %v3040 = vrot.slane %v3036, 4
        %v3041 = vsel %vm405, %v3030, %v3037
        %v3042 = vsel %vm405, %v3032, %v3038
        %v3043 = vsel %vm405, %v3034, %v3039
        %v3044 = vsel %vm405, %v3036, %v3040
        %v3049 = vadd.bf16 %v3021, %v3041
        %v3050 = vadd.bf16 %v3022, %v3042
        %v3051 = vadd.bf16 %v3023, %v3043
        %v3052 = vadd.bf16 %v3024, %v3044
        %v3053 = vunpack.c.l.bf16 %v3049
        %v3054 = vunpack.c.l.bf16 %v3050
        %v3055 = vunpack.c.l.bf16 %v3051
        %v3056 = vunpack.c.l.bf16 %v3052
        %s3057 = sld [smem:[#allocation4 + $0xc]]
        %v3058 = vstv %s3057
        %v3059 = vadd.f32 %v3053, %v3058
        %v3060 = vadd.f32 %v3054, %v3058
        %v3061 = vadd.f32 %v3055, %v3058
        %v3062 = vadd.f32 %v3056, %v3058
        %v3063 = vmax.f32 %v3059, 0.0
        %v3064 = vmax.f32 %v3060, 0.0
        %v3065 = vmax.f32 %v3061, 0.0
        %v3066 = vmax.f32 %v3062, 0.0
        %v3067 = vmin.f32 %v3063, 6.0
        %v3068 = vmin.f32 %v3064, 6.0
        %v3069 = vmin.f32 %v3065, 6.0
        %v3070 = vmin.f32 %v3066, 6.0
        %s3071 = scalar_lea.vmem %s238, 384
        %3072 = vst [vmem:[%s3071] sm:$0xff] %v3067
        %3073 = vst [vmem:[%s3071 + $0x8] sm:$0xff] %v3068
        %3074 = vst [vmem:[%s3071 + $0x10] sm:$0xff] %v3069
        %3075 = vst [vmem:[%s3071 + $0x18] sm:$0xff] %v3070
        %s3076 = sld [smem:[#allocation2 + $0x75]]
        %v3077 = vstv %s3076
        %v3078 = vpack.c.bf16 %v3077, %v3077
        %v3079 = vmul.bf16 %v3078, %v244
        %v3080 = vmul.bf16 %v3078, %v245
        %v3081 = vmul.bf16 %v3078, %v246
        %v3082 = vmul.bf16 %v3078, %v247
        %s3083 = sld [smem:[#allocation2 + $0x76]]
        %v3084 = vstv %s3083
        %v3085 = vpack.c.bf16 %v3084, %v3084
        %v3086 = vmul.bf16 %v3085, %v253
        %v3087 = vmul.bf16 %v3085, %v254
        %v3088 = vmul.bf16 %v3085, %v255
        %v3089 = vmul.bf16 %v3085, %v256
        %s3090 = sld [smem:[#allocation2 + $0x77]]
        %v3091 = vstv %s3090
        %v3092 = vpack.c.bf16 %v3091, %v3091
        %v3093 = vmul.bf16 %v3092, %v244
        %v3094 = vmul.bf16 %v3092, %v245
        %v3095 = vmul.bf16 %v3092, %v246
        %v3096 = vmul.bf16 %v3092, %v247
        %s3097 = sld [smem:[#allocation2 + $0x78]]
        %v3098 = vstv %s3097
        %v3099 = vpack.c.bf16 %v3098, %v3098
        %v3100 = vmul.bf16 %v3099, %v262
        %v3101 = vmul.bf16 %v3099, %v263
        %v3102 = vmul.bf16 %v3099, %v264
        %v3103 = vmul.bf16 %v3099, %v265
        %s3104 = sld [smem:[#allocation2 + $0x79]]
        %v3105 = vstv %s3104
        %v3106 = vpack.c.bf16 %v3105, %v3105
        %v3107 = vmul.bf16 %v3106, %v271
        %v3108 = vmul.bf16 %v3106, %v272
        %v3109 = vmul.bf16 %v3106, %v273
        %v3110 = vmul.bf16 %v3106, %v274
        %s3111 = sld [smem:[#allocation2 + $0x7a]]
        %v3112 = vstv %s3111
        %v3113 = vpack.c.bf16 %v3112, %v3112
        %v3114 = vmul.bf16 %v3113, %v262
        %v3115 = vmul.bf16 %v3113, %v263
        %v3116 = vmul.bf16 %v3113, %v264
        %v3117 = vmul.bf16 %v3113, %v265
        %s3118 = sld [smem:[#allocation2 + $0x7b]]
        %v3119 = vstv %s3118
        %v3120 = vpack.c.bf16 %v3119, %v3119
        %v3121 = vmul.bf16 %v3120, %v280
        %v3122 = vmul.bf16 %v3120, %v281
        %v3123 = vmul.bf16 %v3120, %v282
        %v3124 = vmul.bf16 %v3120, %v283
        %s3125 = sld [smem:[#allocation2 + $0x7c]]
        %v3126 = vstv %s3125
        %v3127 = vpack.c.bf16 %v3126, %v3126
        %v3128 = vmul.bf16 %v3127, %v289
        %v3129 = vmul.bf16 %v3127, %v290
        %v3130 = vmul.bf16 %v3127, %v291
        %v3131 = vmul.bf16 %v3127, %v292
        %s3132 = sld [smem:[#allocation2 + $0x7d]]
        %v3133 = vstv %s3132
        %v3134 = vpack.c.bf16 %v3133, %v3133
        %v3135 = vmul.bf16 %v3134, %v280
        %v3136 = vmul.bf16 %v3134, %v281
        %v3137 = vmul.bf16 %v3134, %v282
        %v3138 = vmul.bf16 %v3134, %v283
        %v3139 = vadd.bf16 %v3079, %v3086
        %v3140 = vadd.bf16 %v3080, %v3087
        %v3141 = vadd.bf16 %v3081, %v3088
        %v3142 = vadd.bf16 %v3082, %v3089
        %3147 = vrot.lane.b32.xlu0 %v3100, 1
        %v3148 = vpop.permute.xlu0 %3147
        %3149 = vrot.lane.b32.xlu0 %v3101, 1
        %v3150 = vpop.permute.xlu0 %3149
        %3151 = vrot.lane.b32.xlu0 %v3102, 1
        %v3152 = vpop.permute.xlu0 %3151
        %3153 = vrot.lane.b32.xlu0 %v3103, 1
        %v3154 = vpop.permute.xlu0 %3153
        %v3155 = vrot.slane %v3148, 4
        %v3156 = vrot.slane %v3150, 4
        %v3157 = vrot.slane %v3152, 4
        %v3158 = vrot.slane %v3154, 4
        %v3159 = vsel %vm376, %v3155, %v3148
        %v3160 = vsel %vm376, %v3156, %v3150
        %v3161 = vsel %vm376, %v3157, %v3152
        %v3162 = vsel %vm376, %v3158, %v3154
        %v3167 = vadd.bf16 %v3093, %v3159
        %v3168 = vadd.bf16 %v3094, %v3160
        %v3169 = vadd.bf16 %v3095, %v3161
        %v3170 = vadd.bf16 %v3096, %v3162
        %3175 = vrot.lane.b32.xlu0 %v3114, 127
        %v3176 = vpop.permute.xlu0 %3175
        %3177 = vrot.lane.b32.xlu0 %v3115, 127
        %v3178 = vpop.permute.xlu0 %3177
        %3179 = vrot.lane.b32.xlu0 %v3116, 127
        %v3180 = vpop.permute.xlu0 %3179
        %3181 = vrot.lane.b32.xlu0 %v3117, 127
        %v3182 = vpop.permute.xlu0 %3181
        %v3183 = vrot.slane %v3176, 4
        %v3184 = vrot.slane %v3178, 4
        %v3185 = vrot.slane %v3180, 4
        %v3186 = vrot.slane %v3182, 4
        %v3187 = vsel %vm405, %v3176, %v3183
        %v3188 = vsel %vm405, %v3178, %v3184
        %v3189 = vsel %vm405, %v3180, %v3185
        %v3190 = vsel %vm405, %v3182, %v3186
        %v3195 = vadd.bf16 %v3107, %v3187
        %v3196 = vadd.bf16 %v3108, %v3188
        %v3197 = vadd.bf16 %v3109, %v3189
        %v3198 = vadd.bf16 %v3110, %v3190
        %v3199 = vadd.bf16 %v3121, %v3128
        %v3200 = vadd.bf16 %v3122, %v3129
        %v3201 = vadd.bf16 %v3123, %v3130
        %v3202 = vadd.bf16 %v3124, %v3131
        %3207 = vrot.lane.b32.xlu0 %v3167, 127
        %v3208 = vpop.permute.xlu0 %3207
        %3209 = vrot.lane.b32.xlu0 %v3168, 127
        %v3210 = vpop.permute.xlu0 %3209
        %3211 = vrot.lane.b32.xlu0 %v3169, 127
        %v3212 = vpop.permute.xlu0 %3211
        %3213 = vrot.lane.b32.xlu0 %v3170, 127
        %v3214 = vpop.permute.xlu0 %3213
        %v3215 = vrot.slane %v3208, 4
        %v3216 = vrot.slane %v3210, 4
        %v3217 = vrot.slane %v3212, 4
        %v3218 = vrot.slane %v3214, 4
        %v3219 = vsel %vm405, %v3208, %v3215
        %v3220 = vsel %vm405, %v3210, %v3216
        %v3221 = vsel %vm405, %v3212, %v3217
        %v3222 = vsel %vm405, %v3214, %v3218
        %v3227 = vadd.bf16 %v3139, %v3219
        %v3228 = vadd.bf16 %v3140, %v3220
        %v3229 = vadd.bf16 %v3141, %v3221
        %v3230 = vadd.bf16 %v3142, %v3222
        %v3231 = vadd.bf16 %v3195, %v3199
        %v3232 = vadd.bf16 %v3196, %v3200
        %v3233 = vadd.bf16 %v3197, %v3201
        %v3234 = vadd.bf16 %v3198, %v3202
        %v3235 = vadd.bf16 %v3227, %v3231
        %v3236 = vadd.bf16 %v3228, %v3232
        %v3237 = vadd.bf16 %v3229, %v3233
        %v3238 = vadd.bf16 %v3230, %v3234
        %3243 = vrot.lane.b32.xlu0 %v3135, 127
        %v3244 = vpop.permute.xlu0 %3243
        %3245 = vrot.lane.b32.xlu0 %v3136, 127
        %v3246 = vpop.permute.xlu0 %3245
        %3247 = vrot.lane.b32.xlu0 %v3137, 127
        %v3248 = vpop.permute.xlu0 %3247
        %3249 = vrot.lane.b32.xlu0 %v3138, 127
        %v3250 = vpop.permute.xlu0 %3249
        %v3251 = vrot.slane %v3244, 4
        %v3252 = vrot.slane %v3246, 4
        %v3253 = vrot.slane %v3248, 4
        %v3254 = vrot.slane %v3250, 4
        %v3255 = vsel %vm405, %v3244, %v3251
        %v3256 = vsel %vm405, %v3246, %v3252
        %v3257 = vsel %vm405, %v3248, %v3253
        %v3258 = vsel %vm405, %v3250, %v3254
        %v3263 = vadd.bf16 %v3235, %v3255
        %v3264 = vadd.bf16 %v3236, %v3256
        %v3265 = vadd.bf16 %v3237, %v3257
        %v3266 = vadd.bf16 %v3238, %v3258
        %v3267 = vunpack.c.l.bf16 %v3263
        %v3268 = vunpack.c.l.bf16 %v3264
        %v3269 = vunpack.c.l.bf16 %v3265
        %v3270 = vunpack.c.l.bf16 %v3266
        %s3271 = sld [smem:[#allocation4 + $0xd]]
        %v3272 = vstv %s3271
        %v3273 = vadd.f32 %v3267, %v3272
        %v3274 = vadd.f32 %v3268, %v3272
        %v3275 = vadd.f32 %v3269, %v3272
        %v3276 = vadd.f32 %v3270, %v3272
        %v3277 = vmax.f32 %v3273, 0.0
        %v3278 = vmax.f32 %v3274, 0.0
        %v3279 = vmax.f32 %v3275, 0.0
        %v3280 = vmax.f32 %v3276, 0.0
        %v3281 = vmin.f32 %v3277, 6.0
        %v3282 = vmin.f32 %v3278, 6.0
        %v3283 = vmin.f32 %v3279, 6.0
        %v3284 = vmin.f32 %v3280, 6.0
        %s3285 = scalar_lea.vmem %s238, 416
        %3286 = vst [vmem:[%s3285] sm:$0xff] %v3281
        %3287 = vst [vmem:[%s3285 + $0x8] sm:$0xff] %v3282
        %3288 = vst [vmem:[%s3285 + $0x10] sm:$0xff] %v3283
        %3289 = vst [vmem:[%s3285 + $0x18] sm:$0xff] %v3284
        %s3290 = sld [smem:[#allocation2 + $0x7e]]
        %v3291 = vstv %s3290
        %v3292 = vpack.c.bf16 %v3291, %v3291
        %v3293 = vmul.bf16 %v3292, %v244
        %v3294 = vmul.bf16 %v3292, %v245
        %v3295 = vmul.bf16 %v3292, %v246
        %v3296 = vmul.bf16 %v3292, %v247
        %s3297 = sld [smem:[#allocation2 + $0x7f]]
        %v3298 = vstv %s3297
        %v3299 = vpack.c.bf16 %v3298, %v3298
        %v3300 = vmul.bf16 %v3299, %v253
        %v3301 = vmul.bf16 %v3299, %v254
        %v3302 = vmul.bf16 %v3299, %v255
        %v3303 = vmul.bf16 %v3299, %v256
        %s3304 = sld [smem:[#allocation2 + $0x80]]
        %v3305 = vstv %s3304
        %v3306 = vpack.c.bf16 %v3305, %v3305
        %v3307 = vmul.bf16 %v3306, %v244
        %v3308 = vmul.bf16 %v3306, %v245
        %v3309 = vmul.bf16 %v3306, %v246
        %v3310 = vmul.bf16 %v3306, %v247
        %s3311 = sld [smem:[#allocation2 + $0x81]]
        %v3312 = vstv %s3311
        %v3313 = vpack.c.bf16 %v3312, %v3312
        %v3314 = vmul.bf16 %v3313, %v262
        %v3315 = vmul.bf16 %v3313, %v263
        %v3316 = vmul.bf16 %v3313, %v264
        %v3317 = vmul.bf16 %v3313, %v265
        %s3318 = sld [smem:[#allocation2 + $0x82]]
        %v3319 = vstv %s3318
        %v3320 = vpack.c.bf16 %v3319, %v3319
        %v3321 = vmul.bf16 %v3320, %v271
        %v3322 = vmul.bf16 %v3320, %v272
        %v3323 = vmul.bf16 %v3320, %v273
        %v3324 = vmul.bf16 %v3320, %v274
        %s3325 = sld [smem:[#allocation2 + $0x83]]
        %v3326 = vstv %s3325
        %v3327 = vpack.c.bf16 %v3326, %v3326
        %v3328 = vmul.bf16 %v3327, %v262
        %v3329 = vmul.bf16 %v3327, %v263
        %v3330 = vmul.bf16 %v3327, %v264
        %v3331 = vmul.bf16 %v3327, %v265
        %s3332 = sld [smem:[#allocation2 + $0x84]]
        %v3333 = vstv %s3332
        %v3334 = vpack.c.bf16 %v3333, %v3333
        %v3335 = vmul.bf16 %v3334, %v280
        %v3336 = vmul.bf16 %v3334, %v281
        %v3337 = vmul.bf16 %v3334, %v282
        %v3338 = vmul.bf16 %v3334, %v283
        %s3339 = sld [smem:[#allocation2 + $0x85]]
        %v3340 = vstv %s3339
        %v3341 = vpack.c.bf16 %v3340, %v3340
        %v3342 = vmul.bf16 %v3341, %v289
        %v3343 = vmul.bf16 %v3341, %v290
        %v3344 = vmul.bf16 %v3341, %v291
        %v3345 = vmul.bf16 %v3341, %v292
        %s3346 = sld [smem:[#allocation2 + $0x86]]
        %v3347 = vstv %s3346
        %v3348 = vpack.c.bf16 %v3347, %v3347
        %v3349 = vmul.bf16 %v3348, %v280
        %v3350 = vmul.bf16 %v3348, %v281
        %v3351 = vmul.bf16 %v3348, %v282
        %v3352 = vmul.bf16 %v3348, %v283
        %v3353 = vadd.bf16 %v3293, %v3300
        %v3354 = vadd.bf16 %v3294, %v3301
        %v3355 = vadd.bf16 %v3295, %v3302
        %v3356 = vadd.bf16 %v3296, %v3303
        %3361 = vrot.lane.b32.xlu0 %v3314, 1
        %v3362 = vpop.permute.xlu0 %3361
        %3363 = vrot.lane.b32.xlu0 %v3315, 1
        %v3364 = vpop.permute.xlu0 %3363
        %3365 = vrot.lane.b32.xlu0 %v3316, 1
        %v3366 = vpop.permute.xlu0 %3365
        %3367 = vrot.lane.b32.xlu0 %v3317, 1
        %v3368 = vpop.permute.xlu0 %3367
        %v3369 = vrot.slane %v3362, 4
        %v3370 = vrot.slane %v3364, 4
        %v3371 = vrot.slane %v3366, 4
        %v3372 = vrot.slane %v3368, 4
        %v3373 = vsel %vm376, %v3369, %v3362
        %v3374 = vsel %vm376, %v3370, %v3364
        %v3375 = vsel %vm376, %v3371, %v3366
        %v3376 = vsel %vm376, %v3372, %v3368
        %v3381 = vadd.bf16 %v3307, %v3373
        %v3382 = vadd.bf16 %v3308, %v3374
        %v3383 = vadd.bf16 %v3309, %v3375
        %v3384 = vadd.bf16 %v3310, %v3376
        %3389 = vrot.lane.b32.xlu0 %v3328, 127
        %v3390 = vpop.permute.xlu0 %3389
        %3391 = vrot.lane.b32.xlu0 %v3329, 127
        %v3392 = vpop.permute.xlu0 %3391
        %3393 = vrot.lane.b32.xlu0 %v3330, 127
        %v3394 = vpop.permute.xlu0 %3393
        %3395 = vrot.lane.b32.xlu0 %v3331, 127
        %v3396 = vpop.permute.xlu0 %3395
        %v3397 = vrot.slane %v3390, 4
        %v3398 = vrot.slane %v3392, 4
        %v3399 = vrot.slane %v3394, 4
        %v3400 = vrot.slane %v3396, 4
        %v3401 = vsel %vm405, %v3390, %v3397
        %v3402 = vsel %vm405, %v3392, %v3398
        %v3403 = vsel %vm405, %v3394, %v3399
        %v3404 = vsel %vm405, %v3396, %v3400
        %v3409 = vadd.bf16 %v3321, %v3401
        %v3410 = vadd.bf16 %v3322, %v3402
        %v3411 = vadd.bf16 %v3323, %v3403
        %v3412 = vadd.bf16 %v3324, %v3404
        %v3413 = vadd.bf16 %v3335, %v3342
        %v3414 = vadd.bf16 %v3336, %v3343
        %v3415 = vadd.bf16 %v3337, %v3344
        %v3416 = vadd.bf16 %v3338, %v3345
        %3421 = vrot.lane.b32.xlu0 %v3381, 127
        %v3422 = vpop.permute.xlu0 %3421
        %3423 = vrot.lane.b32.xlu0 %v3382, 127
        %v3424 = vpop.permute.xlu0 %3423
        %3425 = vrot.lane.b32.xlu0 %v3383, 127
        %v3426 = vpop.permute.xlu0 %3425
        %3427 = vrot.lane.b32.xlu0 %v3384, 127
        %v3428 = vpop.permute.xlu0 %3427
        %v3429 = vrot.slane %v3422, 4
        %v3430 = vrot.slane %v3424, 4
        %v3431 = vrot.slane %v3426, 4
        %v3432 = vrot.slane %v3428, 4
        %v3433 = vsel %vm405, %v3422, %v3429
        %v3434 = vsel %vm405, %v3424, %v3430
        %v3435 = vsel %vm405, %v3426, %v3431
        %v3436 = vsel %vm405, %v3428, %v3432
        %v3441 = vadd.bf16 %v3353, %v3433
        %v3442 = vadd.bf16 %v3354, %v3434
        %v3443 = vadd.bf16 %v3355, %v3435
        %v3444 = vadd.bf16 %v3356, %v3436
        %v3445 = vadd.bf16 %v3409, %v3413
        %v3446 = vadd.bf16 %v3410, %v3414
        %v3447 = vadd.bf16 %v3411, %v3415
        %v3448 = vadd.bf16 %v3412, %v3416
        %v3449 = vadd.bf16 %v3441, %v3445
        %v3450 = vadd.bf16 %v3442, %v3446
        %v3451 = vadd.bf16 %v3443, %v3447
        %v3452 = vadd.bf16 %v3444, %v3448
        %3457 = vrot.lane.b32.xlu0 %v3349, 127
        %v3458 = vpop.permute.xlu0 %3457
        %3459 = vrot.lane.b32.xlu0 %v3350, 127
        %v3460 = vpop.permute.xlu0 %3459
        %3461 = vrot.lane.b32.xlu0 %v3351, 127
        %v3462 = vpop.permute.xlu0 %3461
        %3463 = vrot.lane.b32.xlu0 %v3352, 127
        %v3464 = vpop.permute.xlu0 %3463
        %v3465 = vrot.slane %v3458, 4
        %v3466 = vrot.slane %v3460, 4
        %v3467 = vrot.slane %v3462, 4
        %v3468 = vrot.slane %v3464, 4
        %v3469 = vsel %vm405, %v3458, %v3465
        %v3470 = vsel %vm405, %v3460, %v3466
        %v3471 = vsel %vm405, %v3462, %v3467
        %v3472 = vsel %vm405, %v3464, %v3468
        %v3477 = vadd.bf16 %v3449, %v3469
        %v3478 = vadd.bf16 %v3450, %v3470
        %v3479 = vadd.bf16 %v3451, %v3471
        %v3480 = vadd.bf16 %v3452, %v3472
        %v3481 = vunpack.c.l.bf16 %v3477
        %v3482 = vunpack.c.l.bf16 %v3478
        %v3483 = vunpack.c.l.bf16 %v3479
        %v3484 = vunpack.c.l.bf16 %v3480
        %s3485 = sld [smem:[#allocation4 + $0xe]]
        %v3486 = vstv %s3485
        %v3487 = vadd.f32 %v3481, %v3486
        %v3488 = vadd.f32 %v3482, %v3486
        %v3489 = vadd.f32 %v3483, %v3486
        %v3490 = vadd.f32 %v3484, %v3486
        %v3491 = vmax.f32 %v3487, 0.0
        %v3492 = vmax.f32 %v3488, 0.0
        %v3493 = vmax.f32 %v3489, 0.0
        %v3494 = vmax.f32 %v3490, 0.0
        %v3495 = vmin.f32 %v3491, 6.0
        %v3496 = vmin.f32 %v3492, 6.0
        %v3497 = vmin.f32 %v3493, 6.0
        %v3498 = vmin.f32 %v3494, 6.0
        %s3499 = scalar_lea.vmem %s238, 448
        %3500 = vst [vmem:[%s3499] sm:$0xff] %v3495
        %3501 = vst [vmem:[%s3499 + $0x8] sm:$0xff] %v3496
        %3502 = vst [vmem:[%s3499 + $0x10] sm:$0xff] %v3497
        %3503 = vst [vmem:[%s3499 + $0x18] sm:$0xff] %v3498
        %s3504 = sld [smem:[#allocation2 + $0x87]]
        %v3505 = vstv %s3504
        %v3506 = vpack.c.bf16 %v3505, %v3505
        %v3507 = vmul.bf16 %v3506, %v244
        %v3508 = vmul.bf16 %v3506, %v245
        %v3509 = vmul.bf16 %v3506, %v246
        %v3510 = vmul.bf16 %v3506, %v247
        %s3511 = sld [smem:[#allocation2 + $0x88]]
        %v3512 = vstv %s3511
        %v3513 = vpack.c.bf16 %v3512, %v3512
        %v3514 = vmul.bf16 %v3513, %v253
        %v3515 = vmul.bf16 %v3513, %v254
        %v3516 = vmul.bf16 %v3513, %v255
        %v3517 = vmul.bf16 %v3513, %v256
        %s3518 = sld [smem:[#allocation2 + $0x89]]
        %v3519 = vstv %s3518
        %v3520 = vpack.c.bf16 %v3519, %v3519
        %v3521 = vmul.bf16 %v3520, %v244
        %v3522 = vmul.bf16 %v3520, %v245
        %v3523 = vmul.bf16 %v3520, %v246
        %v3524 = vmul.bf16 %v3520, %v247
        %s3525 = sld [smem:[#allocation2 + $0x8a]]
        %v3526 = vstv %s3525
        %v3527 = vpack.c.bf16 %v3526, %v3526
        %v3528 = vmul.bf16 %v3527, %v262
        %v3529 = vmul.bf16 %v3527, %v263
        %v3530 = vmul.bf16 %v3527, %v264
        %v3531 = vmul.bf16 %v3527, %v265
        %s3532 = sld [smem:[#allocation2 + $0x8b]]
        %v3533 = vstv %s3532
        %v3534 = vpack.c.bf16 %v3533, %v3533
        %v3535 = vmul.bf16 %v3534, %v271
        %v3536 = vmul.bf16 %v3534, %v272
        %v3537 = vmul.bf16 %v3534, %v273
        %v3538 = vmul.bf16 %v3534, %v274
        %s3539 = sld [smem:[#allocation2 + $0x8c]]
        %v3540 = vstv %s3539
        %v3541 = vpack.c.bf16 %v3540, %v3540
        %v3542 = vmul.bf16 %v3541, %v262
        %v3543 = vmul.bf16 %v3541, %v263
        %v3544 = vmul.bf16 %v3541, %v264
        %v3545 = vmul.bf16 %v3541, %v265
        %s3546 = sld [smem:[#allocation2 + $0x8d]]
        %v3547 = vstv %s3546
        %v3548 = vpack.c.bf16 %v3547, %v3547
        %v3549 = vmul.bf16 %v3548, %v280
        %v3550 = vmul.bf16 %v3548, %v281
        %v3551 = vmul.bf16 %v3548, %v282
        %v3552 = vmul.bf16 %v3548, %v283
        %s3553 = sld [smem:[#allocation2 + $0x8e]]
        %v3554 = vstv %s3553
        %v3555 = vpack.c.bf16 %v3554, %v3554
        %v3556 = vmul.bf16 %v3555, %v289
        %v3557 = vmul.bf16 %v3555, %v290
        %v3558 = vmul.bf16 %v3555, %v291
        %v3559 = vmul.bf16 %v3555, %v292
        %s3560 = sld [smem:[#allocation2 + $0x8f]]
        %v3561 = vstv %s3560
        %v3562 = vpack.c.bf16 %v3561, %v3561
        %v3563 = vmul.bf16 %v3562, %v280
        %v3564 = vmul.bf16 %v3562, %v281
        %v3565 = vmul.bf16 %v3562, %v282
        %v3566 = vmul.bf16 %v3562, %v283
        %v3567 = vadd.bf16 %v3507, %v3514
        %v3568 = vadd.bf16 %v3508, %v3515
        %v3569 = vadd.bf16 %v3509, %v3516
        %v3570 = vadd.bf16 %v3510, %v3517
        %3575 = vrot.lane.b32.xlu0 %v3528, 1
        %v3576 = vpop.permute.xlu0 %3575
        %3577 = vrot.lane.b32.xlu0 %v3529, 1
        %v3578 = vpop.permute.xlu0 %3577
        %3579 = vrot.lane.b32.xlu0 %v3530, 1
        %v3580 = vpop.permute.xlu0 %3579
        %3581 = vrot.lane.b32.xlu0 %v3531, 1
        %v3582 = vpop.permute.xlu0 %3581
        %v3583 = vrot.slane %v3576, 4
        %v3584 = vrot.slane %v3578, 4
        %v3585 = vrot.slane %v3580, 4
        %v3586 = vrot.slane %v3582, 4
        %v3587 = vsel %vm376, %v3583, %v3576
        %v3588 = vsel %vm376, %v3584, %v3578
        %v3589 = vsel %vm376, %v3585, %v3580
        %v3590 = vsel %vm376, %v3586, %v3582
        %v3595 = vadd.bf16 %v3521, %v3587
        %v3596 = vadd.bf16 %v3522, %v3588
        %v3597 = vadd.bf16 %v3523, %v3589
        %v3598 = vadd.bf16 %v3524, %v3590
        %3603 = vrot.lane.b32.xlu0 %v3542, 127
        %v3604 = vpop.permute.xlu0 %3603
        %3605 = vrot.lane.b32.xlu0 %v3543, 127
        %v3606 = vpop.permute.xlu0 %3605
        %3607 = vrot.lane.b32.xlu0 %v3544, 127
        %v3608 = vpop.permute.xlu0 %3607
        %3609 = vrot.lane.b32.xlu0 %v3545, 127
        %v3610 = vpop.permute.xlu0 %3609
        %v3611 = vrot.slane %v3604, 4
        %v3612 = vrot.slane %v3606, 4
        %v3613 = vrot.slane %v3608, 4
        %v3614 = vrot.slane %v3610, 4
        %v3615 = vsel %vm405, %v3604, %v3611
        %v3616 = vsel %vm405, %v3606, %v3612
        %v3617 = vsel %vm405, %v3608, %v3613
        %v3618 = vsel %vm405, %v3610, %v3614
        %v3623 = vadd.bf16 %v3535, %v3615
        %v3624 = vadd.bf16 %v3536, %v3616
        %v3625 = vadd.bf16 %v3537, %v3617
        %v3626 = vadd.bf16 %v3538, %v3618
        %v3627 = vadd.bf16 %v3549, %v3556
        %v3628 = vadd.bf16 %v3550, %v3557
        %v3629 = vadd.bf16 %v3551, %v3558
        %v3630 = vadd.bf16 %v3552, %v3559
        %3635 = vrot.lane.b32.xlu0 %v3595, 127
        %v3636 = vpop.permute.xlu0 %3635
        %3637 = vrot.lane.b32.xlu0 %v3596, 127
        %v3638 = vpop.permute.xlu0 %3637
        %3639 = vrot.lane.b32.xlu0 %v3597, 127
        %v3640 = vpop.permute.xlu0 %3639
        %3641 = vrot.lane.b32.xlu0 %v3598, 127
        %v3642 = vpop.permute.xlu0 %3641
        %v3643 = vrot.slane %v3636, 4
        %v3644 = vrot.slane %v3638, 4
        %v3645 = vrot.slane %v3640, 4
        %v3646 = vrot.slane %v3642, 4
        %v3647 = vsel %vm405, %v3636, %v3643
        %v3648 = vsel %vm405, %v3638, %v3644
        %v3649 = vsel %vm405, %v3640, %v3645
        %v3650 = vsel %vm405, %v3642, %v3646
        %v3655 = vadd.bf16 %v3567, %v3647
        %v3656 = vadd.bf16 %v3568, %v3648
        %v3657 = vadd.bf16 %v3569, %v3649
        %v3658 = vadd.bf16 %v3570, %v3650
        %v3659 = vadd.bf16 %v3623, %v3627
        %v3660 = vadd.bf16 %v3624, %v3628
        %v3661 = vadd.bf16 %v3625, %v3629
        %v3662 = vadd.bf16 %v3626, %v3630
        %v3663 = vadd.bf16 %v3655, %v3659
        %v3664 = vadd.bf16 %v3656, %v3660
        %v3665 = vadd.bf16 %v3657, %v3661
        %v3666 = vadd.bf16 %v3658, %v3662
        %3671 = vrot.lane.b32.xlu0 %v3563, 127
        %v3672 = vpop.permute.xlu0 %3671
        %3673 = vrot.lane.b32.xlu0 %v3564, 127
        %v3674 = vpop.permute.xlu0 %3673
        %3675 = vrot.lane.b32.xlu0 %v3565, 127
        %v3676 = vpop.permute.xlu0 %3675
        %3677 = vrot.lane.b32.xlu0 %v3566, 127
        %v3678 = vpop.permute.xlu0 %3677
        %v3679 = vrot.slane %v3672, 4
        %v3680 = vrot.slane %v3674, 4
        %v3681 = vrot.slane %v3676, 4
        %v3682 = vrot.slane %v3678, 4
        %v3683 = vsel %vm405, %v3672, %v3679
        %v3684 = vsel %vm405, %v3674, %v3680
        %v3685 = vsel %vm405, %v3676, %v3681
        %v3686 = vsel %vm405, %v3678, %v3682
        %v3691 = vadd.bf16 %v3663, %v3683
        %v3692 = vadd.bf16 %v3664, %v3684
        %v3693 = vadd.bf16 %v3665, %v3685
        %v3694 = vadd.bf16 %v3666, %v3686
        %v3695 = vunpack.c.l.bf16 %v3691
        %v3696 = vunpack.c.l.bf16 %v3692
        %v3697 = vunpack.c.l.bf16 %v3693
        %v3698 = vunpack.c.l.bf16 %v3694
        %s3699 = sld [smem:[#allocation4 + $0xf]]
        %v3700 = vstv %s3699
        %v3701 = vadd.f32 %v3695, %v3700
        %v3702 = vadd.f32 %v3696, %v3700
        %v3703 = vadd.f32 %v3697, %v3700
        %v3704 = vadd.f32 %v3698, %v3700
        %v3705 = vmax.f32 %v3701, 0.0
        %v3706 = vmax.f32 %v3702, 0.0
        %v3707 = vmax.f32 %v3703, 0.0
        %v3708 = vmax.f32 %v3704, 0.0
        %v3709 = vmin.f32 %v3705, 6.0
        %v3710 = vmin.f32 %v3706, 6.0
        %v3711 = vmin.f32 %v3707, 6.0
        %v3712 = vmin.f32 %v3708, 6.0
        %s3713 = scalar_lea.vmem %s238, 480
        %3714 = vst [vmem:[%s3713] sm:$0xff] %v3709
        %3715 = vst [vmem:[%s3713 + $0x8] sm:$0xff] %v3710
        %3716 = vst [vmem:[%s3713 + $0x10] sm:$0xff] %v3711
        %3717 = vst [vmem:[%s3713 + $0x18] sm:$0xff] %v3712
        %s3718 = smul.u32 4, %s21
        %p3719 = scmp.lt.s32.totalorder %s20, 1
        %s3720 = scalar_select %p3719, %s20, 1
        %p3721 = scmp.lt.s32.totalorder %s3718, 3
        %s3722 = scalar_select %p3721, %s3718, 3
        %s3723 = smul.addr %s3720, 64
        %s3724 = sadd.s32 %s3722, %s3723
        %s3725 = smul.addr %s3724, 8
        %s3726 = scalar_lea.vmem %s3, %s3725
        // Predicated region
        $region41: #{feature_extractor_forward.1} parent=31 // pred_check
          %p3727 = pneg %p118
        $region42: #{feature_extractor_forward.1} parent=31 // pred_check_branch
          %3729 = sbr.rel (%p3727) target = $region44
        $region43: #{feature_extractor_forward.1} parent=31 // pred_region
          %s3730 = smul.u32 4, %s21
        $region44: #{feature_extractor_forward.1} parent=31 // pred_fallthru
          _
      $region32: #{feature_extractor_forward.1} parent=5 // pred_fallthru
        _
      %p3731 = scmp.le.s32.totalorder 2, %s11
      // Predicated region
      $region45: #{feature_extractor_forward.1} parent=5 // pred_check
        %p3732 = pneg %p3731
      $region46: #{feature_extractor_forward.1} parent=5 // pred_check_branch
        %3734 = sbr.rel (%p3732) target = $region48
      $region47: #{feature_extractor_forward.1} parent=5 // pred_region
        %s3735 = ssub.s32 %s11, 2
        // Predicated region
        $region49: #{feature_extractor_forward.1} parent=47 // pred_check
          %p3736 = pneg %p124
        $region50: #{feature_extractor_forward.1} parent=47 // pred_check_branch
          %3738 = sbr.rel (%p3736) target = $region52
        $region51: #{feature_extractor_forward.1} parent=47 // pred_region
          %s3739 = smul.u32 4, %s23
          %p3740 = scmp.lt.s32.totalorder %s22, 1
          %s3741 = scalar_select %p3740, %s22, 1
          %p3742 = scmp.lt.s32.totalorder %s3739, 3
          %s3743 = scalar_select %p3742, %s3739, 3
          %s3744 = smul.addr %s3741, 64
          %s3745 = sadd.s32 %s3743, %s3744
          %s3746 = smul.addr %s3745, 8
          %s3747 = scalar_lea.vmem %s3, %s3746
        $region52: #{feature_extractor_forward.1} parent=47 // pred_fallthru
          _
      $region48: #{feature_extractor_forward.1} parent=5 // pred_fallthru
        _
    $region6: #{feature_extractor_forward.1} parent=1 // loop_footer
      %s15 = sadd.s32 1, %s11
    $region7: #{feature_extractor_forward.1} parent=1 // loop_footer_branch
      %10 = sbr.rel target = $region3
    $region8: #{feature_extractor_forward.1} parent=1 // loop_exit
      _
    %3748 = vsyncpa [#allocation3], 1
    %s3749 = scalar_lea.sflag [#allocation3], 1
    %3750 = vsyncpa %s3749, 1
    %3751 = vsyncpa [#allocation5], 1

</llo_original>
